<compile_context>
chip_gen: v5e
topology: v5e:2x2
jax: 0.10.0
libtpu: 0.0.40
codegen_flags: <defaults>
</compile_context>

<pallas_src>
import numpy as np
import jax
import jax.numpy as jnp
from jax.experimental import pallas as pl
from jax.experimental.pallas import tpu as pltpu  # noqa: F401  (not needed at these shapes)


# ----------------------------------------------------------------------------
# Pallas kernel
# ----------------------------------------------------------------------------
def lstm_decoder_kernel(hflat_ref, ht_ref, ct_ref, maskbias_ref,
                        wih0x_ref, wsm0_ref, whh0_ref, bias0_ref,
                        wih1_ref, whh1_ref, bias1_ref,
                        wout_ref, bout_ref,
                        prob_ref):
    T, B, NT = prob_ref.shape
    H = wout_ref.shape[0]

    def mm(x, w):
        # DEFAULT matmul precision: HIGHEST would multiply the MXU passes that
        # sit directly on the serial per-step dependency chain.
        return jnp.dot(x, w, preferred_element_type=jnp.float32)

    def sigmoid(x):
        # Exact identity sigmoid(x) = 0.5*(tanh(x/2)+1): one EUP op per slab
        # instead of exp -> reciprocal (two serial EUP ops) per cell.
        return 0.5 * (jnp.tanh(0.5 * x) + 1.0)

    # ---- loop-invariant operands: loaded / broadcast exactly once ----------
    wsm0 = wsm0_ref[...]                                      # (NT, 4H)
    whh0 = whh0_ref[...]                                      # (H, 4H)
    wih1 = wih1_ref[...]                                      # (H, 4H)
    whh1 = whh1_ref[...]                                      # (H, 4H)
    wout = wout_ref[...]                                      # (H, NT)
    bout_b = jnp.broadcast_to(bout_ref[...], (B, NT))         # (B, NT)
    bias1_b = jnp.broadcast_to(bias1_ref[...], (B, 4 * H))    # (B, 4H)

    # ---- hoisted layer-0 input projection (rows are time-major) ------------
    # One (T*B, D) x (D, 4H) matmul replaces T tiny per-step matmuls; bias0
    # folded in once.
    x_proj = mm(hflat_ref[...], wih0x_ref[...]) + bias0_ref[...]   # (T*B, 4H)

    # ---- initial feedback: softmax(output_layer(hiddens[:, 0, :H])) --------
    l_init = mm(hflat_ref[0:B, 0:H], wout) + bout_b
    e0 = jnp.exp(l_init - jnp.max(l_init, axis=-1, keepdims=True))
    sm = e0 / jnp.sum(e0, axis=-1, keepdims=True)              # (B, NT)

    h0, c0 = ht_ref[0], ct_ref[0]
    h1, c1 = ht_ref[1], ct_ref[1]

    def cell(gates, c):
        # Gate blocks pre-permuted to (i, f, o, g) by the wrapper:
        # one sigmoid over a contiguous (B, 3H) slab, one tanh over (B, H).
        s = sigmoid(gates[:, :3 * H])
        g = jnp.tanh(gates[:, 3 * H:])
        i = s[:, :H]
        f = s[:, H:2 * H]
        o = s[:, 2 * H:]
        c_new = f * c + i * g
        return o * jnp.tanh(c_new), c_new

    # ---- fully unrolled recurrence (T static & tiny) ------------------------
    # All slices / stores use static indices; non-dependent work (the masked
    # output softmax + store) overlaps the next step's serial-chain matmuls.
    for t in range(T):
        # Layer 0: two independent small dots instead of a lane concat of
        # [sm, h0] feeding one fused dot (the concat sat on the serial chain).
        gates0 = x_proj[t * B:(t + 1) * B, :] + mm(sm, wsm0) + mm(h0, whh0)
        h0, c0 = cell(gates0, c0)
        # inter-layer LSTM dropout is identity at inference time (eval mode)
        gates1 = bias1_b + mm(h0, wih1) + mm(h1, whh1)
        h1, c1 = cell(gates1, c1)
        logits_t = mm(h1, wout) + bout_b                      # (B, NT)

        # Final masked probability for this step depends only on logits_t and
        # the pre-expanded mask bias -> compute + store it here (off the
        # recurrence chain, nothing reads prob_ref again).  No epilogue,
        # no VMEM round-trip / re-read.
        prob_ref[t] = jax.nn.softmax(logits_t + maskbias_ref[t], axis=-1)

        # Unmasked softmax feedback for the next step (stable form; exact
        # division for fidelity — a couple of VPU ops extra per step).
        e = jnp.exp(logits_t - jnp.max(logits_t, axis=-1, keepdims=True))
        sm = e / jnp.sum(e, axis=-1, keepdims=True)


# ----------------------------------------------------------------------------
# One-time weight plumbing (hoisted out of the per-call path)
# ----------------------------------------------------------------------------
def prepare_decoder_params(params):
    """Run once at init; previously these ~10 tiny HLO ops ran every call."""
    def reorder_gates(a):
        # PyTorch LSTM gate order along the 4H axis is (i, f, g, o);
        # permute to (i, f, o, g) so sigmoid/tanh act on contiguous slabs.
        i, f, g, o = jnp.split(a, 4, axis=0)
        return jnp.concatenate([i, f, o, g], axis=0)

    NT = params["w_out"].shape[0]
    D = params["w_ih_l0"].shape[1] - NT        # decoder input = hiddens(D) ++ sm(NT)

    w_ih0 = reorder_gates(params["w_ih_l0"])   # (4H, D+NT)
    w_hh0 = reorder_gates(params["w_hh_l0"])   # (4H, H)
    w_ih1 = reorder_gates(params["w_ih_l1"])   # (4H, H)
    w_hh1 = reorder_gates(params["w_hh_l1"])   # (4H, H)
    bias0 = reorder_gates(params["b_ih_l0"] + params["b_hh_l0"]).reshape(1, -1)
    bias1 = reorder_gates(params["b_ih_l1"] + params["b_hh_l1"]).reshape(1, -1)

    return {
        # Layer-0 input weights split into the hiddens part (hoisted
        # projection) and the softmax-feedback part; recurrent weights kept
        # separate so each cell issues two small independent dots in-kernel.
        "wih0x": w_ih0[:, :D].T,                  # (D, 4H)
        "wsm0":  w_ih0[:, D:].T,                  # (NT, 4H)
        "whh0":  w_hh0.T,                         # (H, 4H)
        "bias0": bias0,                           # (1, 4H)
        "wih1":  w_ih1.T,                         # (H, 4H)
        "whh1":  w_hh1.T,                         # (H, 4H)
        "bias1": bias1,                           # (1, 4H)
        "wout":  params["w_out"].T,               # (H, NT)
        "bout":  params["b_out"].reshape(1, -1),  # (1, NT)
    }


# ----------------------------------------------------------------------------
# Per-call wrapper (jitted: layout plumbing fuses with the kernel dispatch)
# ----------------------------------------------------------------------------
@jax.jit
def lstm_decoder_forward(hiddens, h_t, c_t, mask, prep):
    """labels=None forward: returns probabilities of shape (B, T, num_tags)."""
    B, T, D = hiddens.shape
    NT = prep["wout"].shape[1]

    # Layout plumbing only:
    #  * time-major flattened hiddens -> all in-kernel time indexing is a
    #    static leading-axis slice after the unroll,
    #  * mask pre-expanded to the additive logits bias (T, B, NT) so the
    #    kernel does a plain leading-index load + add (no relayout/broadcast).
    hflat = jnp.transpose(hiddens, (1, 0, 2)).reshape(T * B, D)     # (T*B, D)
    mask_bias = jnp.broadcast_to(
        ((1.0 - jnp.transpose(mask, (1, 0))) * jnp.float32(-1e32))[:, :, None],
        (T, B, NT)).astype(jnp.float32)                             # (T, B, NT)

    prob_tbn = pl.pallas_call(
        lstm_decoder_kernel,
        out_shape=jax.ShapeDtypeStruct((T, B, NT), jnp.float32),
        # No grid / BlockSpecs / vmem_limit: whole working set is ~30 KiB and
        # stays resident in VMEM on v5e / v6e / v7x.  A grid would only add
        # pipeline overhead to a purely latency-bound kernel, and at B=2 we do
        # not split the batch across v7x's two TensorCores.
    )(hflat, h_t, c_t, mask_bias,
      prep["wih0x"], prep["wsm0"], prep["whh0"], prep["bias0"],
      prep["wih1"], prep["whh1"], prep["bias1"],
      prep["wout"], prep["bout"])

    # Time-major -> batch-major.  Kept outside the kernel on purpose: emitting
    # (B, T, NT) in-kernel would need a sublane->leading relayout of every
    # step's (B, NT) tile; here it is a 512-B copy fused into the same jitted
    # executable (no extra dispatch).
    return jnp.transpose(prob_tbn, (1, 0, 2))                       # (B, T, NT)


# ----------------------------------------------------------------------------
# Pure-JAX reference (mirrors PyTorch forward, use_focus=True, labels=None)
# ----------------------------------------------------------------------------
def reference_forward(hiddens, h_t, c_t, mask, params):
    B, T, D = hiddens.shape
    H = D // 2

    def dense(x, w, b):
        return jnp.dot(x, w.T) + b

    def lstm_cell(x, h, c, w_ih, w_hh, b_ih, b_hh):
        gates = jnp.dot(x, w_ih.T) + b_ih + jnp.dot(h, w_hh.T) + b_hh
        i = jax.nn.sigmoid(gates[:, 0:H])
        f = jax.nn.sigmoid(gates[:, H:2 * H])
        g = jnp.tanh(gates[:, 2 * H:3 * H])
        o = jax.nn.sigmoid(gates[:, 3 * H:4 * H])
        c_new = f * c + i * g
        return o * jnp.tanh(c_new), c_new

    last = dense(hiddens[:, 0, 0:H], params["w_out"], params["b_out"])
    sm = jax.nn.softmax(last, axis=-1)
    h0, h1 = h_t[0], h_t[1]
    c0, c1 = c_t[0], c_t[1]
    logits = []
    for t in range(T):
        x = jnp.concatenate([hiddens[:, t, :], sm], axis=-1)
        h0, c0 = lstm_cell(x, h0, c0, params["w_ih_l0"], params["w_hh_l0"],
                           params["b_ih_l0"], params["b_hh_l0"])
        h1, c1 = lstm_cell(h0, h1, c1, params["w_ih_l1"], params["w_hh_l1"],
                           params["b_ih_l1"], params["b_hh_l1"])
        lg = dense(h1, params["w_out"], params["b_out"])
        logits.append(lg)
        sm = jax.nn.softmax(lg, axis=-1)
    logits = jnp.stack(logits, axis=1)                              # (B, T, NT)
    logits = logits + (1.0 - mask)[:, :, None] * (-1e32)
    return jax.nn.softmax(logits, axis=-1)


# ----------------------------------------------------------------------------
# Main
# ----------------------------------------------------------------------------
if __name__ == "__main__":
    # TODO(synk): CrossEntropyLoss path (labels != None) not implemented; only
    # the labels=None forward (returns probabilities) is reproduced.
    B, T = 2, 8
    input_size = 32
    H = input_size // 2             # LSTM hidden size = input_size // 2
    num_tags = 8
    dec_in = input_size + num_tags  # use_focus=True decoder input size

    key = jax.random.PRNGKey(0)
    ks = jax.random.split(key, 16)
    scale = 0.1

    params = {
        "w_ih_l0": scale * jax.random.normal(ks[0], (4 * H, dec_in), jnp.float32),
        "w_hh_l0": scale * jax.random.normal(ks[1], (4 * H, H), jnp.float32),
        "b_ih_l0": scale * jax.random.normal(ks[2], (4 * H,), jnp.float32),
        "b_hh_l0": scale * jax.random.normal(ks[3], (4 * H,), jnp.float32),
        "w_ih_l1": scale * jax.random.normal(ks[4], (4 * H, H), jnp.float32),
        "w_hh_l1": scale * jax.random.normal(ks[5], (4 * H, H), jnp.float32),
        "b_ih_l1": scale * jax.random.normal(ks[6], (4 * H,), jnp.float32),
        "b_hh_l1": scale * jax.random.normal(ks[7], (4 * H,), jnp.float32),
        "w_out":   scale * jax.random.normal(ks[8], (num_tags, H), jnp.float32),
        "b_out":   scale * jax.random.normal(ks[9], (num_tags,), jnp.float32),
    }

    hiddens = jax.random.normal(ks[10], (B, T, input_size), jnp.float32)
    h_t = jax.random.normal(ks[11], (2, B, H), jnp.float32)
    c_t = jax.random.normal(ks[12], (2, B, H), jnp.float32)
    mask = jnp.ones((B, T), jnp.float32).at[1, 6:].set(0.0)

    prep = prepare_decoder_params(params)        # one-time weight plumbing
    prob = lstm_decoder_forward(hiddens, h_t, c_t, mask, prep)
    prob = jax.block_until_ready(prob)

    prob_ref = jax.block_until_ready(
        reference_forward(hiddens, h_t, c_t, mask, params))

    assert prob.shape == (B, T, num_tags)
    # Tolerance accounts for DEFAULT-precision MXU matmuls whose rounding
    # compounds through the T-step recurrence; a real bug would produce
    # O(1e-1) deviations in these probabilities.
    np.testing.assert_allclose(np.asarray(prob), np.asarray(prob_ref),
                               atol=1e-3, rtol=1e-2)
    print("KERNEL_OK")
</pallas_src>

<mosaic_0001>
module attributes {stable_mosaic.version = 11 : i64} {
  func.func @lstm_decoder_kernel(%arg0: memref<16x32xf32, #tpu.memory_space<vmem>>, %arg1: memref<2x2x16xf32, #tpu.memory_space<vmem>>, %arg2: memref<2x2x16xf32, #tpu.memory_space<vmem>>, %arg3: memref<8x2x8xf32, #tpu.memory_space<vmem>>, %arg4: memref<32x64xf32, #tpu.memory_space<vmem>>, %arg5: memref<8x64xf32, #tpu.memory_space<vmem>>, %arg6: memref<16x64xf32, #tpu.memory_space<vmem>>, %arg7: memref<1x64xf32, #tpu.memory_space<vmem>>, %arg8: memref<16x64xf32, #tpu.memory_space<vmem>>, %arg9: memref<16x64xf32, #tpu.memory_space<vmem>>, %arg10: memref<1x64xf32, #tpu.memory_space<vmem>>, %arg11: memref<16x8xf32, #tpu.memory_space<vmem>>, %arg12: memref<1x8xf32, #tpu.memory_space<vmem>>, %arg13: memref<8x2x8xf32, #tpu.memory_space<vmem>>) attributes {dimension_semantics = [], scalar_prefetch = 0 : i64, scratch_operands = 0 : i64, tpu.core_type = #tpu.core_type<tc>} {
    %c0 = arith.constant 0 : index
    %c0_0 = arith.constant 0 : index
    %0 = vector.load %arg5[%c0, %c0_0] : memref<8x64xf32, #tpu.memory_space<vmem>>, vector<8x64xf32>
    %c0_1 = arith.constant 0 : index
    %c0_2 = arith.constant 0 : index
    %1 = vector.load %arg6[%c0_1, %c0_2] : memref<16x64xf32, #tpu.memory_space<vmem>>, vector<16x64xf32>
    %c0_3 = arith.constant 0 : index
    %c0_4 = arith.constant 0 : index
    %2 = vector.load %arg8[%c0_3, %c0_4] : memref<16x64xf32, #tpu.memory_space<vmem>>, vector<16x64xf32>
    %c0_5 = arith.constant 0 : index
    %c0_6 = arith.constant 0 : index
    %3 = vector.load %arg9[%c0_5, %c0_6] : memref<16x64xf32, #tpu.memory_space<vmem>>, vector<16x64xf32>
    %c0_7 = arith.constant 0 : index
    %c0_8 = arith.constant 0 : index
    %4 = vector.load %arg11[%c0_7, %c0_8] : memref<16x8xf32, #tpu.memory_space<vmem>>, vector<16x8xf32>
    %c0_9 = arith.constant 0 : index
    %c0_10 = arith.constant 0 : index
    %5 = vector.load %arg12[%c0_9, %c0_10] : memref<1x8xf32, #tpu.memory_space<vmem>>, vector<1x8xf32>
    %6 = vector.shape_cast %5 : vector<1x8xf32> to vector<1x8xf32>
    %7 = vector.broadcast %6 : vector<1x8xf32> to vector<2x8xf32>
    %c0_11 = arith.constant 0 : index
    %c0_12 = arith.constant 0 : index
    %8 = vector.load %arg10[%c0_11, %c0_12] : memref<1x64xf32, #tpu.memory_space<vmem>>, vector<1x64xf32>
    %9 = vector.shape_cast %8 : vector<1x64xf32> to vector<1x64xf32>
    %10 = vector.broadcast %9 : vector<1x64xf32> to vector<2x64xf32>
    %c0_13 = arith.constant 0 : index
    %c0_14 = arith.constant 0 : index
    %11 = vector.load %arg0[%c0_13, %c0_14] : memref<16x32xf32, #tpu.memory_space<vmem>>, vector<16x32xf32>
    %c0_15 = arith.constant 0 : index
    %c0_16 = arith.constant 0 : index
    %12 = vector.load %arg4[%c0_15, %c0_16] : memref<32x64xf32, #tpu.memory_space<vmem>>, vector<32x64xf32>
    %cst = arith.constant dense<0.000000e+00> : vector<16x64xf32>
    %13 = tpu.matmul %11, %12, %cst {dimension_numbers = #tpu.dot_dimension_numbers<[1], [0], [0], [1], [0, 0, 1, 1], [], []>} : vector<16x32xf32>, vector<32x64xf32>, vector<16x64xf32> -> vector<16x64xf32>
    %c0_17 = arith.constant 0 : index
    %c0_18 = arith.constant 0 : index
    %14 = vector.load %arg7[%c0_17, %c0_18] : memref<1x64xf32, #tpu.memory_space<vmem>>, vector<1x64xf32>
    %15 = vector.broadcast %14 : vector<1x64xf32> to vector<16x64xf32>
    %16 = arith.addf %13, %15 : vector<16x64xf32>
    %c0_19 = arith.constant 0 : index
    %c0_20 = arith.constant 0 : index
    %17 = vector.load %arg0[%c0_19, %c0_20] : memref<16x32xf32, #tpu.memory_space<vmem>>, vector<2x16xf32>
    %cst_21 = arith.constant dense<0.000000e+00> : vector<2x8xf32>
    %18 = tpu.matmul %17, %4, %cst_21 {dimension_numbers = #tpu.dot_dimension_numbers<[1], [0], [0], [1], [0, 0, 1, 1], [], []>} : vector<2x16xf32>, vector<16x8xf32>, vector<2x8xf32> -> vector<2x8xf32>
    %19 = arith.addf %18, %7 : vector<2x8xf32>
    %cst_22 = arith.constant dense<0xFF800000> : vector<2xf32>
    %20 = vector.multi_reduction <maximumf>, %19, %cst_22 [1] : vector<2x8xf32> to vector<2xf32>
    %21 = vector.shape_cast %20 : vector<2xf32> to vector<2x1xf32>
    %22 = vector.broadcast %21 : vector<2x1xf32> to vector<2x8xf32>
    %23 = arith.subf %19, %22 : vector<2x8xf32>
    %24 = math.exp %23 : vector<2x8xf32>
    %cst_23 = arith.constant dense<0.000000e+00> : vector<2xf32>
    %25 = vector.multi_reduction <add>, %24, %cst_23 [1] : vector<2x8xf32> to vector<2xf32>
    %26 = vector.shape_cast %25 : vector<2xf32> to vector<2x1xf32>
    %27 = vector.broadcast %26 : vector<2x1xf32> to vector<2x8xf32>
    %28 = arith.divf %24, %27 : vector<2x8xf32>
    %c0_24 = arith.constant 0 : index
    %c0_25 = arith.constant 0 : index
    %c0_26 = arith.constant 0 : index
    %29 = vector.load %arg1[%c0_24, %c0_25, %c0_26] : memref<2x2x16xf32, #tpu.memory_space<vmem>>, vector<1x2x16xf32>
    %30 = vector.shape_cast %29 : vector<1x2x16xf32> to vector<2x16xf32>
    %c0_27 = arith.constant 0 : index
    %c0_28 = arith.constant 0 : index
    %c0_29 = arith.constant 0 : index
    %31 = vector.load %arg2[%c0_27, %c0_28, %c0_29] : memref<2x2x16xf32, #tpu.memory_space<vmem>>, vector<1x2x16xf32>
    %32 = vector.shape_cast %31 : vector<1x2x16xf32> to vector<2x16xf32>
    %c1 = arith.constant 1 : index
    %c0_30 = arith.constant 0 : index
    %c0_31 = arith.constant 0 : index
    %33 = vector.load %arg1[%c1, %c0_30, %c0_31] : memref<2x2x16xf32, #tpu.memory_space<vmem>>, vector<1x2x16xf32>
    %34 = vector.shape_cast %33 : vector<1x2x16xf32> to vector<2x16xf32>
    %c1_32 = arith.constant 1 : index
    %c0_33 = arith.constant 0 : index
    %c0_34 = arith.constant 0 : index
    %35 = vector.load %arg2[%c1_32, %c0_33, %c0_34] : memref<2x2x16xf32, #tpu.memory_space<vmem>>, vector<1x2x16xf32>
    %36 = vector.shape_cast %35 : vector<1x2x16xf32> to vector<2x16xf32>
    %37 = vector.extract_strided_slice %16 {offsets = [0, 0], sizes = [2, 64], strides = [1, 1]} : vector<16x64xf32> to vector<2x64xf32>
    %cst_35 = arith.constant dense<0.000000e+00> : vector<2x64xf32>
    %38 = tpu.matmul %28, %0, %cst_35 {dimension_numbers = #tpu.dot_dimension_numbers<[1], [0], [0], [1], [0, 0, 1, 1], [], []>} : vector<2x8xf32>, vector<8x64xf32>, vector<2x64xf32> -> vector<2x64xf32>
    %39 = arith.addf %37, %38 : vector<2x64xf32>
    %cst_36 = arith.constant dense<0.000000e+00> : vector<2x64xf32>
    %40 = tpu.matmul %30, %1, %cst_36 {dimension_numbers = #tpu.dot_dimension_numbers<[1], [0], [0], [1], [0, 0, 1, 1], [], []>} : vector<2x16xf32>, vector<16x64xf32>, vector<2x64xf32> -> vector<2x64xf32>
    %41 = arith.addf %39, %40 : vector<2x64xf32>
    %42 = vector.extract_strided_slice %41 {offsets = [0, 0], sizes = [2, 48], strides = [1, 1]} : vector<2x64xf32> to vector<2x48xf32>
    %cst_37 = arith.constant 5.000000e-01 : f32
    %43 = vector.broadcast %cst_37 : f32 to vector<2x48xf32>
    %44 = arith.mulf %43, %42 : vector<2x48xf32>
    %45 = math.tanh %44 : vector<2x48xf32>
    %cst_38 = arith.constant 1.000000e+00 : f32
    %46 = vector.broadcast %cst_38 : f32 to vector<2x48xf32>
    %47 = arith.addf %45, %46 : vector<2x48xf32>
    %cst_39 = arith.constant 5.000000e-01 : f32
    %48 = vector.broadcast %cst_39 : f32 to vector<2x48xf32>
    %49 = arith.mulf %48, %47 : vector<2x48xf32>
    %50 = vector.extract_strided_slice %41 {offsets = [0, 48], sizes = [2, 16], strides = [1, 1]} : vector<2x64xf32> to vector<2x16xf32>
    %51 = math.tanh %50 : vector<2x16xf32>
    %52 = vector.extract_strided_slice %49 {offsets = [0, 0], sizes = [2, 16], strides = [1, 1]} : vector<2x48xf32> to vector<2x16xf32>
    %53 = vector.extract_strided_slice %49 {offsets = [0, 16], sizes = [2, 16], strides = [1, 1]} : vector<2x48xf32> to vector<2x16xf32>
    %54 = vector.extract_strided_slice %49 {offsets = [0, 32], sizes = [2, 16], strides = [1, 1]} : vector<2x48xf32> to vector<2x16xf32>
    %55 = arith.mulf %53, %32 : vector<2x16xf32>
    %56 = arith.mulf %52, %51 : vector<2x16xf32>
    %57 = arith.addf %55, %56 : vector<2x16xf32>
    %58 = math.tanh %57 : vector<2x16xf32>
    %59 = arith.mulf %54, %58 : vector<2x16xf32>
    %cst_40 = arith.constant dense<0.000000e+00> : vector<2x64xf32>
    %60 = tpu.matmul %59, %2, %cst_40 {dimension_numbers = #tpu.dot_dimension_numbers<[1], [0], [0], [1], [0, 0, 1, 1], [], []>} : vector<2x16xf32>, vector<16x64xf32>, vector<2x64xf32> -> vector<2x64xf32>
    %61 = arith.addf %10, %60 : vector<2x64xf32>
    %cst_41 = arith.constant dense<0.000000e+00> : vector<2x64xf32>
    %62 = tpu.matmul %34, %3, %cst_41 {dimension_numbers = #tpu.dot_dimension_numbers<[1], [0], [0], [1], [0, 0, 1, 1], [], []>} : vector<2x16xf32>, vector<16x64xf32>, vector<2x64xf32> -> vector<2x64xf32>
    %63 = arith.addf %61, %62 : vector<2x64xf32>
    %64 = vector.extract_strided_slice %63 {offsets = [0, 0], sizes = [2, 48], strides = [1, 1]} : vector<2x64xf32> to vector<2x48xf32>
    %cst_42 = arith.constant 5.000000e-01 : f32
    %65 = vector.broadcast %cst_42 : f32 to vector<2x48xf32>
    %66 = arith.mulf %65, %64 : vector<2x48xf32>
    %67 = math.tanh %66 : vector<2x48xf32>
    %cst_43 = arith.constant 1.000000e+00 : f32
    %68 = vector.broadcast %cst_43 : f32 to vector<2x48xf32>
    %69 = arith.addf %67, %68 : vector<2x48xf32>
    %cst_44 = arith.constant 5.000000e-01 : f32
    %70 = vector.broadcast %cst_44 : f32 to vector<2x48xf32>
    %71 = arith.mulf %70, %69 : vector<2x48xf32>
    %72 = vector.extract_strided_slice %63 {offsets = [0, 48], sizes = [2, 16], strides = [1, 1]} : vector<2x64xf32> to vector<2x16xf32>
    %73 = math.tanh %72 : vector<2x16xf32>
    %74 = vector.extract_strided_slice %71 {offsets = [0, 0], sizes = [2, 16], strides = [1, 1]} : vector<2x48xf32> to vector<2x16xf32>
    %75 = vector.extract_strided_slice %71 {offsets = [0, 16], sizes = [2, 16], strides = [1, 1]} : vector<2x48xf32> to vector<2x16xf32>
    %76 = vector.extract_strided_slice %71 {offsets = [0, 32], sizes = [2, 16], strides = [1, 1]} : vector<2x48xf32> to vector<2x16xf32>
    %77 = arith.mulf %75, %36 : vector<2x16xf32>
    %78 = arith.mulf %74, %73 : vector<2x16xf32>
    %79 = arith.addf %77, %78 : vector<2x16xf32>
    %80 = math.tanh %79 : vector<2x16xf32>
    %81 = arith.mulf %76, %80 : vector<2x16xf32>
    %cst_45 = arith.constant dense<0.000000e+00> : vector<2x8xf32>
    %82 = tpu.matmul %81, %4, %cst_45 {dimension_numbers = #tpu.dot_dimension_numbers<[1], [0], [0], [1], [0, 0, 1, 1], [], []>} : vector<2x16xf32>, vector<16x8xf32>, vector<2x8xf32> -> vector<2x8xf32>
    %83 = arith.addf %82, %7 : vector<2x8xf32>
    %c0_46 = arith.constant 0 : index
    %c0_47 = arith.constant 0 : index
    %c0_48 = arith.constant 0 : index
    %84 = vector.load %arg3[%c0_46, %c0_47, %c0_48] : memref<8x2x8xf32, #tpu.memory_space<vmem>>, vector<1x2x8xf32>
    %85 = vector.shape_cast %84 : vector<1x2x8xf32> to vector<2x8xf32>
    %86 = arith.addf %83, %85 : vector<2x8xf32>
    %cst_49 = arith.constant dense<0xFF800000> : vector<2xf32>
    %87 = vector.multi_reduction <maximumf>, %86, %cst_49 [1] : vector<2x8xf32> to vector<2xf32>
    %cst_50 = arith.constant 0xFF800000 : f32
    %88 = vector.broadcast %cst_50 : f32 to vector<2xf32>
    %89 = arith.maximumf %88, %87 : vector<2xf32>
    %90 = vector.shape_cast %89 : vector<2xf32> to vector<2x1xf32>
    %91 = vector.broadcast %90 : vector<2x1xf32> to vector<2x8xf32>
    %92 = arith.subf %86, %91 : vector<2x8xf32>
    %93 = math.exp %92 : vector<2x8xf32>
    %cst_51 = arith.constant dense<0.000000e+00> : vector<2xf32>
    %94 = vector.multi_reduction <add>, %93, %cst_51 [1] : vector<2x8xf32> to vector<2xf32>
    %95 = vector.shape_cast %94 : vector<2xf32> to vector<2x1xf32>
    %96 = vector.broadcast %95 : vector<2x1xf32> to vector<2x8xf32>
    %97 = arith.divf %93, %96 : vector<2x8xf32>
    %c0_52 = arith.constant 0 : index
    %c0_53 = arith.constant 0 : index
    %c0_54 = arith.constant 0 : index
    %98 = vector.load %arg13[%c0_52, %c0_53, %c0_54] : memref<8x2x8xf32, #tpu.memory_space<vmem>>, vector<1x2x8xf32>
    %99 = vector.shape_cast %98 : vector<1x2x8xf32> to vector<2x8xf32>
    %100 = vector.shape_cast %97 : vector<2x8xf32> to vector<1x2x8xf32>
    tpu.vector_store %arg13[%c0_52, %c0_53, %c0_54], %100 {strides = array<i32>} : memref<8x2x8xf32, #tpu.memory_space<vmem>>, vector<1x2x8xf32>,
    %cst_55 = arith.constant dense<0xFF800000> : vector<2xf32>
    %101 = vector.multi_reduction <maximumf>, %83, %cst_55 [1] : vector<2x8xf32> to vector<2xf32>
    %102 = vector.shape_cast %101 : vector<2xf32> to vector<2x1xf32>
    %103 = vector.broadcast %102 : vector<2x1xf32> to vector<2x8xf32>
    %104 = arith.subf %83, %103 : vector<2x8xf32>
    %105 = math.exp %104 : vector<2x8xf32>
    %cst_56 = arith.constant dense<0.000000e+00> : vector<2xf32>
    %106 = vector.multi_reduction <add>, %105, %cst_56 [1] : vector<2x8xf32> to vector<2xf32>
    %107 = vector.shape_cast %106 : vector<2xf32> to vector<2x1xf32>
    %108 = vector.broadcast %107 : vector<2x1xf32> to vector<2x8xf32>
    %109 = arith.divf %105, %108 : vector<2x8xf32>
    %110 = vector.extract_strided_slice %16 {offsets = [2, 0], sizes = [2, 64], strides = [1, 1]} : vector<16x64xf32> to vector<2x64xf32>
    %cst_57 = arith.constant dense<0.000000e+00> : vector<2x64xf32>
    %111 = tpu.matmul %109, %0, %cst_57 {dimension_numbers = #tpu.dot_dimension_numbers<[1], [0], [0], [1], [0, 0, 1, 1], [], []>} : vector<2x8xf32>, vector<8x64xf32>, vector<2x64xf32> -> vector<2x64xf32>
    %112 = arith.addf %110, %111 : vector<2x64xf32>
    %cst_58 = arith.constant dense<0.000000e+00> : vector<2x64xf32>
    %113 = tpu.matmul %59, %1, %cst_58 {dimension_numbers = #tpu.dot_dimension_numbers<[1], [0], [0], [1], [0, 0, 1, 1], [], []>} : vector<2x16xf32>, vector<16x64xf32>, vector<2x64xf32> -> vector<2x64xf32>
    %114 = arith.addf %112, %113 : vector<2x64xf32>
    %115 = vector.extract_strided_slice %114 {offsets = [0, 0], sizes = [2, 48], strides = [1, 1]} : vector<2x64xf32> to vector<2x48xf32>
    %cst_59 = arith.constant 5.000000e-01 : f32
    %116 = vector.broadcast %cst_59 : f32 to vector<2x48xf32>
    %117 = arith.mulf %116, %115 : vector<2x48xf32>
    %118 = math.tanh %117 : vector<2x48xf32>
    %cst_60 = arith.constant 1.000000e+00 : f32
    %119 = vector.broadcast %cst_60 : f32 to vector<2x48xf32>
    %120 = arith.addf %118, %119 : vector<2x48xf32>
    %cst_61 = arith.constant 5.000000e-01 : f32
    %121 = vector.broadcast %cst_61 : f32 to vector<2x48xf32>
    %122 = arith.mulf %121, %120 : vector<2x48xf32>
    %123 = vector.extract_strided_slice %114 {offsets = [0, 48], sizes = [2, 16], strides = [1, 1]} : vector<2x64xf32> to vector<2x16xf32>
    %124 = math.tanh %123 : vector<2x16xf32>
    %125 = vector.extract_strided_slice %122 {offsets = [0, 0], sizes = [2, 16], strides = [1, 1]} : vector<2x48xf32> to vector<2x16xf32>
    %126 = vector.extract_strided_slice %122 {offsets = [0, 16], sizes = [2, 16], strides = [1, 1]} : vector<2x48xf32> to vector<2x16xf32>
    %127 = vector.extract_strided_slice %122 {offsets = [0, 32], sizes = [2, 16], strides = [1, 1]} : vector<2x48xf32> to vector<2x16xf32>
    %128 = arith.mulf %126, %57 : vector<2x16xf32>
    %129 = arith.mulf %125, %124 : vector<2x16xf32>
    %130 = arith.addf %128, %129 : vector<2x16xf32>
    %131 = math.tanh %130 : vector<2x16xf32>
    %132 = arith.mulf %127, %131 : vector<2x16xf32>
    %cst_62 = arith.constant dense<0.000000e+00> : vector<2x64xf32>
    %133 = tpu.matmul %132, %2, %cst_62 {dimension_numbers = #tpu.dot_dimension_numbers<[1], [0], [0], [1], [0, 0, 1, 1], [], []>} : vector<2x16xf32>, vector<16x64xf32>, vector<2x64xf32> -> vector<2x64xf32>
    %134 = arith.addf %10, %133 : vector<2x64xf32>
    %cst_63 = arith.constant dense<0.000000e+00> : vector<2x64xf32>
    %135 = tpu.matmul %81, %3, %cst_63 {dimension_numbers = #tpu.dot_dimension_numbers<[1], [0], [0], [1], [0, 0, 1, 1], [], []>} : vector<2x16xf32>, vector<16x64xf32>, vector<2x64xf32> -> vector<2x64xf32>
    %136 = arith.addf %134, %135 : vector<2x64xf32>
    %137 = vector.extract_strided_slice %136 {offsets = [0, 0], sizes = [2, 48], strides = [1, 1]} : vector<2x64xf32> to vector<2x48xf32>
    %cst_64 = arith.constant 5.000000e-01 : f32
    %138 = vector.broadcast %cst_64 : f32 to vector<2x48xf32>
    %139 = arith.mulf %138, %137 : vector<2x48xf32>
    %140 = math.tanh %139 : vector<2x48xf32>
    %cst_65 = arith.constant 1.000000e+00 : f32
    %141 = vector.broadcast %cst_65 : f32 to vector<2x48xf32>
    %142 = arith.addf %140, %141 : vector<2x48xf32>
    %cst_66 = arith.constant 5.000000e-01 : f32
    %143 = vector.broadcast %cst_66 : f32 to vector<2x48xf32>
    %144 = arith.mulf %143, %142 : vector<2x48xf32>
    %145 = vector.extract_strided_slice %136 {offsets = [0, 48], sizes = [2, 16], strides = [1, 1]} : vector<2x64xf32> to vector<2x16xf32>
    %146 = math.tanh %145 : vector<2x16xf32>
    %147 = vector.extract_strided_slice %144 {offsets = [0, 0], sizes = [2, 16], strides = [1, 1]} : vector<2x48xf32> to vector<2x16xf32>
    %148 = vector.extract_strided_slice %144 {offsets = [0, 16], sizes = [2, 16], strides = [1, 1]} : vector<2x48xf32> to vector<2x16xf32>
    %149 = vector.extract_strided_slice %144 {offsets = [0, 32], sizes = [2, 16], strides = [1, 1]} : vector<2x48xf32> to vector<2x16xf32>
    %150 = arith.mulf %148, %79 : vector<2x16xf32>
    %151 = arith.mulf %147, %146 : vector<2x16xf32>
    %152 = arith.addf %150, %151 : vector<2x16xf32>
    %153 = math.tanh %152 : vector<2x16xf32>
    %154 = arith.mulf %149, %153 : vector<2x16xf32>
    %cst_67 = arith.constant dense<0.000000e+00> : vector<2x8xf32>
    %155 = tpu.matmul %154, %4, %cst_67 {dimension_numbers = #tpu.dot_dimension_numbers<[1], [0], [0], [1], [0, 0, 1, 1], [], []>} : vector<2x16xf32>, vector<16x8xf32>, vector<2x8xf32> -> vector<2x8xf32>
    %156 = arith.addf %155, %7 : vector<2x8xf32>
    %c1_68 = arith.constant 1 : index
    %c0_69 = arith.constant 0 : index
    %c0_70 = arith.constant 0 : index
    %157 = vector.load %arg3[%c1_68, %c0_69, %c0_70] : memref<8x2x8xf32, #tpu.memory_space<vmem>>, vector<1x2x8xf32>
    %158 = vector.shape_cast %157 : vector<1x2x8xf32> to vector<2x8xf32>
    %159 = arith.addf %156, %158 : vector<2x8xf32>
    %cst_71 = arith.constant dense<0xFF800000> : vector<2xf32>
    %160 = vector.multi_reduction <maximumf>, %159, %cst_71 [1] : vector<2x8xf32> to vector<2xf32>
    %cst_72 = arith.constant 0xFF800000 : f32
    %161 = vector.broadcast %cst_72 : f32 to vector<2xf32>
    %162 = arith.maximumf %161, %160 : vector<2xf32>
    %163 = vector.shape_cast %162 : vector<2xf32> to vector<2x1xf32>
    %164 = vector.broadcast %163 : vector<2x1xf32> to vector<2x8xf32>
    %165 = arith.subf %159, %164 : vector<2x8xf32>
    %166 = math.exp %165 : vector<2x8xf32>
    %cst_73 = arith.constant dense<0.000000e+00> : vector<2xf32>
    %167 = vector.multi_reduction <add>, %166, %cst_73 [1] : vector<2x8xf32> to vector<2xf32>
    %168 = vector.shape_cast %167 : vector<2xf32> to vector<2x1xf32>
    %169 = vector.broadcast %168 : vector<2x1xf32> to vector<2x8xf32>
    %170 = arith.divf %166, %169 : vector<2x8xf32>
    %c1_74 = arith.constant 1 : index
    %c0_75 = arith.constant 0 : index
    %c0_76 = arith.constant 0 : index
    %171 = vector.load %arg13[%c1_74, %c0_75, %c0_76] : memref<8x2x8xf32, #tpu.memory_space<vmem>>, vector<1x2x8xf32>
    %172 = vector.shape_cast %171 : vector<1x2x8xf32> to vector<2x8xf32>
    %173 = vector.shape_cast %170 : vector<2x8xf32> to vector<1x2x8xf32>
    tpu.vector_store %arg13[%c1_74, %c0_75, %c0_76], %173 {strides = array<i32>} : memref<8x2x8xf32, #tpu.memory_space<vmem>>, vector<1x2x8xf32>,
    %cst_77 = arith.constant dense<0xFF800000> : vector<2xf32>
    %174 = vector.multi_reduction <maximumf>, %156, %cst_77 [1] : vector<2x8xf32> to vector<2xf32>
    %175 = vector.shape_cast %174 : vector<2xf32> to vector<2x1xf32>
    %176 = vector.broadcast %175 : vector<2x1xf32> to vector<2x8xf32>
    %177 = arith.subf %156, %176 : vector<2x8xf32>
    %178 = math.exp %177 : vector<2x8xf32>
    %cst_78 = arith.constant dense<0.000000e+00> : vector<2xf32>
    %179 = vector.multi_reduction <add>, %178, %cst_78 [1] : vector<2x8xf32> to vector<2xf32>
    %180 = vector.shape_cast %179 : vector<2xf32> to vector<2x1xf32>
    %181 = vector.broadcast %180 : vector<2x1xf32> to vector<2x8xf32>
    %182 = arith.divf %178, %181 : vector<2x8xf32>
    %183 = vector.extract_strided_slice %16 {offsets = [4, 0], sizes = [2, 64], strides = [1, 1]} : vector<16x64xf32> to vector<2x64xf32>
    %cst_79 = arith.constant dense<0.000000e+00> : vector<2x64xf32>
    %184 = tpu.matmul %182, %0, %cst_79 {dimension_numbers = #tpu.dot_dimension_numbers<[1], [0], [0], [1], [0, 0, 1, 1], [], []>} : vector<2x8xf32>, vector<8x64xf32>, vector<2x64xf32> -> vector<2x64xf32>
    %185 = arith.addf %183, %184 : vector<2x64xf32>
    %cst_80 = arith.constant dense<0.000000e+00> : vector<2x64xf32>
    %186 = tpu.matmul %132, %1, %cst_80 {dimension_numbers = #tpu.dot_dimension_numbers<[1], [0], [0], [1], [0, 0, 1, 1], [], []>} : vector<2x16xf32>, vector<16x64xf32>, vector<2x64xf32> -> vector<2x64xf32>
    %187 = arith.addf %185, %186 : vector<2x64xf32>
    %188 = vector.extract_strided_slice %187 {offsets = [0, 0], sizes = [2, 48], strides = [1, 1]} : vector<2x64xf32> to vector<2x48xf32>
    %cst_81 = arith.constant 5.000000e-01 : f32
    %189 = vector.broadcast %cst_81 : f32 to vector<2x48xf32>
    %190 = arith.mulf %189, %188 : vector<2x48xf32>
    %191 = math.tanh %190 : vector<2x48xf32>
    %cst_82 = arith.constant 1.000000e+00 : f32
    %192 = vector.broadcast %cst_82 : f32 to vector<2x48xf32>
    %193 = arith.addf %191, %192 : vector<2x48xf32>
    %cst_83 = arith.constant 5.000000e-01 : f32
    %194 = vector.broadcast %cst_83 : f32 to vector<2x48xf32>
    %195 = arith.mulf %194, %193 : vector<2x48xf32>
    %196 = vector.extract_strided_slice %187 {offsets = [0, 48], sizes = [2, 16], strides = [1, 1]} : vector<2x64xf32> to vector<2x16xf32>
    %197 = math.tanh %196 : vector<2x16xf32>
    %198 = vector.extract_strided_slice %195 {offsets = [0, 0], sizes = [2, 16], strides = [1, 1]} : vector<2x48xf32> to vector<2x16xf32>
    %199 = vector.extract_strided_slice %195 {offsets = [0, 16], sizes = [2, 16], strides = [1, 1]} : vector<2x48xf32> to vector<2x16xf32>
    %200 = vector.extract_strided_slice %195 {offsets = [0, 32], sizes = [2, 16], strides = [1, 1]} : vector<2x48xf32> to vector<2x16xf32>
    %201 = arith.mulf %199, %130 : vector<2x16xf32>
    %202 = arith.mulf %198, %197 : vector<2x16xf32>
    %203 = arith.addf %201, %202 : vector<2x16xf32>
    %204 = math.tanh %203 : vector<2x16xf32>
    %205 = arith.mulf %200, %204 : vector<2x16xf32>
    %cst_84 = arith.constant dense<0.000000e+00> : vector<2x64xf32>
    %206 = tpu.matmul %205, %2, %cst_84 {dimension_numbers = #tpu.dot_dimension_numbers<[1], [0], [0], [1], [0, 0, 1, 1], [], []>} : vector<2x16xf32>, vector<16x64xf32>, vector<2x64xf32> -> vector<2x64xf32>
    %207 = arith.addf %10, %206 : vector<2x64xf32>
    %cst_85 = arith.constant dense<0.000000e+00> : vector<2x64xf32>
    %208 = tpu.matmul %154, %3, %cst_85 {dimension_numbers = #tpu.dot_dimension_numbers<[1], [0], [0], [1], [0, 0, 1, 1], [], []>} : vector<2x16xf32>, vector<16x64xf32>, vector<2x64xf32> -> vector<2x64xf32>
    %209 = arith.addf %207, %208 : vector<2x64xf32>
    %210 = vector.extract_strided_slice %209 {offsets = [0, 0], sizes = [2, 48], strides = [1, 1]} : vector<2x64xf32> to vector<2x48xf32>
    %cst_86 = arith.constant 5.000000e-01 : f32
    %211 = vector.broadcast %cst_86 : f32 to vector<2x48xf32>
    %212 = arith.mulf %211, %210 : vector<2x48xf32>
    %213 = math.tanh %212 : vector<2x48xf32>
    %cst_87 = arith.constant 1.000000e+00 : f32
    %214 = vector.broadcast %cst_87 : f32 to vector<2x48xf32>
    %215 = arith.addf %213, %214 : vector<2x48xf32>
    %cst_88 = arith.constant 5.000000e-01 : f32
    %216 = vector.broadcast %cst_88 : f32 to vector<2x48xf32>
    %217 = arith.mulf %216, %215 : vector<2x48xf32>
    %218 = vector.extract_strided_slice %209 {offsets = [0, 48], sizes = [2, 16], strides = [1, 1]} : vector<2x64xf32> to vector<2x16xf32>
    %219 = math.tanh %218 : vector<2x16xf32>
    %220 = vector.extract_strided_slice %217 {offsets = [0, 0], sizes = [2, 16], strides = [1, 1]} : vector<2x48xf32> to vector<2x16xf32>
    %221 = vector.extract_strided_slice %217 {offsets = [0, 16], sizes = [2, 16], strides = [1, 1]} : vector<2x48xf32> to vector<2x16xf32>
    %222 = vector.extract_strided_slice %217 {offsets = [0, 32], sizes = [2, 16], strides = [1, 1]} : vector<2x48xf32> to vector<2x16xf32>
    %223 = arith.mulf %221, %152 : vector<2x16xf32>
    %224 = arith.mulf %220, %219 : vector<2x16xf32>
    %225 = arith.addf %223, %224 : vector<2x16xf32>
    %226 = math.tanh %225 : vector<2x16xf32>
    %227 = arith.mulf %222, %226 : vector<2x16xf32>
    %cst_89 = arith.constant dense<0.000000e+00> : vector<2x8xf32>
    %228 = tpu.matmul %227, %4, %cst_89 {dimension_numbers = #tpu.dot_dimension_numbers<[1], [0], [0], [1], [0, 0, 1, 1], [], []>} : vector<2x16xf32>, vector<16x8xf32>, vector<2x8xf32> -> vector<2x8xf32>
    %229 = arith.addf %228, %7 : vector<2x8xf32>
    %c2 = arith.constant 2 : index
    %c0_90 = arith.constant 0 : index
    %c0_91 = arith.constant 0 : index
    %230 = vector.load %arg3[%c2, %c0_90, %c0_91] : memref<8x2x8xf32, #tpu.memory_space<vmem>>, vector<1x2x8xf32>
    %231 = vector.shape_cast %230 : vector<1x2x8xf32> to vector<2x8xf32>
    %232 = arith.addf %229, %231 : vector<2x8xf32>
    %cst_92 = arith.constant dense<0xFF800000> : vector<2xf32>
    %233 = vector.multi_reduction <maximumf>, %232, %cst_92 [1] : vector<2x8xf32> to vector<2xf32>
    %cst_93 = arith.constant 0xFF800000 : f32
    %234 = vector.broadcast %cst_93 : f32 to vector<2xf32>
    %235 = arith.maximumf %234, %233 : vector<2xf32>
    %236 = vector.shape_cast %235 : vector<2xf32> to vector<2x1xf32>
    %237 = vector.broadcast %236 : vector<2x1xf32> to vector<2x8xf32>
    %238 = arith.subf %232, %237 : vector<2x8xf32>
    %239 = math.exp %238 : vector<2x8xf32>
    %cst_94 = arith.constant dense<0.000000e+00> : vector<2xf32>
    %240 = vector.multi_reduction <add>, %239, %cst_94 [1] : vector<2x8xf32> to vector<2xf32>
    %241 = vector.shape_cast %240 : vector<2xf32> to vector<2x1xf32>
    %242 = vector.broadcast %241 : vector<2x1xf32> to vector<2x8xf32>
    %243 = arith.divf %239, %242 : vector<2x8xf32>
    %c2_95 = arith.constant 2 : index
    %c0_96 = arith.constant 0 : index
    %c0_97 = arith.constant 0 : index
    %244 = vector.load %arg13[%c2_95, %c0_96, %c0_97] : memref<8x2x8xf32, #tpu.memory_space<vmem>>, vector<1x2x8xf32>
    %245 = vector.shape_cast %244 : vector<1x2x8xf32> to vector<2x8xf32>
    %246 = vector.shape_cast %243 : vector<2x8xf32> to vector<1x2x8xf32>
    tpu.vector_store %arg13[%c2_95, %c0_96, %c0_97], %246 {strides = array<i32>} : memref<8x2x8xf32, #tpu.memory_space<vmem>>, vector<1x2x8xf32>,
    %cst_98 = arith.constant dense<0xFF800000> : vector<2xf32>
    %247 = vector.multi_reduction <maximumf>, %229, %cst_98 [1] : vector<2x8xf32> to vector<2xf32>
    %248 = vector.shape_cast %247 : vector<2xf32> to vector<2x1xf32>
    %249 = vector.broadcast %248 : vector<2x1xf32> to vector<2x8xf32>
    %250 = arith.subf %229, %249 : vector<2x8xf32>
    %251 = math.exp %250 : vector<2x8xf32>
    %cst_99 = arith.constant dense<0.000000e+00> : vector<2xf32>
    %252 = vector.multi_reduction <add>, %251, %cst_99 [1] : vector<2x8xf32> to vector<2xf32>
    %253 = vector.shape_cast %252 : vector<2xf32> to vector<2x1xf32>
    %254 = vector.broadcast %253 : vector<2x1xf32> to vector<2x8xf32>
    %255 = arith.divf %251, %254 : vector<2x8xf32>
    %256 = vector.extract_strided_slice %16 {offsets = [6, 0], sizes = [2, 64], strides = [1, 1]} : vector<16x64xf32> to vector<2x64xf32>
    %cst_100 = arith.constant dense<0.000000e+00> : vector<2x64xf32>
    %257 = tpu.matmul %255, %0, %cst_100 {dimension_numbers = #tpu.dot_dimension_numbers<[1], [0], [0], [1], [0, 0, 1, 1], [], []>} : vector<2x8xf32>, vector<8x64xf32>, vector<2x64xf32> -> vector<2x64xf32>
    %258 = arith.addf %256, %257 : vector<2x64xf32>
    %cst_101 = arith.constant dense<0.000000e+00> : vector<2x64xf32>
    %259 = tpu.matmul %205, %1, %cst_101 {dimension_numbers = #tpu.dot_dimension_numbers<[1], [0], [0], [1], [0, 0, 1, 1], [], []>} : vector<2x16xf32>, vector<16x64xf32>, vector<2x64xf32> -> vector<2x64xf32>
    %260 = arith.addf %258, %259 : vector<2x64xf32>
    %261 = vector.extract_strided_slice %260 {offsets = [0, 0], sizes = [2, 48], strides = [1, 1]} : vector<2x64xf32> to vector<2x48xf32>
    %cst_102 = arith.constant 5.000000e-01 : f32
    %262 = vector.broadcast %cst_102 : f32 to vector<2x48xf32>
    %263 = arith.mulf %262, %261 : vector<2x48xf32>
    %264 = math.tanh %263 : vector<2x48xf32>
    %cst_103 = arith.constant 1.000000e+00 : f32
    %265 = vector.broadcast %cst_103 : f32 to vector<2x48xf32>
    %266 = arith.addf %264, %265 : vector<2x48xf32>
    %cst_104 = arith.constant 5.000000e-01 : f32
    %267 = vector.broadcast %cst_104 : f32 to vector<2x48xf32>
    %268 = arith.mulf %267, %266 : vector<2x48xf32>
    %269 = vector.extract_strided_slice %260 {offsets = [0, 48], sizes = [2, 16], strides = [1, 1]} : vector<2x64xf32> to vector<2x16xf32>
    %270 = math.tanh %269 : vector<2x16xf32>
    %271 = vector.extract_strided_slice %268 {offsets = [0, 0], sizes = [2, 16], strides = [1, 1]} : vector<2x48xf32> to vector<2x16xf32>
    %272 = vector.extract_strided_slice %268 {offsets = [0, 16], sizes = [2, 16], strides = [1, 1]} : vector<2x48xf32> to vector<2x16xf32>
    %273 = vector.extract_strided_slice %268 {offsets = [0, 32], sizes = [2, 16], strides = [1, 1]} : vector<2x48xf32> to vector<2x16xf32>
    %274 = arith.mulf %272, %203 : vector<2x16xf32>
    %275 = arith.mulf %271, %270 : vector<2x16xf32>
    %276 = arith.addf %274, %275 : vector<2x16xf32>
    %277 = math.tanh %276 : vector<2x16xf32>
    %278 = arith.mulf %273, %277 : vector<2x16xf32>
    %cst_105 = arith.constant dense<0.000000e+00> : vector<2x64xf32>
    %279 = tpu.matmul %278, %2, %cst_105 {dimension_numbers = #tpu.dot_dimension_numbers<[1], [0], [0], [1], [0, 0, 1, 1], [], []>} : vector<2x16xf32>, vector<16x64xf32>, vector<2x64xf32> -> vector<2x64xf32>
    %280 = arith.addf %10, %279 : vector<2x64xf32>
    %cst_106 = arith.constant dense<0.000000e+00> : vector<2x64xf32>
    %281 = tpu.matmul %227, %3, %cst_106 {dimension_numbers = #tpu.dot_dimension_numbers<[1], [0], [0], [1], [0, 0, 1, 1], [], []>} : vector<2x16xf32>, vector<16x64xf32>, vector<2x64xf32> -> vector<2x64xf32>
    %282 = arith.addf %280, %281 : vector<2x64xf32>
    %283 = vector.extract_strided_slice %282 {offsets = [0, 0], sizes = [2, 48], strides = [1, 1]} : vector<2x64xf32> to vector<2x48xf32>
    %cst_107 = arith.constant 5.000000e-01 : f32
    %284 = vector.broadcast %cst_107 : f32 to vector<2x48xf32>
    %285 = arith.mulf %284, %283 : vector<2x48xf32>
    %286 = math.tanh %285 : vector<2x48xf32>
    %cst_108 = arith.constant 1.000000e+00 : f32
    %287 = vector.broadcast %cst_108 : f32 to vector<2x48xf32>
    %288 = arith.addf %286, %287 : vector<2x48xf32>
    %cst_109 = arith.constant 5.000000e-01 : f32
    %289 = vector.broadcast %cst_109 : f32 to vector<2x48xf32>
    %290 = arith.mulf %289, %288 : vector<2x48xf32>
    %291 = vector.extract_strided_slice %282 {offsets = [0, 48], sizes = [2, 16], strides = [1, 1]} : vector<2x64xf32> to vector<2x16xf32>
    %292 = math.tanh %291 : vector<2x16xf32>
    %293 = vector.extract_strided_slice %290 {offsets = [0, 0], sizes = [2, 16], strides = [1, 1]} : vector<2x48xf32> to vector<2x16xf32>
    %294 = vector.extract_strided_slice %290 {offsets = [0, 16], sizes = [2, 16], strides = [1, 1]} : vector<2x48xf32> to vector<2x16xf32>
    %295 = vector.extract_strided_slice %290 {offsets = [0, 32], sizes = [2, 16], strides = [1, 1]} : vector<2x48xf32> to vector<2x16xf32>
    %296 = arith.mulf %294, %225 : vector<2x16xf32>
    %297 = arith.mulf %293, %292 : vector<2x16xf32>
    %298 = arith.addf %296, %297 : vector<2x16xf32>
    %299 = math.tanh %298 : vector<2x16xf32>
    %300 = arith.mulf %295, %299 : vector<2x16xf32>
    %cst_110 = arith.constant dense<0.000000e+00> : vector<2x8xf32>
    %301 = tpu.matmul %300, %4, %cst_110 {dimension_numbers = #tpu.dot_dimension_numbers<[1], [0], [0], [1], [0, 0, 1, 1], [], []>} : vector<2x16xf32>, vector<16x8xf32>, vector<2x8xf32> -> vector<2x8xf32>
    %302 = arith.addf %301, %7 : vector<2x8xf32>
    %c3 = arith.constant 3 : index
    %c0_111 = arith.constant 0 : index
    %c0_112 = arith.constant 0 : index
    %303 = vector.load %arg3[%c3, %c0_111, %c0_112] : memref<8x2x8xf32, #tpu.memory_space<vmem>>, vector<1x2x8xf32>
    %304 = vector.shape_cast %303 : vector<1x2x8xf32> to vector<2x8xf32>
    %305 = arith.addf %302, %304 : vector<2x8xf32>
    %cst_113 = arith.constant dense<0xFF800000> : vector<2xf32>
    %306 = vector.multi_reduction <maximumf>, %305, %cst_113 [1] : vector<2x8xf32> to vector<2xf32>
    %cst_114 = arith.constant 0xFF800000 : f32
    %307 = vector.broadcast %cst_114 : f32 to vector<2xf32>
    %308 = arith.maximumf %307, %306 : vector<2xf32>
    %309 = vector.shape_cast %308 : vector<2xf32> to vector<2x1xf32>
    %310 = vector.broadcast %309 : vector<2x1xf32> to vector<2x8xf32>
    %311 = arith.subf %305, %310 : vector<2x8xf32>
    %312 = math.exp %311 : vector<2x8xf32>
    %cst_115 = arith.constant dense<0.000000e+00> : vector<2xf32>
    %313 = vector.multi_reduction <add>, %312, %cst_115 [1] : vector<2x8xf32> to vector<2xf32>
    %314 = vector.shape_cast %313 : vector<2xf32> to vector<2x1xf32>
    %315 = vector.broadcast %314 : vector<2x1xf32> to vector<2x8xf32>
    %316 = arith.divf %312, %315 : vector<2x8xf32>
    %c3_116 = arith.constant 3 : index
    %c0_117 = arith.constant 0 : index
    %c0_118 = arith.constant 0 : index
    %317 = vector.load %arg13[%c3_116, %c0_117, %c0_118] : memref<8x2x8xf32, #tpu.memory_space<vmem>>, vector<1x2x8xf32>
    %318 = vector.shape_cast %317 : vector<1x2x8xf32> to vector<2x8xf32>
    %319 = vector.shape_cast %316 : vector<2x8xf32> to vector<1x2x8xf32>
    tpu.vector_store %arg13[%c3_116, %c0_117, %c0_118], %319 {strides = array<i32>} : memref<8x2x8xf32, #tpu.memory_space<vmem>>, vector<1x2x8xf32>,
    %cst_119 = arith.constant dense<0xFF800000> : vector<2xf32>
    %320 = vector.multi_reduction <maximumf>, %302, %cst_119 [1] : vector<2x8xf32> to vector<2xf32>
    %321 = vector.shape_cast %320 : vector<2xf32> to vector<2x1xf32>
    %322 = vector.broadcast %321 : vector<2x1xf32> to vector<2x8xf32>
    %323 = arith.subf %302, %322 : vector<2x8xf32>
    %324 = math.exp %323 : vector<2x8xf32>
    %cst_120 = arith.constant dense<0.000000e+00> : vector<2xf32>
    %325 = vector.multi_reduction <add>, %324, %cst_120 [1] : vector<2x8xf32> to vector<2xf32>
    %326 = vector.shape_cast %325 : vector<2xf32> to vector<2x1xf32>
    %327 = vector.broadcast %326 : vector<2x1xf32> to vector<2x8xf32>
    %328 = arith.divf %324, %327 : vector<2x8xf32>
    %329 = vector.extract_strided_slice %16 {offsets = [8, 0], sizes = [2, 64], strides = [1, 1]} : vector<16x64xf32> to vector<2x64xf32>
    %cst_121 = arith.constant dense<0.000000e+00> : vector<2x64xf32>
    %330 = tpu.matmul %328, %0, %cst_121 {dimension_numbers = #tpu.dot_dimension_numbers<[1], [0], [0], [1], [0, 0, 1, 1], [], []>} : vector<2x8xf32>, vector<8x64xf32>, vector<2x64xf32> -> vector<2x64xf32>
    %331 = arith.addf %329, %330 : vector<2x64xf32>
    %cst_122 = arith.constant dense<0.000000e+00> : vector<2x64xf32>
    %332 = tpu.matmul %278, %1, %cst_122 {dimension_numbers = #tpu.dot_dimension_numbers<[1], [0], [0], [1], [0, 0, 1, 1], [], []>} : vector<2x16xf32>, vector<16x64xf32>, vector<2x64xf32> -> vector<2x64xf32>
    %333 = arith.addf %331, %332 : vector<2x64xf32>
    %334 = vector.extract_strided_slice %333 {offsets = [0, 0], sizes = [2, 48], strides = [1, 1]} : vector<2x64xf32> to vector<2x48xf32>
    %cst_123 = arith.constant 5.000000e-01 : f32
    %335 = vector.broadcast %cst_123 : f32 to vector<2x48xf32>
    %336 = arith.mulf %335, %334 : vector<2x48xf32>
    %337 = math.tanh %336 : vector<2x48xf32>
    %cst_124 = arith.constant 1.000000e+00 : f32
    %338 = vector.broadcast %cst_124 : f32 to vector<2x48xf32>
    %339 = arith.addf %337, %338 : vector<2x48xf32>
    %cst_125 = arith.constant 5.000000e-01 : f32
    %340 = vector.broadcast %cst_125 : f32 to vector<2x48xf32>
    %341 = arith.mulf %340, %339 : vector<2x48xf32>
    %342 = vector.extract_strided_slice %333 {offsets = [0, 48], sizes = [2, 16], strides = [1, 1]} : vector<2x64xf32> to vector<2x16xf32>
    %343 = math.tanh %342 : vector<2x16xf32>
    %344 = vector.extract_strided_slice %341 {offsets = [0, 0], sizes = [2, 16], strides = [1, 1]} : vector<2x48xf32> to vector<2x16xf32>
    %345 = vector.extract_strided_slice %341 {offsets = [0, 16], sizes = [2, 16], strides = [1, 1]} : vector<2x48xf32> to vector<2x16xf32>
    %346 = vector.extract_strided_slice %341 {offsets = [0, 32], sizes = [2, 16], strides = [1, 1]} : vector<2x48xf32> to vector<2x16xf32>
    %347 = arith.mulf %345, %276 : vector<2x16xf32>
    %348 = arith.mulf %344, %343 : vector<2x16xf32>
    %349 = arith.addf %347, %348 : vector<2x16xf32>
    %350 = math.tanh %349 : vector<2x16xf32>
    %351 = arith.mulf %346, %350 : vector<2x16xf32>
    %cst_126 = arith.constant dense<0.000000e+00> : vector<2x64xf32>
    %352 = tpu.matmul %351, %2, %cst_126 {dimension_numbers = #tpu.dot_dimension_numbers<[1], [0], [0], [1], [0, 0, 1, 1], [], []>} : vector<2x16xf32>, vector<16x64xf32>, vector<2x64xf32> -> vector<2x64xf32>
    %353 = arith.addf %10, %352 : vector<2x64xf32>
    %cst_127 = arith.constant dense<0.000000e+00> : vector<2x64xf32>
    %354 = tpu.matmul %300, %3, %cst_127 {dimension_numbers = #tpu.dot_dimension_numbers<[1], [0], [0], [1], [0, 0, 1, 1], [], []>} : vector<2x16xf32>, vector<16x64xf32>, vector<2x64xf32> -> vector<2x64xf32>
    %355 = arith.addf %353, %354 : vector<2x64xf32>
    %356 = vector.extract_strided_slice %355 {offsets = [0, 0], sizes = [2, 48], strides = [1, 1]} : vector<2x64xf32> to vector<2x48xf32>
    %cst_128 = arith.constant 5.000000e-01 : f32
    %357 = vector.broadcast %cst_128 : f32 to vector<2x48xf32>
    %358 = arith.mulf %357, %356 : vector<2x48xf32>
    %359 = math.tanh %358 : vector<2x48xf32>
    %cst_129 = arith.constant 1.000000e+00 : f32
    %360 = vector.broadcast %cst_129 : f32 to vector<2x48xf32>
    %361 = arith.addf %359, %360 : vector<2x48xf32>
    %cst_130 = arith.constant 5.000000e-01 : f32
    %362 = vector.broadcast %cst_130 : f32 to vector<2x48xf32>
    %363 = arith.mulf %362, %361 : vector<2x48xf32>
    %364 = vector.extract_strided_slice %355 {offsets = [0, 48], sizes = [2, 16], strides = [1, 1]} : vector<2x64xf32> to vector<2x16xf32>
    %365 = math.tanh %364 : vector<2x16xf32>
    %366 = vector.extract_strided_slice %363 {offsets = [0, 0], sizes = [2, 16], strides = [1, 1]} : vector<2x48xf32> to vector<2x16xf32>
    %367 = vector.extract_strided_slice %363 {offsets = [0, 16], sizes = [2, 16], strides = [1, 1]} : vector<2x48xf32> to vector<2x16xf32>
    %368 = vector.extract_strided_slice %363 {offsets = [0, 32], sizes = [2, 16], strides = [1, 1]} : vector<2x48xf32> to vector<2x16xf32>
    %369 = arith.mulf %367, %298 : vector<2x16xf32>
    %370 = arith.mulf %366, %365 : vector<2x16xf32>
    %371 = arith.addf %369, %370 : vector<2x16xf32>
    %372 = math.tanh %371 : vector<2x16xf32>
    %373 = arith.mulf %368, %372 : vector<2x16xf32>
    %cst_131 = arith.constant dense<0.000000e+00> : vector<2x8xf32>
    %374 = tpu.matmul %373, %4, %cst_131 {dimension_numbers = #tpu.dot_dimension_numbers<[1], [0], [0], [1], [0, 0, 1, 1], [], []>} : vector<2x16xf32>, vector<16x8xf32>, vector<2x8xf32> -> vector<2x8xf32>
    %375 = arith.addf %374, %7 : vector<2x8xf32>
    %c4 = arith.constant 4 : index
    %c0_132 = arith.constant 0 : index
    %c0_133 = arith.constant 0 : index
    %376 = vector.load %arg3[%c4, %c0_132, %c0_133] : memref<8x2x8xf32, #tpu.memory_space<vmem>>, vector<1x2x8xf32>
    %377 = vector.shape_cast %376 : vector<1x2x8xf32> to vector<2x8xf32>
    %378 = arith.addf %375, %377 : vector<2x8xf32>
    %cst_134 = arith.constant dense<0xFF800000> : vector<2xf32>
    %379 = vector.multi_reduction <maximumf>, %378, %cst_134 [1] : vector<2x8xf32> to vector<2xf32>
    %cst_135 = arith.constant 0xFF800000 : f32
    %380 = vector.broadcast %cst_135 : f32 to vector<2xf32>
    %381 = arith.maximumf %380, %379 : vector<2xf32>
    %382 = vector.shape_cast %381 : vector<2xf32> to vector<2x1xf32>
    %383 = vector.broadcast %382 : vector<2x1xf32> to vector<2x8xf32>
    %384 = arith.subf %378, %383 : vector<2x8xf32>
    %385 = math.exp %384 : vector<2x8xf32>
    %cst_136 = arith.constant dense<0.000000e+00> : vector<2xf32>
    %386 = vector.multi_reduction <add>, %385, %cst_136 [1] : vector<2x8xf32> to vector<2xf32>
    %387 = vector.shape_cast %386 : vector<2xf32> to vector<2x1xf32>
    %388 = vector.broadcast %387 : vector<2x1xf32> to vector<2x8xf32>
    %389 = arith.divf %385, %388 : vector<2x8xf32>
    %c4_137 = arith.constant 4 : index
    %c0_138 = arith.constant 0 : index
    %c0_139 = arith.constant 0 : index
    %390 = vector.load %arg13[%c4_137, %c0_138, %c0_139] : memref<8x2x8xf32, #tpu.memory_space<vmem>>, vector<1x2x8xf32>
    %391 = vector.shape_cast %390 : vector<1x2x8xf32> to vector<2x8xf32>
    %392 = vector.shape_cast %389 : vector<2x8xf32> to vector<1x2x8xf32>
    tpu.vector_store %arg13[%c4_137, %c0_138, %c0_139], %392 {strides = array<i32>} : memref<8x2x8xf32, #tpu.memory_space<vmem>>, vector<1x2x8xf32>,
    %cst_140 = arith.constant dense<0xFF800000> : vector<2xf32>
    %393 = vector.multi_reduction <maximumf>, %375, %cst_140 [1] : vector<2x8xf32> to vector<2xf32>
    %394 = vector.shape_cast %393 : vector<2xf32> to vector<2x1xf32>
    %395 = vector.broadcast %394 : vector<2x1xf32> to vector<2x8xf32>
    %396 = arith.subf %375, %395 : vector<2x8xf32>
    %397 = math.exp %396 : vector<2x8xf32>
    %cst_141 = arith.constant dense<0.000000e+00> : vector<2xf32>
    %398 = vector.multi_reduction <add>, %397, %cst_141 [1] : vector<2x8xf32> to vector<2xf32>
    %399 = vector.shape_cast %398 : vector<2xf32> to vector<2x1xf32>
    %400 = vector.broadcast %399 : vector<2x1xf32> to vector<2x8xf32>
    %401 = arith.divf %397, %400 : vector<2x8xf32>
    %402 = vector.extract_strided_slice %16 {offsets = [10, 0], sizes = [2, 64], strides = [1, 1]} : vector<16x64xf32> to vector<2x64xf32>
    %cst_142 = arith.constant dense<0.000000e+00> : vector<2x64xf32>
    %403 = tpu.matmul %401, %0, %cst_142 {dimension_numbers = #tpu.dot_dimension_numbers<[1], [0], [0], [1], [0, 0, 1, 1], [], []>} : vector<2x8xf32>, vector<8x64xf32>, vector<2x64xf32> -> vector<2x64xf32>
    %404 = arith.addf %402, %403 : vector<2x64xf32>
    %cst_143 = arith.constant dense<0.000000e+00> : vector<2x64xf32>
    %405 = tpu.matmul %351, %1, %cst_143 {dimension_numbers = #tpu.dot_dimension_numbers<[1], [0], [0], [1], [0, 0, 1, 1], [], []>} : vector<2x16xf32>, vector<16x64xf32>, vector<2x64xf32> -> vector<2x64xf32>
    %406 = arith.addf %404, %405 : vector<2x64xf32>
    %407 = vector.extract_strided_slice %406 {offsets = [0, 0], sizes = [2, 48], strides = [1, 1]} : vector<2x64xf32> to vector<2x48xf32>
    %cst_144 = arith.constant 5.000000e-01 : f32
    %408 = vector.broadcast %cst_144 : f32 to vector<2x48xf32>
    %409 = arith.mulf %408, %407 : vector<2x48xf32>
    %410 = math.tanh %409 : vector<2x48xf32>
    %cst_145 = arith.constant 1.000000e+00 : f32
    %411 = vector.broadcast %cst_145 : f32 to vector<2x48xf32>
    %412 = arith.addf %410, %411 : vector<2x48xf32>
    %cst_146 = arith.constant 5.000000e-01 : f32
    %413 = vector.broadcast %cst_146 : f32 to vector<2x48xf32>
    %414 = arith.mulf %413, %412 : vector<2x48xf32>
    %415 = vector.extract_strided_slice %406 {offsets = [0, 48], sizes = [2, 16], strides = [1, 1]} : vector<2x64xf32> to vector<2x16xf32>
    %416 = math.tanh %415 : vector<2x16xf32>
    %417 = vector.extract_strided_slice %414 {offsets = [0, 0], sizes = [2, 16], strides = [1, 1]} : vector<2x48xf32> to vector<2x16xf32>
    %418 = vector.extract_strided_slice %414 {offsets = [0, 16], sizes = [2, 16], strides = [1, 1]} : vector<2x48xf32> to vector<2x16xf32>
    %419 = vector.extract_strided_slice %414 {offsets = [0, 32], sizes = [2, 16], strides = [1, 1]} : vector<2x48xf32> to vector<2x16xf32>
    %420 = arith.mulf %418, %349 : vector<2x16xf32>
    %421 = arith.mulf %417, %416 : vector<2x16xf32>
    %422 = arith.addf %420, %421 : vector<2x16xf32>
    %423 = math.tanh %422 : vector<2x16xf32>
    %424 = arith.mulf %419, %423 : vector<2x16xf32>
    %cst_147 = arith.constant dense<0.000000e+00> : vector<2x64xf32>
    %425 = tpu.matmul %424, %2, %cst_147 {dimension_numbers = #tpu.dot_dimension_numbers<[1], [0], [0], [1], [0, 0, 1, 1], [], []>} : vector<2x16xf32>, vector<16x64xf32>, vector<2x64xf32> -> vector<2x64xf32>
    %426 = arith.addf %10, %425 : vector<2x64xf32>
    %cst_148 = arith.constant dense<0.000000e+00> : vector<2x64xf32>
    %427 = tpu.matmul %373, %3, %cst_148 {dimension_numbers = #tpu.dot_dimension_numbers<[1], [0], [0], [1], [0, 0, 1, 1], [], []>} : vector<2x16xf32>, vector<16x64xf32>, vector<2x64xf32> -> vector<2x64xf32>
    %428 = arith.addf %426, %427 : vector<2x64xf32>
    %429 = vector.extract_strided_slice %428 {offsets = [0, 0], sizes = [2, 48], strides = [1, 1]} : vector<2x64xf32> to vector<2x48xf32>
    %cst_149 = arith.constant 5.000000e-01 : f32
    %430 = vector.broadcast %cst_149 : f32 to vector<2x48xf32>
    %431 = arith.mulf %430, %429 : vector<2x48xf32>
    %432 = math.tanh %431 : vector<2x48xf32>
    %cst_150 = arith.constant 1.000000e+00 : f32
    %433 = vector.broadcast %cst_150 : f32 to vector<2x48xf32>
    %434 = arith.addf %432, %433 : vector<2x48xf32>
    %cst_151 = arith.constant 5.000000e-01 : f32
    %435 = vector.broadcast %cst_151 : f32 to vector<2x48xf32>
    %436 = arith.mulf %435, %434 : vector<2x48xf32>
    %437 = vector.extract_strided_slice %428 {offsets = [0, 48], sizes = [2, 16], strides = [1, 1]} : vector<2x64xf32> to vector<2x16xf32>
    %438 = math.tanh %437 : vector<2x16xf32>
    %439 = vector.extract_strided_slice %436 {offsets = [0, 0], sizes = [2, 16], strides = [1, 1]} : vector<2x48xf32> to vector<2x16xf32>
    %440 = vector.extract_strided_slice %436 {offsets = [0, 16], sizes = [2, 16], strides = [1, 1]} : vector<2x48xf32> to vector<2x16xf32>
    %441 = vector.extract_strided_slice %436 {offsets = [0, 32], sizes = [2, 16], strides = [1, 1]} : vector<2x48xf32> to vector<2x16xf32>
    %442 = arith.mulf %440, %371 : vector<2x16xf32>
    %443 = arith.mulf %439, %438 : vector<2x16xf32>
    %444 = arith.addf %442, %443 : vector<2x16xf32>
    %445 = math.tanh %444 : vector<2x16xf32>
    %446 = arith.mulf %441, %445 : vector<2x16xf32>
    %cst_152 = arith.constant dense<0.000000e+00> : vector<2x8xf32>
    %447 = tpu.matmul %446, %4, %cst_152 {dimension_numbers = #tpu.dot_dimension_numbers<[1], [0], [0], [1], [0, 0, 1, 1], [], []>} : vector<2x16xf32>, vector<16x8xf32>, vector<2x8xf32> -> vector<2x8xf32>
    %448 = arith.addf %447, %7 : vector<2x8xf32>
    %c5 = arith.constant 5 : index
    %c0_153 = arith.constant 0 : index
    %c0_154 = arith.constant 0 : index
    %449 = vector.load %arg3[%c5, %c0_153, %c0_154] : memref<8x2x8xf32, #tpu.memory_space<vmem>>, vector<1x2x8xf32>
    %450 = vector.shape_cast %449 : vector<1x2x8xf32> to vector<2x8xf32>
    %451 = arith.addf %448, %450 : vector<2x8xf32>
    %cst_155 = arith.constant dense<0xFF800000> : vector<2xf32>
    %452 = vector.multi_reduction <maximumf>, %451, %cst_155 [1] : vector<2x8xf32> to vector<2xf32>
    %cst_156 = arith.constant 0xFF800000 : f32
    %453 = vector.broadcast %cst_156 : f32 to vector<2xf32>
    %454 = arith.maximumf %453, %452 : vector<2xf32>
    %455 = vector.shape_cast %454 : vector<2xf32> to vector<2x1xf32>
    %456 = vector.broadcast %455 : vector<2x1xf32> to vector<2x8xf32>
    %457 = arith.subf %451, %456 : vector<2x8xf32>
    %458 = math.exp %457 : vector<2x8xf32>
    %cst_157 = arith.constant dense<0.000000e+00> : vector<2xf32>
    %459 = vector.multi_reduction <add>, %458, %cst_157 [1] : vector<2x8xf32> to vector<2xf32>
    %460 = vector.shape_cast %459 : vector<2xf32> to vector<2x1xf32>
    %461 = vector.broadcast %460 : vector<2x1xf32> to vector<2x8xf32>
    %462 = arith.divf %458, %461 : vector<2x8xf32>
    %c5_158 = arith.constant 5 : index
    %c0_159 = arith.constant 0 : index
    %c0_160 = arith.constant 0 : index
    %463 = vector.load %arg13[%c5_158, %c0_159, %c0_160] : memref<8x2x8xf32, #tpu.memory_space<vmem>>, vector<1x2x8xf32>
    %464 = vector.shape_cast %463 : vector<1x2x8xf32> to vector<2x8xf32>
    %465 = vector.shape_cast %462 : vector<2x8xf32> to vector<1x2x8xf32>
    tpu.vector_store %arg13[%c5_158, %c0_159, %c0_160], %465 {strides = array<i32>} : memref<8x2x8xf32, #tpu.memory_space<vmem>>, vector<1x2x8xf32>,
    %cst_161 = arith.constant dense<0xFF800000> : vector<2xf32>
    %466 = vector.multi_reduction <maximumf>, %448, %cst_161 [1] : vector<2x8xf32> to vector<2xf32>
    %467 = vector.shape_cast %466 : vector<2xf32> to vector<2x1xf32>
    %468 = vector.broadcast %467 : vector<2x1xf32> to vector<2x8xf32>
    %469 = arith.subf %448, %468 : vector<2x8xf32>
    %470 = math.exp %469 : vector<2x8xf32>
    %cst_162 = arith.constant dense<0.000000e+00> : vector<2xf32>
    %471 = vector.multi_reduction <add>, %470, %cst_162 [1] : vector<2x8xf32> to vector<2xf32>
    %472 = vector.shape_cast %471 : vector<2xf32> to vector<2x1xf32>
    %473 = vector.broadcast %472 : vector<2x1xf32> to vector<2x8xf32>
    %474 = arith.divf %470, %473 : vector<2x8xf32>
    %475 = vector.extract_strided_slice %16 {offsets = [12, 0], sizes = [2, 64], strides = [1, 1]} : vector<16x64xf32> to vector<2x64xf32>
    %cst_163 = arith.constant dense<0.000000e+00> : vector<2x64xf32>
    %476 = tpu.matmul %474, %0, %cst_163 {dimension_numbers = #tpu.dot_dimension_numbers<[1], [0], [0], [1], [0, 0, 1, 1], [], []>} : vector<2x8xf32>, vector<8x64xf32>, vector<2x64xf32> -> vector<2x64xf32>
    %477 = arith.addf %475, %476 : vector<2x64xf32>
    %cst_164 = arith.constant dense<0.000000e+00> : vector<2x64xf32>
    %478 = tpu.matmul %424, %1, %cst_164 {dimension_numbers = #tpu.dot_dimension_numbers<[1], [0], [0], [1], [0, 0, 1, 1], [], []>} : vector<2x16xf32>, vector<16x64xf32>, vector<2x64xf32> -> vector<2x64xf32>
    %479 = arith.addf %477, %478 : vector<2x64xf32>
    %480 = vector.extract_strided_slice %479 {offsets = [0, 0], sizes = [2, 48], strides = [1, 1]} : vector<2x64xf32> to vector<2x48xf32>
    %cst_165 = arith.constant 5.000000e-01 : f32
    %481 = vector.broadcast %cst_165 : f32 to vector<2x48xf32>
    %482 = arith.mulf %481, %480 : vector<2x48xf32>
    %483 = math.tanh %482 : vector<2x48xf32>
    %cst_166 = arith.constant 1.000000e+00 : f32
    %484 = vector.broadcast %cst_166 : f32 to vector<2x48xf32>
    %485 = arith.addf %483, %484 : vector<2x48xf32>
    %cst_167 = arith.constant 5.000000e-01 : f32
    %486 = vector.broadcast %cst_167 : f32 to vector<2x48xf32>
    %487 = arith.mulf %486, %485 : vector<2x48xf32>
    %488 = vector.extract_strided_slice %479 {offsets = [0, 48], sizes = [2, 16], strides = [1, 1]} : vector<2x64xf32> to vector<2x16xf32>
    %489 = math.tanh %488 : vector<2x16xf32>
    %490 = vector.extract_strided_slice %487 {offsets = [0, 0], sizes = [2, 16], strides = [1, 1]} : vector<2x48xf32> to vector<2x16xf32>
    %491 = vector.extract_strided_slice %487 {offsets = [0, 16], sizes = [2, 16], strides = [1, 1]} : vector<2x48xf32> to vector<2x16xf32>
    %492 = vector.extract_strided_slice %487 {offsets = [0, 32], sizes = [2, 16], strides = [1, 1]} : vector<2x48xf32> to vector<2x16xf32>
    %493 = arith.mulf %491, %422 : vector<2x16xf32>
    %494 = arith.mulf %490, %489 : vector<2x16xf32>
    %495 = arith.addf %493, %494 : vector<2x16xf32>
    %496 = math.tanh %495 : vector<2x16xf32>
    %497 = arith.mulf %492, %496 : vector<2x16xf32>
    %cst_168 = arith.constant dense<0.000000e+00> : vector<2x64xf32>
    %498 = tpu.matmul %497, %2, %cst_168 {dimension_numbers = #tpu.dot_dimension_numbers<[1], [0], [0], [1], [0, 0, 1, 1], [], []>} : vector<2x16xf32>, vector<16x64xf32>, vector<2x64xf32> -> vector<2x64xf32>
    %499 = arith.addf %10, %498 : vector<2x64xf32>
    %cst_169 = arith.constant dense<0.000000e+00> : vector<2x64xf32>
    %500 = tpu.matmul %446, %3, %cst_169 {dimension_numbers = #tpu.dot_dimension_numbers<[1], [0], [0], [1], [0, 0, 1, 1], [], []>} : vector<2x16xf32>, vector<16x64xf32>, vector<2x64xf32> -> vector<2x64xf32>
    %501 = arith.addf %499, %500 : vector<2x64xf32>
    %502 = vector.extract_strided_slice %501 {offsets = [0, 0], sizes = [2, 48], strides = [1, 1]} : vector<2x64xf32> to vector<2x48xf32>
    %cst_170 = arith.constant 5.000000e-01 : f32
    %503 = vector.broadcast %cst_170 : f32 to vector<2x48xf32>
    %504 = arith.mulf %503, %502 : vector<2x48xf32>
    %505 = math.tanh %504 : vector<2x48xf32>
    %cst_171 = arith.constant 1.000000e+00 : f32
    %506 = vector.broadcast %cst_171 : f32 to vector<2x48xf32>
    %507 = arith.addf %505, %506 : vector<2x48xf32>
    %cst_172 = arith.constant 5.000000e-01 : f32
    %508 = vector.broadcast %cst_172 : f32 to vector<2x48xf32>
    %509 = arith.mulf %508, %507 : vector<2x48xf32>
    %510 = vector.extract_strided_slice %501 {offsets = [0, 48], sizes = [2, 16], strides = [1, 1]} : vector<2x64xf32> to vector<2x16xf32>
    %511 = math.tanh %510 : vector<2x16xf32>
    %512 = vector.extract_strided_slice %509 {offsets = [0, 0], sizes = [2, 16], strides = [1, 1]} : vector<2x48xf32> to vector<2x16xf32>
    %513 = vector.extract_strided_slice %509 {offsets = [0, 16], sizes = [2, 16], strides = [1, 1]} : vector<2x48xf32> to vector<2x16xf32>
    %514 = vector.extract_strided_slice %509 {offsets = [0, 32], sizes = [2, 16], strides = [1, 1]} : vector<2x48xf32> to vector<2x16xf32>
    %515 = arith.mulf %513, %444 : vector<2x16xf32>
    %516 = arith.mulf %512, %511 : vector<2x16xf32>
    %517 = arith.addf %515, %516 : vector<2x16xf32>
    %518 = math.tanh %517 : vector<2x16xf32>
    %519 = arith.mulf %514, %518 : vector<2x16xf32>
    %cst_173 = arith.constant dense<0.000000e+00> : vector<2x8xf32>
    %520 = tpu.matmul %519, %4, %cst_173 {dimension_numbers = #tpu.dot_dimension_numbers<[1], [0], [0], [1], [0, 0, 1, 1], [], []>} : vector<2x16xf32>, vector<16x8xf32>, vector<2x8xf32> -> vector<2x8xf32>
    %521 = arith.addf %520, %7 : vector<2x8xf32>
    %c6 = arith.constant 6 : index
    %c0_174 = arith.constant 0 : index
    %c0_175 = arith.constant 0 : index
    %522 = vector.load %arg3[%c6, %c0_174, %c0_175] : memref<8x2x8xf32, #tpu.memory_space<vmem>>, vector<1x2x8xf32>
    %523 = vector.shape_cast %522 : vector<1x2x8xf32> to vector<2x8xf32>
    %524 = arith.addf %521, %523 : vector<2x8xf32>
    %cst_176 = arith.constant dense<0xFF800000> : vector<2xf32>
    %525 = vector.multi_reduction <maximumf>, %524, %cst_176 [1] : vector<2x8xf32> to vector<2xf32>
    %cst_177 = arith.constant 0xFF800000 : f32
    %526 = vector.broadcast %cst_177 : f32 to vector<2xf32>
    %527 = arith.maximumf %526, %525 : vector<2xf32>
    %528 = vector.shape_cast %527 : vector<2xf32> to vector<2x1xf32>
    %529 = vector.broadcast %528 : vector<2x1xf32> to vector<2x8xf32>
    %530 = arith.subf %524, %529 : vector<2x8xf32>
    %531 = math.exp %530 : vector<2x8xf32>
    %cst_178 = arith.constant dense<0.000000e+00> : vector<2xf32>
    %532 = vector.multi_reduction <add>, %531, %cst_178 [1] : vector<2x8xf32> to vector<2xf32>
    %533 = vector.shape_cast %532 : vector<2xf32> to vector<2x1xf32>
    %534 = vector.broadcast %533 : vector<2x1xf32> to vector<2x8xf32>
    %535 = arith.divf %531, %534 : vector<2x8xf32>
    %c6_179 = arith.constant 6 : index
    %c0_180 = arith.constant 0 : index
    %c0_181 = arith.constant 0 : index
    %536 = vector.load %arg13[%c6_179, %c0_180, %c0_181] : memref<8x2x8xf32, #tpu.memory_space<vmem>>, vector<1x2x8xf32>
    %537 = vector.shape_cast %536 : vector<1x2x8xf32> to vector<2x8xf32>
    %538 = vector.shape_cast %535 : vector<2x8xf32> to vector<1x2x8xf32>
    tpu.vector_store %arg13[%c6_179, %c0_180, %c0_181], %538 {strides = array<i32>} : memref<8x2x8xf32, #tpu.memory_space<vmem>>, vector<1x2x8xf32>,
    %cst_182 = arith.constant dense<0xFF800000> : vector<2xf32>
    %539 = vector.multi_reduction <maximumf>, %521, %cst_182 [1] : vector<2x8xf32> to vector<2xf32>
    %540 = vector.shape_cast %539 : vector<2xf32> to vector<2x1xf32>
    %541 = vector.broadcast %540 : vector<2x1xf32> to vector<2x8xf32>
    %542 = arith.subf %521, %541 : vector<2x8xf32>
    %543 = math.exp %542 : vector<2x8xf32>
    %cst_183 = arith.constant dense<0.000000e+00> : vector<2xf32>
    %544 = vector.multi_reduction <add>, %543, %cst_183 [1] : vector<2x8xf32> to vector<2xf32>
    %545 = vector.shape_cast %544 : vector<2xf32> to vector<2x1xf32>
    %546 = vector.broadcast %545 : vector<2x1xf32> to vector<2x8xf32>
    %547 = arith.divf %543, %546 : vector<2x8xf32>
    %548 = vector.extract_strided_slice %16 {offsets = [14, 0], sizes = [2, 64], strides = [1, 1]} : vector<16x64xf32> to vector<2x64xf32>
    %cst_184 = arith.constant dense<0.000000e+00> : vector<2x64xf32>
    %549 = tpu.matmul %547, %0, %cst_184 {dimension_numbers = #tpu.dot_dimension_numbers<[1], [0], [0], [1], [0, 0, 1, 1], [], []>} : vector<2x8xf32>, vector<8x64xf32>, vector<2x64xf32> -> vector<2x64xf32>
    %550 = arith.addf %548, %549 : vector<2x64xf32>
    %cst_185 = arith.constant dense<0.000000e+00> : vector<2x64xf32>
    %551 = tpu.matmul %497, %1, %cst_185 {dimension_numbers = #tpu.dot_dimension_numbers<[1], [0], [0], [1], [0, 0, 1, 1], [], []>} : vector<2x16xf32>, vector<16x64xf32>, vector<2x64xf32> -> vector<2x64xf32>
    %552 = arith.addf %550, %551 : vector<2x64xf32>
    %553 = vector.extract_strided_slice %552 {offsets = [0, 0], sizes = [2, 48], strides = [1, 1]} : vector<2x64xf32> to vector<2x48xf32>
    %cst_186 = arith.constant 5.000000e-01 : f32
    %554 = vector.broadcast %cst_186 : f32 to vector<2x48xf32>
    %555 = arith.mulf %554, %553 : vector<2x48xf32>
    %556 = math.tanh %555 : vector<2x48xf32>
    %cst_187 = arith.constant 1.000000e+00 : f32
    %557 = vector.broadcast %cst_187 : f32 to vector<2x48xf32>
    %558 = arith.addf %556, %557 : vector<2x48xf32>
    %cst_188 = arith.constant 5.000000e-01 : f32
    %559 = vector.broadcast %cst_188 : f32 to vector<2x48xf32>
    %560 = arith.mulf %559, %558 : vector<2x48xf32>
    %561 = vector.extract_strided_slice %552 {offsets = [0, 48], sizes = [2, 16], strides = [1, 1]} : vector<2x64xf32> to vector<2x16xf32>
    %562 = math.tanh %561 : vector<2x16xf32>
    %563 = vector.extract_strided_slice %560 {offsets = [0, 0], sizes = [2, 16], strides = [1, 1]} : vector<2x48xf32> to vector<2x16xf32>
    %564 = vector.extract_strided_slice %560 {offsets = [0, 16], sizes = [2, 16], strides = [1, 1]} : vector<2x48xf32> to vector<2x16xf32>
    %565 = vector.extract_strided_slice %560 {offsets = [0, 32], sizes = [2, 16], strides = [1, 1]} : vector<2x48xf32> to vector<2x16xf32>
    %566 = arith.mulf %564, %495 : vector<2x16xf32>
    %567 = arith.mulf %563, %562 : vector<2x16xf32>
    %568 = arith.addf %566, %567 : vector<2x16xf32>
    %569 = math.tanh %568 : vector<2x16xf32>
    %570 = arith.mulf %565, %569 : vector<2x16xf32>
    %cst_189 = arith.constant dense<0.000000e+00> : vector<2x64xf32>
    %571 = tpu.matmul %570, %2, %cst_189 {dimension_numbers = #tpu.dot_dimension_numbers<[1], [0], [0], [1], [0, 0, 1, 1], [], []>} : vector<2x16xf32>, vector<16x64xf32>, vector<2x64xf32> -> vector<2x64xf32>
    %572 = arith.addf %10, %571 : vector<2x64xf32>
    %cst_190 = arith.constant dense<0.000000e+00> : vector<2x64xf32>
    %573 = tpu.matmul %519, %3, %cst_190 {dimension_numbers = #tpu.dot_dimension_numbers<[1], [0], [0], [1], [0, 0, 1, 1], [], []>} : vector<2x16xf32>, vector<16x64xf32>, vector<2x64xf32> -> vector<2x64xf32>
    %574 = arith.addf %572, %573 : vector<2x64xf32>
    %575 = vector.extract_strided_slice %574 {offsets = [0, 0], sizes = [2, 48], strides = [1, 1]} : vector<2x64xf32> to vector<2x48xf32>
    %cst_191 = arith.constant 5.000000e-01 : f32
    %576 = vector.broadcast %cst_191 : f32 to vector<2x48xf32>
    %577 = arith.mulf %576, %575 : vector<2x48xf32>
    %578 = math.tanh %577 : vector<2x48xf32>
    %cst_192 = arith.constant 1.000000e+00 : f32
    %579 = vector.broadcast %cst_192 : f32 to vector<2x48xf32>
    %580 = arith.addf %578, %579 : vector<2x48xf32>
    %cst_193 = arith.constant 5.000000e-01 : f32
    %581 = vector.broadcast %cst_193 : f32 to vector<2x48xf32>
    %582 = arith.mulf %581, %580 : vector<2x48xf32>
    %583 = vector.extract_strided_slice %574 {offsets = [0, 48], sizes = [2, 16], strides = [1, 1]} : vector<2x64xf32> to vector<2x16xf32>
    %584 = math.tanh %583 : vector<2x16xf32>
    %585 = vector.extract_strided_slice %582 {offsets = [0, 0], sizes = [2, 16], strides = [1, 1]} : vector<2x48xf32> to vector<2x16xf32>
    %586 = vector.extract_strided_slice %582 {offsets = [0, 16], sizes = [2, 16], strides = [1, 1]} : vector<2x48xf32> to vector<2x16xf32>
    %587 = vector.extract_strided_slice %582 {offsets = [0, 32], sizes = [2, 16], strides = [1, 1]} : vector<2x48xf32> to vector<2x16xf32>
    %588 = arith.mulf %586, %517 : vector<2x16xf32>
    %589 = arith.mulf %585, %584 : vector<2x16xf32>
    %590 = arith.addf %588, %589 : vector<2x16xf32>
    %591 = math.tanh %590 : vector<2x16xf32>
    %592 = arith.mulf %587, %591 : vector<2x16xf32>
    %cst_194 = arith.constant dense<0.000000e+00> : vector<2x8xf32>
    %593 = tpu.matmul %592, %4, %cst_194 {dimension_numbers = #tpu.dot_dimension_numbers<[1], [0], [0], [1], [0, 0, 1, 1], [], []>} : vector<2x16xf32>, vector<16x8xf32>, vector<2x8xf32> -> vector<2x8xf32>
    %594 = arith.addf %593, %7 : vector<2x8xf32>
    %c7 = arith.constant 7 : index
    %c0_195 = arith.constant 0 : index
    %c0_196 = arith.constant 0 : index
    %595 = vector.load %arg3[%c7, %c0_195, %c0_196] : memref<8x2x8xf32, #tpu.memory_space<vmem>>, vector<1x2x8xf32>
    %596 = vector.shape_cast %595 : vector<1x2x8xf32> to vector<2x8xf32>
    %597 = arith.addf %594, %596 : vector<2x8xf32>
    %cst_197 = arith.constant dense<0xFF800000> : vector<2xf32>
    %598 = vector.multi_reduction <maximumf>, %597, %cst_197 [1] : vector<2x8xf32> to vector<2xf32>
    %cst_198 = arith.constant 0xFF800000 : f32
    %599 = vector.broadcast %cst_198 : f32 to vector<2xf32>
    %600 = arith.maximumf %599, %598 : vector<2xf32>
    %601 = vector.shape_cast %600 : vector<2xf32> to vector<2x1xf32>
    %602 = vector.broadcast %601 : vector<2x1xf32> to vector<2x8xf32>
    %603 = arith.subf %597, %602 : vector<2x8xf32>
    %604 = math.exp %603 : vector<2x8xf32>
    %cst_199 = arith.constant dense<0.000000e+00> : vector<2xf32>
    %605 = vector.multi_reduction <add>, %604, %cst_199 [1] : vector<2x8xf32> to vector<2xf32>
    %606 = vector.shape_cast %605 : vector<2xf32> to vector<2x1xf32>
    %607 = vector.broadcast %606 : vector<2x1xf32> to vector<2x8xf32>
    %608 = arith.divf %604, %607 : vector<2x8xf32>
    %c7_200 = arith.constant 7 : index
    %c0_201 = arith.constant 0 : index
    %c0_202 = arith.constant 0 : index
    %609 = vector.load %arg13[%c7_200, %c0_201, %c0_202] : memref<8x2x8xf32, #tpu.memory_space<vmem>>, vector<1x2x8xf32>
    %610 = vector.shape_cast %609 : vector<1x2x8xf32> to vector<2x8xf32>
    %611 = vector.shape_cast %608 : vector<2x8xf32> to vector<1x2x8xf32>
    tpu.vector_store %arg13[%c7_200, %c0_201, %c0_202], %611 {strides = array<i32>} : memref<8x2x8xf32, #tpu.memory_space<vmem>>, vector<1x2x8xf32>,
    return
  }
}

</mosaic_0001>

<llo_original>
// kernel: lstm_decoder_forward.1
$region0: #{lstm_decoder_forward.1}
  #allocation0 [shape = 'u32[]', space=smem, size = 0x4, offset = 0x4, fixed_abs, tag = 'smem constant byte address 0x4 - core index']
  #allocation1 [shape = 'u32[72,128]{1,0:T(1,128)}', space=vmem, size = 0x9000, scoped, tag = 'internal scratch']
  %s0 = inlined_call_operand.vmem [shape: f32[16,32], index: 0, kind: input, shape index: {}]
  %s1 = inlined_call_operand.hbm [shape: f32[2,2,16], index: 1, kind: input, shape index: {}]
  %s2 = inlined_call_operand.hbm [shape: f32[2,2,16], index: 2, kind: input, shape index: {}]
  %s3 = inlined_call_operand.vmem [shape: f32[8,2,8], index: 3, kind: input, shape index: {}]
  %s4 = inlined_call_operand.vmem [shape: f32[32,64], index: 4, kind: input, shape index: {}]
  %s5 = inlined_call_operand.vmem [shape: f32[8,64], index: 5, kind: input, shape index: {}]
  %s6 = inlined_call_operand.vmem [shape: f32[16,64], index: 6, kind: input, shape index: {}]
  %s7 = inlined_call_operand.hbm [shape: f32[1,64], index: 7, kind: input, shape index: {}]
  %s8 = inlined_call_operand.vmem [shape: f32[16,64], index: 8, kind: input, shape index: {}]
  %s9 = inlined_call_operand.hbm [shape: f32[16,64], index: 9, kind: input, shape index: {}]
  %s10 = inlined_call_operand.vmem [shape: f32[1,64], index: 10, kind: input, shape index: {}]
  %s11 = inlined_call_operand.vmem [shape: f32[16,8], index: 11, kind: input, shape index: {}]
  %s12 = inlined_call_operand.vmem [shape: f32[1,8], index: 12, kind: input, shape index: {}]
  %s13 = inlined_call_operand.vmem [shape: f32[8,2,8], index: 13, kind: output, shape index: {}]
  %s14 = sld [smem:[#allocation0]]
  $region78: #{lstm_decoder_forward.1} parent=0
    _
  %s16 = ssub.s32 1, %s14
  %s17 = scalar_select 0, %s16, %s14
  $region1: #{lstm_decoder_forward.1} parent=0
    #allocation2 [shape = 'u8[2048]{0}', space=vmem, size = 0x800, scoped, tag = 'input window, operand 1, single buffered']
    #allocation3 [shape = 's32[1]{0}', space=sflag, size = 0x4, scoped, tag = 'scoped memory for lstm_decoder_forward.1']
    #allocation4 [shape = 'u8[2048]{0}', space=vmem, size = 0x800, scoped, tag = 'input window, operand 2, single buffered']
    #allocation5 [shape = 's32[1]{0}', space=sflag, size = 0x4, scoped, tag = 'scoped memory for lstm_decoder_forward.1']
    #allocation6 [shape = 'u8[512]{0}', space=vmem, size = 0x400, scoped, tag = 'input window, operand 7, single buffered']
    #allocation7 [shape = 'u8[8192]{0}', space=vmem, size = 0x2000, scoped, tag = 'input window, operand 9, single buffered']
    #allocation8 [shape = 's32[1]{0}', space=sflag, size = 0x4, scoped, tag = 'scoped memory for lstm_decoder_forward.1']
    %18 = vsyncpa [#allocation3], 0
    %19 = vsyncpa [#allocation5], 0
    %20 = vsyncpa [#allocation8], 0
    // Predicated region
    $region2: #{lstm_decoder_forward.1} parent=1 // pred_check
      _
    $region3: #{lstm_decoder_forward.1} parent=1 // pred_check_branch
      %22 = sbr.rel (0) target = $region5
    $region4: #{lstm_decoder_forward.1} parent=1 // pred_region
      _
    $region5: #{lstm_decoder_forward.1} parent=1 // pred_fallthru
      _
    // Predicated region
    $region6: #{lstm_decoder_forward.1} parent=1 // pred_check
      _
    $region7: #{lstm_decoder_forward.1} parent=1 // pred_check_branch
      %24 = sbr.rel (0) target = $region9
    $region8: #{lstm_decoder_forward.1} parent=1 // pred_region
      %26 = vsyncadd [#allocation3], 0
      %s27 = sshll.u32 %s1, 4
      %s28 = int_to_ptr.hbm [resolvable:$true] %s27
      %s29 = sshll.u32 [#allocation2], 4
      %s30 = int_to_ptr.vmem [resolvable:$true] %s29
      %35 = dma.hbm_to_vmem [thread:$0]  %s28, 64, %s30, [#allocation3], 32, 32, 2
    $region9: #{lstm_decoder_forward.1} parent=1 // pred_fallthru
      _
    // Predicated region
    $region10: #{lstm_decoder_forward.1} parent=1 // pred_check
      _
    $region11: #{lstm_decoder_forward.1} parent=1 // pred_check_branch
      %37 = sbr.rel (0) target = $region13
    $region12: #{lstm_decoder_forward.1} parent=1 // pred_region
      %39 = vsyncadd [#allocation5], 0
      %s40 = sshll.u32 %s2, 4
      %s41 = int_to_ptr.hbm [resolvable:$true] %s40
      %s42 = sshll.u32 [#allocation4], 4
      %s43 = int_to_ptr.vmem [resolvable:$true] %s42
      %48 = dma.hbm_to_vmem [thread:$0]  %s41, 64, %s43, [#allocation5], 32, 32, 2
    $region13: #{lstm_decoder_forward.1} parent=1 // pred_fallthru
      _
    // Predicated region
    $region14: #{lstm_decoder_forward.1} parent=1 // pred_check
      _
    $region15: #{lstm_decoder_forward.1} parent=1 // pred_check_branch
      %50 = sbr.rel (0) target = $region17
    $region16: #{lstm_decoder_forward.1} parent=1 // pred_region
      _
    $region17: #{lstm_decoder_forward.1} parent=1 // pred_fallthru
      _
    // Predicated region
    $region18: #{lstm_decoder_forward.1} parent=1 // pred_check
      _
    $region19: #{lstm_decoder_forward.1} parent=1 // pred_check_branch
      %52 = sbr.rel (0) target = $region21
    $region20: #{lstm_decoder_forward.1} parent=1 // pred_region
      _
    $region21: #{lstm_decoder_forward.1} parent=1 // pred_fallthru
      _
    // Predicated region
    $region22: #{lstm_decoder_forward.1} parent=1 // pred_check
      _
    $region23: #{lstm_decoder_forward.1} parent=1 // pred_check_branch
      %54 = sbr.rel (0) target = $region25
    $region24: #{lstm_decoder_forward.1} parent=1 // pred_region
      _
    $region25: #{lstm_decoder_forward.1} parent=1 // pred_fallthru
      _
    // Predicated region
    $region26: #{lstm_decoder_forward.1} parent=1 // pred_check
      _
    $region27: #{lstm_decoder_forward.1} parent=1 // pred_check_branch
      %56 = sbr.rel (0) target = $region29
    $region28: #{lstm_decoder_forward.1} parent=1 // pred_region
      _
    $region29: #{lstm_decoder_forward.1} parent=1 // pred_fallthru
      _
    // Predicated region
    $region30: #{lstm_decoder_forward.1} parent=1 // pred_check
      _
    $region31: #{lstm_decoder_forward.1} parent=1 // pred_check_branch
      %58 = sbr.rel (0) target = $region33
    $region32: #{lstm_decoder_forward.1} parent=1 // pred_region
      %60 = vsyncadd [#allocation5], 0
      %s62 = sshll.u32 %s7, 4
      %s63 = int_to_ptr.hbm [resolvable:$true] %s62
      %s64 = sshll.u32 [#allocation6], 4
      %s65 = int_to_ptr.vmem [resolvable:$true] %s64
      %67 = dma.hbm_to_vmem [thread:$0]  %s63, 16, %s65, [#allocation5]
    $region33: #{lstm_decoder_forward.1} parent=1 // pred_fallthru
      _
    // Predicated region
    $region34: #{lstm_decoder_forward.1} parent=1 // pred_check
      _
    $region35: #{lstm_decoder_forward.1} parent=1 // pred_check_branch
      %69 = sbr.rel (0) target = $region37
    $region36: #{lstm_decoder_forward.1} parent=1 // pred_region
      _
    $region37: #{lstm_decoder_forward.1} parent=1 // pred_fallthru
      _
    // Predicated region
    $region38: #{lstm_decoder_forward.1} parent=1 // pred_check
      _
    $region39: #{lstm_decoder_forward.1} parent=1 // pred_check_branch
      %71 = sbr.rel (0) target = $region41
    $region40: #{lstm_decoder_forward.1} parent=1 // pred_region
      %73 = vsyncadd [#allocation8], 0
      %s74 = sshll.u32 %s9, 4
      %s75 = int_to_ptr.hbm [resolvable:$true] %s74
      %s76 = sshll.u32 [#allocation7], 4
      %s77 = int_to_ptr.vmem [resolvable:$true] %s76
      %82 = dma.hbm_to_vmem [thread:$0]  %s75, 256, %s77, [#allocation8], 128, 128, 8
    $region41: #{lstm_decoder_forward.1} parent=1 // pred_fallthru
      _
    // Predicated region
    $region42: #{lstm_decoder_forward.1} parent=1 // pred_check
      _
    $region43: #{lstm_decoder_forward.1} parent=1 // pred_check_branch
      %84 = sbr.rel (0) target = $region45
    $region44: #{lstm_decoder_forward.1} parent=1 // pred_region
      _
    $region45: #{lstm_decoder_forward.1} parent=1 // pred_fallthru
      _
    // Predicated region
    $region46: #{lstm_decoder_forward.1} parent=1 // pred_check
      _
    $region47: #{lstm_decoder_forward.1} parent=1 // pred_check_branch
      %86 = sbr.rel (0) target = $region49
    $region48: #{lstm_decoder_forward.1} parent=1 // pred_region
      _
    $region49: #{lstm_decoder_forward.1} parent=1 // pred_fallthru
      _
    // Predicated region
    $region50: #{lstm_decoder_forward.1} parent=1 // pred_check
      _
    $region51: #{lstm_decoder_forward.1} parent=1 // pred_check_branch
      %88 = sbr.rel (0) target = $region53
    $region52: #{lstm_decoder_forward.1} parent=1 // pred_region
      _
    $region53: #{lstm_decoder_forward.1} parent=1 // pred_fallthru
      _
    // Predicated region
    $region54: #{lstm_decoder_forward.1} parent=1 // pred_check
      _
    $region55: #{lstm_decoder_forward.1} parent=1 // pred_check_branch
      %90 = sbr.rel (0) target = $region57
    $region56: #{lstm_decoder_forward.1} parent=1 // pred_region
      %92 = dma.done [#allocation3], 64
    $region57: #{lstm_decoder_forward.1} parent=1 // pred_fallthru
      _
    // Predicated region
    $region58: #{lstm_decoder_forward.1} parent=1 // pred_check
      _
    $region59: #{lstm_decoder_forward.1} parent=1 // pred_check_branch
      %94 = sbr.rel (0) target = $region61
    $region60: #{lstm_decoder_forward.1} parent=1 // pred_region
      %96 = dma.done [#allocation5], 64
    $region61: #{lstm_decoder_forward.1} parent=1 // pred_fallthru
      _
    // Predicated region
    $region62: #{lstm_decoder_forward.1} parent=1 // pred_check
      _
    $region63: #{lstm_decoder_forward.1} parent=1 // pred_check_branch
      %98 = sbr.rel (0) target = $region65
    $region64: #{lstm_decoder_forward.1} parent=1 // pred_region
      %100 = dma.done [#allocation5], 16
    $region65: #{lstm_decoder_forward.1} parent=1 // pred_fallthru
      _
    // Predicated region
    $region66: #{lstm_decoder_forward.1} parent=1 // pred_check
      _
    $region67: #{lstm_decoder_forward.1} parent=1 // pred_check_branch
      %102 = sbr.rel (0) target = $region69
    $region68: #{lstm_decoder_forward.1} parent=1 // pred_region
      %104 = dma.done [#allocation8], 256
    $region69: #{lstm_decoder_forward.1} parent=1 // pred_fallthru
      _
    %v105 = vld [vmem:[%s5] sm:$0xff]
    %v106 = vld [vmem:[%s6] sm:$0xff]
    %v107 = vld [vmem:[%s6 + $0x8] sm:$0xff]
    %v108 = vld [vmem:[%s8] sm:$0xff]
    %v109 = vld [vmem:[%s8 + $0x8] sm:$0xff]
    %v110 = vld [vmem:[#allocation7] sm:$0xff]
    %v111 = vld [vmem:[#allocation7 + $0x8] sm:$0xff]
    %v112 = vld [vmem:[%s11] sm:$0xff]
    %v113 = vld [vmem:[%s11 + $0x8] sm:$0xff]
    %v114 = vld [vmem:[%s12] sm:$0x1]
    %v116 = vperm.slane %v114, 0
    %v118 = vld [vmem:[%s10] sm:$0x1]
    %v120 = vperm.slane %v118, 0
    %v122 = vld [vmem:[%s0] sm:$0xff]
    %v123 = vld [vmem:[%s0 + $0x8] sm:$0xff]
    %v124 = vld [vmem:[%s4] sm:$0xff]
    %v125 = vld [vmem:[%s4 + $0x8] sm:$0xff]
    %v126 = vld [vmem:[%s4 + $0x10] sm:$0xff]
    %v127 = vld [vmem:[%s4 + $0x18] sm:$0xff]
    %v128 = vld [vmem:[#allocation6] sm:$0x1]
    %v130 = vperm.slane %v128, 0
    %vm132 = vcmask 261120
    %v134 = vsel %vm132, %v122, 0
    %v137 = vsel %vm132, %v123, 0
    %139 = vmatpush.msra.mxu0 0.0
    %140 = vmatpush.msra.mxu0 0.0
    %141 = vmatpush.msra.mxu0 0.0
    %142 = vmatpush.msra.mxu0 0.0
    %143 = vmatpush.msra.mxu0 0.0
    %144 = vmatpush.msra.mxu0 0.0
    %145 = vmatpush.msra.mxu0 0.0
    %146 = vmatpush.msra.mxu0 0.0
    %147 = vmatpush.msra.mxu0 0.0
    %148 = vmatpush.msra.mxu0 0.0
    %149 = vmatpush.msra.mxu0 0.0
    %150 = vmatpush.msra.mxu0 0.0
    %151 = vmatpush.msra.mxu0 %v127
    %152 = vmatpush.msra.mxu0 %v126
    %153 = vmatpush.msra.mxu0 %v125
    %154 = vmatpush.msra.mxu0 %v124
    %155 = vmatmul.f32.gmra.mxu0 %v134
    %v156 = vpop.f32.mrf.mxu0
    %v157 = vadd.f32 %v130, %v156
    %158 = vmatmul.f32.gmra.mxu0 %v137
    %v159 = vpop.f32.mrf.mxu0
    %v160 = vadd.f32 %v130, %v159
    %161 = vdwg.mxu0
    %v162 = vld [vmem:[%s0] sm:$0x3]
    %vm163 = vcmask 130048
    %v165 = vsel %vm163, %v162, 0
    %167 = vmatpush.msra.mxu0 0.0
    %168 = vmatpush.msra.mxu0 0.0
    %169 = vmatpush.msra.mxu0 0.0
    %170 = vmatpush.msra.mxu0 0.0
    %171 = vmatpush.msra.mxu0 0.0
    %172 = vmatpush.msra.mxu0 0.0
    %173 = vmatpush.msra.mxu0 0.0
    %174 = vmatpush.msra.mxu0 0.0
    %175 = vmatpush.msra.mxu0 0.0
    %176 = vmatpush.msra.mxu0 0.0
    %177 = vmatpush.msra.mxu0 0.0
    %178 = vmatpush.msra.mxu0 0.0
    %179 = vmatpush.msra.mxu0 0.0
    %180 = vmatpush.msra.mxu0 0.0
    %181 = vmatpush.msra.mxu0 %v113
    %182 = vmatpush.msra.mxu0 %v112
    %183 = vmatmul.f32.gmra.mxu0 %v165
    %v184 = vpop.f32.mrf.mxu0
    %v185 = vadd.f32 %v116, %v184
    %186 = vdwg.mxu0
    %vm187 = vcmask 58368
    %v188 = vsel %vm187, %v185, -inf
    %189 = vmax.xlane.f32.xlu0 %v188
    %v190 = vpop.xlane.xlu0 %189
    %v191 = vsub.f32 %v185, %v190
    %v192 = vmul.f32 %v191, 1.442695
    %v193 = vpow.pop %v192
    %v194 = vsel %vm187, %v193, 0.0
    %195 = vadd.xlane.f32.xlu0 %v194
    %v196 = vpop.xlane.xlu0 %195
    %v197 = vrcp.pop %v196
    %v198 = vmul.f32 %v196, %v197
    %v199 = vsub.f32 1.0, %v198
    %v200 = vmul.f32 %v197, %v199
    %v201 = vadd.f32 %v197, %v200
    %vm202 = vweird.f32 %v196
    %vm203 = vweird.f32 %v197
    %vm204 = vmor %vm202, %vm203
    %v205 = vsel %vm204, %v197, %v201
    %v206 = vand.u32 2147483647, %v196
    %vm207 = vcmp.eq.f32.partialorder %v206, 8.507059e+37
    %v208 = vand.u32 %v196, 2147483648
    %v209 = vor.u32 1.1754944e-38, %v208
    %v210 = vsel %vm207, %v209, %v205
    %v211 = vmul.f32 %v193, %v210
    %v212 = vld [vmem:[#allocation2] sm:$0x3]
    %v213 = vld [vmem:[#allocation4] sm:$0x3]
    %s214 = scalar_lea.vmem [#allocation2], 2
    %v215 = vld [vmem:[%s214] sm:$0x3]
    %s216 = scalar_lea.vmem [#allocation4], 2
    %v217 = vld [vmem:[%s216] sm:$0x3]
    %vm218 = vcmask 64512
    %v220 = vsel %vm218, %v211, 0
    %222 = vmatpush.msra.mxu0 0.0
    %223 = vmatpush.msra.mxu0 0.0
    %224 = vmatpush.msra.mxu0 0.0
    %225 = vmatpush.msra.mxu0 0.0
    %226 = vmatpush.msra.mxu0 0.0
    %227 = vmatpush.msra.mxu0 0.0
    %228 = vmatpush.msra.mxu0 0.0
    %229 = vmatpush.msra.mxu0 0.0
    %230 = vmatpush.msra.mxu0 0.0
    %231 = vmatpush.msra.mxu0 0.0
    %232 = vmatpush.msra.mxu0 0.0
    %233 = vmatpush.msra.mxu0 0.0
    %234 = vmatpush.msra.mxu0 0.0
    %235 = vmatpush.msra.mxu0 0.0
    %236 = vmatpush.msra.mxu0 0.0
    %237 = vmatpush.msra.mxu0 %v105
    %238 = vmatmul.f32.gmra.mxu0 %v220
    %v239 = vpop.f32.mrf.mxu0
    %v240 = vadd.f32 0.0, %v239
    %241 = vdwg.mxu0
    %v242 = vadd.f32 %v157, %v240
    %v244 = vsel %vm163, %v212, 0
    %246 = vmatpush.msra.mxu0 0.0
    %247 = vmatpush.msra.mxu0 0.0
    %248 = vmatpush.msra.mxu0 0.0
    %249 = vmatpush.msra.mxu0 0.0
    %250 = vmatpush.msra.mxu0 0.0
    %251 = vmatpush.msra.mxu0 0.0
    %252 = vmatpush.msra.mxu0 0.0
    %253 = vmatpush.msra.mxu0 0.0
    %254 = vmatpush.msra.mxu0 0.0
    %255 = vmatpush.msra.mxu0 0.0
    %256 = vmatpush.msra.mxu0 0.0
    %257 = vmatpush.msra.mxu0 0.0
    %258 = vmatpush.msra.mxu0 0.0
    %259 = vmatpush.msra.mxu0 0.0
    %260 = vmatpush.msra.mxu0 %v107
    %261 = vmatpush.msra.mxu0 %v106
    %262 = vmatmul.f32.gmra.mxu0 %v244
    %v263 = vpop.f32.mrf.mxu0
    %v264 = vadd.f32 0.0, %v263
    %265 = vdwg.mxu0
    %v266 = vadd.f32 %v242, %v264
    %v267 = vmul.f32 %v266, 0.5
    %v268 = vtanh.pop %v267
    %v269 = vadd.f32 %v268, 1.0
    %v270 = vmul.f32 %v269, 0.5
    %v271 = vtanh.pop %v266
    %273 = vrot.lane.b32.xlu0 %v213, 16
    %v274 = vpop.permute.xlu0 %273
    %v276 = vmul.f32 %v270, %v274
    %278 = vrot.lane.b32.xlu0 %v271, 80
    %v279 = vpop.permute.xlu0 %278
    %v281 = vmul.f32 %v270, %v279
    %283 = vrot.lane.b32.xlu0 %v281, 16
    %v284 = vpop.permute.xlu0 %283
    %v286 = vadd.f32 %v276, %v284
    %v287 = vtanh.pop %v286
    %289 = vrot.lane.b32.xlu0 %v287, 16
    %v290 = vpop.permute.xlu0 %289
    %v292 = vmul.f32 %v270, %v290
    %294 = vrot.lane.b32.xlu0 %v292, 96
    %v295 = vpop.permute.xlu0 %294
    %v296 = vsel %vm163, %v295, 0
    %298 = vmatpush.msra.mxu0 0.0
    %299 = vmatpush.msra.mxu0 0.0
    %300 = vmatpush.msra.mxu0 0.0
    %301 = vmatpush.msra.mxu0 0.0
    %302 = vmatpush.msra.mxu0 0.0
    %303 = vmatpush.msra.mxu0 0.0
    %304 = vmatpush.msra.mxu0 0.0
    %305 = vmatpush.msra.mxu0 0.0
    %306 = vmatpush.msra.mxu0 0.0
    %307 = vmatpush.msra.mxu0 0.0
    %308 = vmatpush.msra.mxu0 0.0
    %309 = vmatpush.msra.mxu0 0.0
    %310 = vmatpush.msra.mxu0 0.0
    %311 = vmatpush.msra.mxu0 0.0
    %312 = vmatpush.msra.mxu0 %v109
    %313 = vmatpush.msra.mxu0 %v108
    %314 = vmatmul.f32.gmra.mxu0 %v296
    %v315 = vpop.f32.mrf.mxu0
    %v316 = vadd.f32 0.0, %v315
    %317 = vdwg.mxu0
    %v318 = vadd.f32 %v120, %v316
    %v320 = vsel %vm163, %v215, 0
    %322 = vmatpush.msra.mxu0 0.0
    %323 = vmatpush.msra.mxu0 0.0
    %324 = vmatpush.msra.mxu0 0.0
    %325 = vmatpush.msra.mxu0 0.0
    %326 = vmatpush.msra.mxu0 0.0
    %327 = vmatpush.msra.mxu0 0.0
    %328 = vmatpush.msra.mxu0 0.0
    %329 = vmatpush.msra.mxu0 0.0
    %330 = vmatpush.msra.mxu0 0.0
    %331 = vmatpush.msra.mxu0 0.0
    %332 = vmatpush.msra.mxu0 0.0
    %333 = vmatpush.msra.mxu0 0.0
    %334 = vmatpush.msra.mxu0 0.0
    %335 = vmatpush.msra.mxu0 0.0
    %336 = vmatpush.msra.mxu0 %v111
    %337 = vmatpush.msra.mxu0 %v110
    %338 = vmatmul.f32.gmra.mxu0 %v320
    %v339 = vpop.f32.mrf.mxu0
    %v340 = vadd.f32 0.0, %v339
    %341 = vdwg.mxu0
    %v342 = vadd.f32 %v318, %v340
    %v343 = vmul.f32 %v342, 0.5
    %v344 = vtanh.pop %v343
    %v345 = vadd.f32 %v344, 1.0
    %v346 = vmul.f32 %v345, 0.5
    %v347 = vtanh.pop %v342
    %349 = vrot.lane.b32.xlu0 %v217, 16
    %v350 = vpop.permute.xlu0 %349
    %v352 = vmul.f32 %v346, %v350
    %354 = vrot.lane.b32.xlu0 %v347, 80
    %v355 = vpop.permute.xlu0 %354
    %v357 = vmul.f32 %v346, %v355
    %359 = vrot.lane.b32.xlu0 %v357, 16
    %v360 = vpop.permute.xlu0 %359
    %v362 = vadd.f32 %v352, %v360
    %v363 = vtanh.pop %v362
    %365 = vrot.lane.b32.xlu0 %v363, 16
    %v366 = vpop.permute.xlu0 %365
    %v368 = vmul.f32 %v346, %v366
    %370 = vrot.lane.b32.xlu0 %v368, 96
    %v371 = vpop.permute.xlu0 %370
    %v372 = vsel %vm163, %v371, 0
    %374 = vmatpush.msra.mxu0 0.0
    %375 = vmatpush.msra.mxu0 0.0
    %376 = vmatpush.msra.mxu0 0.0
    %377 = vmatpush.msra.mxu0 0.0
    %378 = vmatpush.msra.mxu0 0.0
    %379 = vmatpush.msra.mxu0 0.0
    %380 = vmatpush.msra.mxu0 0.0
    %381 = vmatpush.msra.mxu0 0.0
    %382 = vmatpush.msra.mxu0 0.0
    %383 = vmatpush.msra.mxu0 0.0
    %384 = vmatpush.msra.mxu0 0.0
    %385 = vmatpush.msra.mxu0 0.0
    %386 = vmatpush.msra.mxu0 0.0
    %387 = vmatpush.msra.mxu0 0.0
    %388 = vmatpush.msra.mxu0 %v113
    %389 = vmatpush.msra.mxu0 %v112
    %390 = vmatmul.f32.gmra.mxu0 %v372
    %v391 = vpop.f32.mrf.mxu0
    %v392 = vadd.f32 %v116, %v391
    %393 = vdwg.mxu0
    %v394 = vld [vmem:[%s3] sm:$0x3]
    %v395 = vadd.f32 %v392, %v394
    %v396 = vsel %vm187, %v395, -inf
    %397 = vmax.xlane.f32.xlu0 %v396
    %v398 = vpop.xlane.xlu0 %397
    %v399 = vsub.f32 %v395, %v398
    %v400 = vmul.f32 %v399, 1.442695
    %v401 = vpow.pop %v400
    %v402 = vsel %vm187, %v401, 0.0
    %403 = vadd.xlane.f32.xlu0 %v402
    %v404 = vpop.xlane.xlu0 %403
    %v405 = vrcp.pop %v404
    %v406 = vmul.f32 %v404, %v405
    %v407 = vsub.f32 1.0, %v406
    %v408 = vmul.f32 %v405, %v407
    %v409 = vadd.f32 %v405, %v408
    %vm410 = vweird.f32 %v404
    %vm411 = vweird.f32 %v405
    %vm412 = vmor %vm410, %vm411
    %v413 = vsel %vm412, %v405, %v409
    %v414 = vand.u32 2147483647, %v404
    %vm415 = vcmp.eq.f32.partialorder %v414, 8.507059e+37
    %v416 = vand.u32 %v404, 2147483648
    %v417 = vor.u32 1.1754944e-38, %v416
    %v418 = vsel %vm415, %v417, %v413
    %v419 = vmul.f32 %v401, %v418
    %420 = vst.msk [vmem:[%s13] sm:$0x3] %vm187, %v419
    %v421 = vsel %vm187, %v392, -inf
    %422 = vmax.xlane.f32.xlu0 %v421
    %v423 = vpop.xlane.xlu0 %422
    %v424 = vsub.f32 %v392, %v423
    %v425 = vmul.f32 %v424, 1.442695
    %v426 = vpow.pop %v425
    %v427 = vsel %vm187, %v426, 0.0
    %428 = vadd.xlane.f32.xlu0 %v427
    %v429 = vpop.xlane.xlu0 %428
    %v430 = vrcp.pop %v429
    %v431 = vmul.f32 %v429, %v430
    %v432 = vsub.f32 1.0, %v431
    %v433 = vmul.f32 %v430, %v432
    %v434 = vadd.f32 %v430, %v433
    %vm435 = vweird.f32 %v429
    %vm436 = vweird.f32 %v430
    %vm437 = vmor %vm435, %vm436
    %v438 = vsel %vm437, %v430, %v434
    %v439 = vand.u32 2147483647, %v429
    %vm440 = vcmp.eq.f32.partialorder %v439, 8.507059e+37
    %v441 = vand.u32 %v429, 2147483648
    %v442 = vor.u32 1.1754944e-38, %v441
    %v443 = vsel %vm440, %v442, %v438
    %v444 = vmul.f32 %v426, %v443
    %v446 = vsel %vm218, %v444, 0
    %448 = vmatpush.msra.mxu0 0.0
    %449 = vmatpush.msra.mxu0 0.0
    %450 = vmatpush.msra.mxu0 0.0
    %451 = vmatpush.msra.mxu0 0.0
    %452 = vmatpush.msra.mxu0 0.0
    %453 = vmatpush.msra.mxu0 0.0
    %454 = vmatpush.msra.mxu0 0.0
    %455 = vmatpush.msra.mxu0 0.0
    %456 = vmatpush.msra.mxu0 0.0
    %457 = vmatpush.msra.mxu0 0.0
    %458 = vmatpush.msra.mxu0 0.0
    %459 = vmatpush.msra.mxu0 0.0
    %460 = vmatpush.msra.mxu0 0.0
    %461 = vmatpush.msra.mxu0 0.0
    %462 = vmatpush.msra.mxu0 0.0
    %463 = vmatpush.msra.mxu0 %v105
    %464 = vmatmul.f32.gmra.mxu0 %v446
    %v465 = vpop.f32.mrf.mxu0
    %v466 = vadd.f32 0.0, %v465
    %467 = vdwg.mxu0
    %v469 = vrot.slane %v466, 6
    %v471 = vadd.f32 %v157, %v469
    %472 = vmatpush.msra.mxu0 0.0
    %473 = vmatpush.msra.mxu0 0.0
    %474 = vmatpush.msra.mxu0 0.0
    %475 = vmatpush.msra.mxu0 0.0
    %476 = vmatpush.msra.mxu0 0.0
    %477 = vmatpush.msra.mxu0 0.0
    %478 = vmatpush.msra.mxu0 0.0
    %479 = vmatpush.msra.mxu0 0.0
    %480 = vmatpush.msra.mxu0 0.0
    %481 = vmatpush.msra.mxu0 0.0
    %482 = vmatpush.msra.mxu0 0.0
    %483 = vmatpush.msra.mxu0 0.0
    %484 = vmatpush.msra.mxu0 0.0
    %485 = vmatpush.msra.mxu0 0.0
    %486 = vmatpush.msra.mxu0 %v107
    %487 = vmatpush.msra.mxu0 %v106
    %488 = vmatmul.f32.gmra.mxu0 %v296
    %v489 = vpop.f32.mrf.mxu0
    %v490 = vadd.f32 0.0, %v489
    %491 = vdwg.mxu0
    %v493 = vrot.slane %v490, 6
    %v495 = vadd.f32 %v471, %v493
    %v496 = vmul.f32 %v495, 0.5
    %v497 = vtanh.pop %v496
    %v498 = vadd.f32 %v497, 1.0
    %v499 = vmul.f32 %v498, 0.5
    %v500 = vtanh.pop %v495
    %v502 = vrot.slane %v286, 6
    %v504 = vmul.f32 %v499, %v502
    %506 = vrot.lane.b32.xlu0 %v500, 80
    %v507 = vpop.permute.xlu0 %506
    %v509 = vmul.f32 %v499, %v507
    %511 = vrot.lane.b32.xlu0 %v509, 16
    %v512 = vpop.permute.xlu0 %511
    %v514 = vadd.f32 %v504, %v512
    %v515 = vtanh.pop %v514
    %517 = vrot.lane.b32.xlu0 %v515, 16
    %v518 = vpop.permute.xlu0 %517
    %v520 = vmul.f32 %v499, %v518
    %v522 = vrot.slane %v520, 2
    %523 = vrot.lane.b32.xlu0 %v522, 96
    %v524 = vpop.permute.xlu0 %523
    %v525 = vsel %vm163, %v524, 0
    %527 = vmatpush.msra.mxu0 0.0
    %528 = vmatpush.msra.mxu0 0.0
    %529 = vmatpush.msra.mxu0 0.0
    %530 = vmatpush.msra.mxu0 0.0
    %531 = vmatpush.msra.mxu0 0.0
    %532 = vmatpush.msra.mxu0 0.0
    %533 = vmatpush.msra.mxu0 0.0
    %534 = vmatpush.msra.mxu0 0.0
    %535 = vmatpush.msra.mxu0 0.0
    %536 = vmatpush.msra.mxu0 0.0
    %537 = vmatpush.msra.mxu0 0.0
    %538 = vmatpush.msra.mxu0 0.0
    %539 = vmatpush.msra.mxu0 0.0
    %540 = vmatpush.msra.mxu0 0.0
    %541 = vmatpush.msra.mxu0 %v109
    %542 = vmatpush.msra.mxu0 %v108
    %543 = vmatmul.f32.gmra.mxu0 %v525
    %v544 = vpop.f32.mrf.mxu0
    %v545 = vadd.f32 0.0, %v544
    %546 = vdwg.mxu0
    %v547 = vadd.f32 %v120, %v545
    %548 = vmatpush.msra.mxu0 0.0
    %549 = vmatpush.msra.mxu0 0.0
    %550 = vmatpush.msra.mxu0 0.0
    %551 = vmatpush.msra.mxu0 0.0
    %552 = vmatpush.msra.mxu0 0.0
    %553 = vmatpush.msra.mxu0 0.0
    %554 = vmatpush.msra.mxu0 0.0
    %555 = vmatpush.msra.mxu0 0.0
    %556 = vmatpush.msra.mxu0 0.0
    %557 = vmatpush.msra.mxu0 0.0
    %558 = vmatpush.msra.mxu0 0.0
    %559 = vmatpush.msra.mxu0 0.0
    %560 = vmatpush.msra.mxu0 0.0
    %561 = vmatpush.msra.mxu0 0.0
    %562 = vmatpush.msra.mxu0 %v111
    %563 = vmatpush.msra.mxu0 %v110
    %564 = vmatmul.f32.gmra.mxu0 %v372
    %v565 = vpop.f32.mrf.mxu0
    %v566 = vadd.f32 0.0, %v565
    %567 = vdwg.mxu0
    %v568 = vadd.f32 %v547, %v566
    %v569 = vmul.f32 %v568, 0.5
    %v570 = vtanh.pop %v569
    %v571 = vadd.f32 %v570, 1.0
    %v572 = vmul.f32 %v571, 0.5
    %v573 = vtanh.pop %v568
    %v574 = vmul.f32 %v572, %v362
    %576 = vrot.lane.b32.xlu0 %v573, 80
    %v577 = vpop.permute.xlu0 %576
    %v579 = vmul.f32 %v572, %v577
    %581 = vrot.lane.b32.xlu0 %v579, 16
    %v582 = vpop.permute.xlu0 %581
    %v584 = vadd.f32 %v574, %v582
    %v585 = vtanh.pop %v584
    %587 = vrot.lane.b32.xlu0 %v585, 16
    %v588 = vpop.permute.xlu0 %587
    %v590 = vmul.f32 %v572, %v588
    %592 = vrot.lane.b32.xlu0 %v590, 96
    %v593 = vpop.permute.xlu0 %592
    %v594 = vsel %vm163, %v593, 0
    %596 = vmatpush.msra.mxu0 0.0
    %597 = vmatpush.msra.mxu0 0.0
    %598 = vmatpush.msra.mxu0 0.0
    %599 = vmatpush.msra.mxu0 0.0
    %600 = vmatpush.msra.mxu0 0.0
    %601 = vmatpush.msra.mxu0 0.0
    %602 = vmatpush.msra.mxu0 0.0
    %603 = vmatpush.msra.mxu0 0.0
    %604 = vmatpush.msra.mxu0 0.0
    %605 = vmatpush.msra.mxu0 0.0
    %606 = vmatpush.msra.mxu0 0.0
    %607 = vmatpush.msra.mxu0 0.0
    %608 = vmatpush.msra.mxu0 0.0
    %609 = vmatpush.msra.mxu0 0.0
    %610 = vmatpush.msra.mxu0 %v113
    %611 = vmatpush.msra.mxu0 %v112
    %612 = vmatmul.f32.gmra.mxu0 %v594
    %v613 = vpop.f32.mrf.mxu0
    %v614 = vadd.f32 %v116, %v613
    %615 = vdwg.mxu0
    %s616 = scalar_lea.vmem %s3, 2
    %v617 = vld [vmem:[%s616] sm:$0x3]
    %v618 = vadd.f32 %v614, %v617
    %v619 = vsel %vm187, %v618, -inf
    %620 = vmax.xlane.f32.xlu0 %v619
    %v621 = vpop.xlane.xlu0 %620
    %v622 = vsub.f32 %v618, %v621
    %v623 = vmul.f32 %v622, 1.442695
    %v624 = vpow.pop %v623
    %v625 = vsel %vm187, %v624, 0.0
    %626 = vadd.xlane.f32.xlu0 %v625
    %v627 = vpop.xlane.xlu0 %626
    %v628 = vrcp.pop %v627
    %v629 = vmul.f32 %v627, %v628
    %v630 = vsub.f32 1.0, %v629
    %v631 = vmul.f32 %v628, %v630
    %v632 = vadd.f32 %v628, %v631
    %vm633 = vweird.f32 %v627
    %vm634 = vweird.f32 %v628
    %vm635 = vmor %vm633, %vm634
    %v636 = vsel %vm635, %v628, %v632
    %v637 = vand.u32 2147483647, %v627
    %vm638 = vcmp.eq.f32.partialorder %v637, 8.507059e+37
    %v639 = vand.u32 %v627, 2147483648
    %v640 = vor.u32 1.1754944e-38, %v639
    %v641 = vsel %vm638, %v640, %v636
    %v642 = vmul.f32 %v624, %v641
    %s643 = scalar_lea.vmem %s13, 2
    %644 = vst.msk [vmem:[%s643] sm:$0x3] %vm187, %v642
    %v645 = vsel %vm187, %v614, -inf
    %646 = vmax.xlane.f32.xlu0 %v645
    %v647 = vpop.xlane.xlu0 %646
    %v648 = vsub.f32 %v614, %v647
    %v649 = vmul.f32 %v648, 1.442695
    %v650 = vpow.pop %v649
    %v651 = vsel %vm187, %v650, 0.0
    %652 = vadd.xlane.f32.xlu0 %v651
    %v653 = vpop.xlane.xlu0 %652
    %v654 = vrcp.pop %v653
    %v655 = vmul.f32 %v653, %v654
    %v656 = vsub.f32 1.0, %v655
    %v657 = vmul.f32 %v654, %v656
    %v658 = vadd.f32 %v654, %v657
    %vm659 = vweird.f32 %v653
    %vm660 = vweird.f32 %v654
    %vm661 = vmor %vm659, %vm660
    %v662 = vsel %vm661, %v654, %v658
    %v663 = vand.u32 2147483647, %v653
    %vm664 = vcmp.eq.f32.partialorder %v663, 8.507059e+37
    %v665 = vand.u32 %v653, 2147483648
    %v666 = vor.u32 1.1754944e-38, %v665
    %v667 = vsel %vm664, %v666, %v662
    %v668 = vmul.f32 %v650, %v667
    %v670 = vsel %vm218, %v668, 0
    %672 = vmatpush.msra.mxu0 0.0
    %673 = vmatpush.msra.mxu0 0.0
    %674 = vmatpush.msra.mxu0 0.0
    %675 = vmatpush.msra.mxu0 0.0
    %676 = vmatpush.msra.mxu0 0.0
    %677 = vmatpush.msra.mxu0 0.0
    %678 = vmatpush.msra.mxu0 0.0
    %679 = vmatpush.msra.mxu0 0.0
    %680 = vmatpush.msra.mxu0 0.0
    %681 = vmatpush.msra.mxu0 0.0
    %682 = vmatpush.msra.mxu0 0.0
    %683 = vmatpush.msra.mxu0 0.0
    %684 = vmatpush.msra.mxu0 0.0
    %685 = vmatpush.msra.mxu0 0.0
    %686 = vmatpush.msra.mxu0 0.0
    %687 = vmatpush.msra.mxu0 %v105
    %688 = vmatmul.f32.gmra.mxu0 %v670
    %v689 = vpop.f32.mrf.mxu0
    %v690 = vadd.f32 0.0, %v689
    %691 = vdwg.mxu0
    %v693 = vrot.slane %v690, 4
    %v695 = vadd.f32 %v157, %v693
    %696 = vmatpush.msra.mxu0 0.0
    %697 = vmatpush.msra.mxu0 0.0
    %698 = vmatpush.msra.mxu0 0.0
    %699 = vmatpush.msra.mxu0 0.0
    %700 = vmatpush.msra.mxu0 0.0
    %701 = vmatpush.msra.mxu0 0.0
    %702 = vmatpush.msra.mxu0 0.0
    %703 = vmatpush.msra.mxu0 0.0
    %704 = vmatpush.msra.mxu0 0.0
    %705 = vmatpush.msra.mxu0 0.0
    %706 = vmatpush.msra.mxu0 0.0
    %707 = vmatpush.msra.mxu0 0.0
    %708 = vmatpush.msra.mxu0 0.0
    %709 = vmatpush.msra.mxu0 0.0
    %710 = vmatpush.msra.mxu0 %v107
    %711 = vmatpush.msra.mxu0 %v106
    %712 = vmatmul.f32.gmra.mxu0 %v525
    %v713 = vpop.f32.mrf.mxu0
    %v714 = vadd.f32 0.0, %v713
    %715 = vdwg.mxu0
    %v717 = vrot.slane %v714, 4
    %v719 = vadd.f32 %v695, %v717
    %v720 = vmul.f32 %v719, 0.5
    %v721 = vtanh.pop %v720
    %v722 = vadd.f32 %v721, 1.0
    %v723 = vmul.f32 %v722, 0.5
    %v724 = vtanh.pop %v719
    %v726 = vrot.slane %v514, 6
    %v728 = vmul.f32 %v723, %v726
    %730 = vrot.lane.b32.xlu0 %v724, 80
    %v731 = vpop.permute.xlu0 %730
    %v733 = vmul.f32 %v723, %v731
    %735 = vrot.lane.b32.xlu0 %v733, 16
    %v736 = vpop.permute.xlu0 %735
    %v738 = vadd.f32 %v728, %v736
    %v739 = vtanh.pop %v738
    %741 = vrot.lane.b32.xlu0 %v739, 16
    %v742 = vpop.permute.xlu0 %741
    %v744 = vmul.f32 %v723, %v742
    %v746 = vrot.slane %v744, 4
    %747 = vrot.lane.b32.xlu0 %v746, 96
    %v748 = vpop.permute.xlu0 %747
    %v749 = vsel %vm163, %v748, 0
    %751 = vmatpush.msra.mxu0 0.0
    %752 = vmatpush.msra.mxu0 0.0
    %753 = vmatpush.msra.mxu0 0.0
    %754 = vmatpush.msra.mxu0 0.0
    %755 = vmatpush.msra.mxu0 0.0
    %756 = vmatpush.msra.mxu0 0.0
    %757 = vmatpush.msra.mxu0 0.0
    %758 = vmatpush.msra.mxu0 0.0
    %759 = vmatpush.msra.mxu0 0.0
    %760 = vmatpush.msra.mxu0 0.0
    %761 = vmatpush.msra.mxu0 0.0
    %762 = vmatpush.msra.mxu0 0.0
    %763 = vmatpush.msra.mxu0 0.0
    %764 = vmatpush.msra.mxu0 0.0
    %765 = vmatpush.msra.mxu0 %v109
    %766 = vmatpush.msra.mxu0 %v108
    %767 = vmatmul.f32.gmra.mxu0 %v749
    %v768 = vpop.f32.mrf.mxu0
    %v769 = vadd.f32 0.0, %v768
    %770 = vdwg.mxu0
    %v771 = vadd.f32 %v120, %v769
    %772 = vmatpush.msra.mxu0 0.0
    %773 = vmatpush.msra.mxu0 0.0
    %774 = vmatpush.msra.mxu0 0.0
    %775 = vmatpush.msra.mxu0 0.0
    %776 = vmatpush.msra.mxu0 0.0
    %777 = vmatpush.msra.mxu0 0.0
    %778 = vmatpush.msra.mxu0 0.0
    %779 = vmatpush.msra.mxu0 0.0
    %780 = vmatpush.msra.mxu0 0.0
    %781 = vmatpush.msra.mxu0 0.0
    %782 = vmatpush.msra.mxu0 0.0
    %783 = vmatpush.msra.mxu0 0.0
    %784 = vmatpush.msra.mxu0 0.0
    %785 = vmatpush.msra.mxu0 0.0
    %786 = vmatpush.msra.mxu0 %v111
    %787 = vmatpush.msra.mxu0 %v110
    %788 = vmatmul.f32.gmra.mxu0 %v594
    %v789 = vpop.f32.mrf.mxu0
    %v790 = vadd.f32 0.0, %v789
    %791 = vdwg.mxu0
    %v792 = vadd.f32 %v771, %v790
    %v793 = vmul.f32 %v792, 0.5
    %v794 = vtanh.pop %v793
    %v795 = vadd.f32 %v794, 1.0
    %v796 = vmul.f32 %v795, 0.5
    %v797 = vtanh.pop %v792
    %v798 = vmul.f32 %v796, %v584
    %800 = vrot.lane.b32.xlu0 %v797, 80
    %v801 = vpop.permute.xlu0 %800
    %v803 = vmul.f32 %v796, %v801
    %805 = vrot.lane.b32.xlu0 %v803, 16
    %v806 = vpop.permute.xlu0 %805
    %v808 = vadd.f32 %v798, %v806
    %v809 = vtanh.pop %v808
    %811 = vrot.lane.b32.xlu0 %v809, 16
    %v812 = vpop.permute.xlu0 %811
    %v814 = vmul.f32 %v796, %v812
    %816 = vrot.lane.b32.xlu0 %v814, 96
    %v817 = vpop.permute.xlu0 %816
    %v818 = vsel %vm163, %v817, 0
    %820 = vmatpush.msra.mxu0 0.0
    %821 = vmatpush.msra.mxu0 0.0
    %822 = vmatpush.msra.mxu0 0.0
    %823 = vmatpush.msra.mxu0 0.0
    %824 = vmatpush.msra.mxu0 0.0
    %825 = vmatpush.msra.mxu0 0.0
    %826 = vmatpush.msra.mxu0 0.0
    %827 = vmatpush.msra.mxu0 0.0
    %828 = vmatpush.msra.mxu0 0.0
    %829 = vmatpush.msra.mxu0 0.0
    %830 = vmatpush.msra.mxu0 0.0
    %831 = vmatpush.msra.mxu0 0.0
    %832 = vmatpush.msra.mxu0 0.0
    %833 = vmatpush.msra.mxu0 0.0
    %834 = vmatpush.msra.mxu0 %v113
    %835 = vmatpush.msra.mxu0 %v112
    %836 = vmatmul.f32.gmra.mxu0 %v818
    %v837 = vpop.f32.mrf.mxu0
    %v838 = vadd.f32 %v116, %v837
    %839 = vdwg.mxu0
    %s840 = scalar_lea.vmem %s3, 4
    %v841 = vld [vmem:[%s840] sm:$0x3]
    %v842 = vadd.f32 %v838, %v841
    %v843 = vsel %vm187, %v842, -inf
    %844 = vmax.xlane.f32.xlu0 %v843
    %v845 = vpop.xlane.xlu0 %844
    %v846 = vsub.f32 %v842, %v845
    %v847 = vmul.f32 %v846, 1.442695
    %v848 = vpow.pop %v847
    %v849 = vsel %vm187, %v848, 0.0
    %850 = vadd.xlane.f32.xlu0 %v849
    %v851 = vpop.xlane.xlu0 %850
    %v852 = vrcp.pop %v851
    %v853 = vmul.f32 %v851, %v852
    %v854 = vsub.f32 1.0, %v853
    %v855 = vmul.f32 %v852, %v854
    %v856 = vadd.f32 %v852, %v855
    %vm857 = vweird.f32 %v851
    %vm858 = vweird.f32 %v852
    %vm859 = vmor %vm857, %vm858
    %v860 = vsel %vm859, %v852, %v856
    %v861 = vand.u32 2147483647, %v851
    %vm862 = vcmp.eq.f32.partialorder %v861, 8.507059e+37
    %v863 = vand.u32 %v851, 2147483648
    %v864 = vor.u32 1.1754944e-38, %v863
    %v865 = vsel %vm862, %v864, %v860
    %v866 = vmul.f32 %v848, %v865
    %s867 = scalar_lea.vmem %s13, 4
    %868 = vst.msk [vmem:[%s867] sm:$0x3] %vm187, %v866
    %v869 = vsel %vm187, %v838, -inf
    %870 = vmax.xlane.f32.xlu0 %v869
    %v871 = vpop.xlane.xlu0 %870
    %v872 = vsub.f32 %v838, %v871
    %v873 = vmul.f32 %v872, 1.442695
    %v874 = vpow.pop %v873
    %v875 = vsel %vm187, %v874, 0.0
    %876 = vadd.xlane.f32.xlu0 %v875
    %v877 = vpop.xlane.xlu0 %876
    %v878 = vrcp.pop %v877
    %v879 = vmul.f32 %v877, %v878
    %v880 = vsub.f32 1.0, %v879
    %v881 = vmul.f32 %v878, %v880
    %v882 = vadd.f32 %v878, %v881
    %vm883 = vweird.f32 %v877
    %vm884 = vweird.f32 %v878
    %vm885 = vmor %vm883, %vm884
    %v886 = vsel %vm885, %v878, %v882
    %v887 = vand.u32 2147483647, %v877
    %vm888 = vcmp.eq.f32.partialorder %v887, 8.507059e+37
    %v889 = vand.u32 %v877, 2147483648
    %v890 = vor.u32 1.1754944e-38, %v889
    %v891 = vsel %vm888, %v890, %v886
    %v892 = vmul.f32 %v874, %v891
    %v894 = vsel %vm218, %v892, 0
    %896 = vmatpush.msra.mxu0 0.0
    %897 = vmatpush.msra.mxu0 0.0
    %898 = vmatpush.msra.mxu0 0.0
    %899 = vmatpush.msra.mxu0 0.0
    %900 = vmatpush.msra.mxu0 0.0
    %901 = vmatpush.msra.mxu0 0.0
    %902 = vmatpush.msra.mxu0 0.0
    %903 = vmatpush.msra.mxu0 0.0
    %904 = vmatpush.msra.mxu0 0.0
    %905 = vmatpush.msra.mxu0 0.0
    %906 = vmatpush.msra.mxu0 0.0
    %907 = vmatpush.msra.mxu0 0.0
    %908 = vmatpush.msra.mxu0 0.0
    %909 = vmatpush.msra.mxu0 0.0
    %910 = vmatpush.msra.mxu0 0.0
    %911 = vmatpush.msra.mxu0 %v105
    %912 = vmatmul.f32.gmra.mxu0 %v894
    %v913 = vpop.f32.mrf.mxu0
    %v914 = vadd.f32 0.0, %v913
    %915 = vdwg.mxu0
    %v917 = vrot.slane %v914, 2
    %v919 = vadd.f32 %v157, %v917
    %920 = vmatpush.msra.mxu0 0.0
    %921 = vmatpush.msra.mxu0 0.0
    %922 = vmatpush.msra.mxu0 0.0
    %923 = vmatpush.msra.mxu0 0.0
    %924 = vmatpush.msra.mxu0 0.0
    %925 = vmatpush.msra.mxu0 0.0
    %926 = vmatpush.msra.mxu0 0.0
    %927 = vmatpush.msra.mxu0 0.0
    %928 = vmatpush.msra.mxu0 0.0
    %929 = vmatpush.msra.mxu0 0.0
    %930 = vmatpush.msra.mxu0 0.0
    %931 = vmatpush.msra.mxu0 0.0
    %932 = vmatpush.msra.mxu0 0.0
    %933 = vmatpush.msra.mxu0 0.0
    %934 = vmatpush.msra.mxu0 %v107
    %935 = vmatpush.msra.mxu0 %v106
    %936 = vmatmul.f32.gmra.mxu0 %v749
    %v937 = vpop.f32.mrf.mxu0
    %v938 = vadd.f32 0.0, %v937
    %939 = vdwg.mxu0
    %v941 = vrot.slane %v938, 2
    %v943 = vadd.f32 %v919, %v941
    %v944 = vmul.f32 %v943, 0.5
    %v945 = vtanh.pop %v944
    %v946 = vadd.f32 %v945, 1.0
    %v947 = vmul.f32 %v946, 0.5
    %v948 = vtanh.pop %v943
    %v950 = vrot.slane %v738, 6
    %v952 = vmul.f32 %v947, %v950
    %954 = vrot.lane.b32.xlu0 %v948, 80
    %v955 = vpop.permute.xlu0 %954
    %v957 = vmul.f32 %v947, %v955
    %959 = vrot.lane.b32.xlu0 %v957, 16
    %v960 = vpop.permute.xlu0 %959
    %v962 = vadd.f32 %v952, %v960
    %v963 = vtanh.pop %v962
    %965 = vrot.lane.b32.xlu0 %v963, 16
    %v966 = vpop.permute.xlu0 %965
    %v968 = vmul.f32 %v947, %v966
    %v970 = vrot.slane %v968, 6
    %971 = vrot.lane.b32.xlu0 %v970, 96
    %v972 = vpop.permute.xlu0 %971
    %v973 = vsel %vm163, %v972, 0
    %975 = vmatpush.msra.mxu0 0.0
    %976 = vmatpush.msra.mxu0 0.0
    %977 = vmatpush.msra.mxu0 0.0
    %978 = vmatpush.msra.mxu0 0.0
    %979 = vmatpush.msra.mxu0 0.0
    %980 = vmatpush.msra.mxu0 0.0
    %981 = vmatpush.msra.mxu0 0.0
    %982 = vmatpush.msra.mxu0 0.0
    %983 = vmatpush.msra.mxu0 0.0
    %984 = vmatpush.msra.mxu0 0.0
    %985 = vmatpush.msra.mxu0 0.0
    %986 = vmatpush.msra.mxu0 0.0
    %987 = vmatpush.msra.mxu0 0.0
    %988 = vmatpush.msra.mxu0 0.0
    %989 = vmatpush.msra.mxu0 %v109
    %990 = vmatpush.msra.mxu0 %v108
    %991 = vmatmul.f32.gmra.mxu0 %v973
    %v992 = vpop.f32.mrf.mxu0
    %v993 = vadd.f32 0.0, %v992
    %994 = vdwg.mxu0
    %v995 = vadd.f32 %v120, %v993
    %996 = vmatpush.msra.mxu0 0.0
    %997 = vmatpush.msra.mxu0 0.0
    %998 = vmatpush.msra.mxu0 0.0
    %999 = vmatpush.msra.mxu0 0.0
    %1000 = vmatpush.msra.mxu0 0.0
    %1001 = vmatpush.msra.mxu0 0.0
    %1002 = vmatpush.msra.mxu0 0.0
    %1003 = vmatpush.msra.mxu0 0.0
    %1004 = vmatpush.msra.mxu0 0.0
    %1005 = vmatpush.msra.mxu0 0.0
    %1006 = vmatpush.msra.mxu0 0.0
    %1007 = vmatpush.msra.mxu0 0.0
    %1008 = vmatpush.msra.mxu0 0.0
    %1009 = vmatpush.msra.mxu0 0.0
    %1010 = vmatpush.msra.mxu0 %v111
    %1011 = vmatpush.msra.mxu0 %v110
    %1012 = vmatmul.f32.gmra.mxu0 %v818
    %v1013 = vpop.f32.mrf.mxu0
    %v1014 = vadd.f32 0.0, %v1013
    %1015 = vdwg.mxu0
    %v1016 = vadd.f32 %v995, %v1014
    %v1017 = vmul.f32 %v1016, 0.5
    %v1018 = vtanh.pop %v1017
    %v1019 = vadd.f32 %v1018, 1.0
    %v1020 = vmul.f32 %v1019, 0.5
    %v1021 = vtanh.pop %v1016
    %v1022 = vmul.f32 %v1020, %v808
    %1024 = vrot.lane.b32.xlu0 %v1021, 80
    %v1025 = vpop.permute.xlu0 %1024
    %v1027 = vmul.f32 %v1020, %v1025
    %1029 = vrot.lane.b32.xlu0 %v1027, 16
    %v1030 = vpop.permute.xlu0 %1029
    %v1032 = vadd.f32 %v1022, %v1030
    %v1033 = vtanh.pop %v1032
    %1035 = vrot.lane.b32.xlu0 %v1033, 16
    %v1036 = vpop.permute.xlu0 %1035
    %v1038 = vmul.f32 %v1020, %v1036
    %1040 = vrot.lane.b32.xlu0 %v1038, 96
    %v1041 = vpop.permute.xlu0 %1040
    %v1042 = vsel %vm163, %v1041, 0
    %1044 = vmatpush.msra.mxu0 0.0
    %1045 = vmatpush.msra.mxu0 0.0
    %1046 = vmatpush.msra.mxu0 0.0
    %1047 = vmatpush.msra.mxu0 0.0
    %1048 = vmatpush.msra.mxu0 0.0
    %1049 = vmatpush.msra.mxu0 0.0
    %1050 = vmatpush.msra.mxu0 0.0
    %1051 = vmatpush.msra.mxu0 0.0
    %1052 = vmatpush.msra.mxu0 0.0
    %1053 = vmatpush.msra.mxu0 0.0
    %1054 = vmatpush.msra.mxu0 0.0
    %1055 = vmatpush.msra.mxu0 0.0
    %1056 = vmatpush.msra.mxu0 0.0
    %1057 = vmatpush.msra.mxu0 0.0
    %1058 = vmatpush.msra.mxu0 %v113
    %1059 = vmatpush.msra.mxu0 %v112
    %1060 = vmatmul.f32.gmra.mxu0 %v1042
    %v1061 = vpop.f32.mrf.mxu0
    %v1062 = vadd.f32 %v116, %v1061
    %1063 = vdwg.mxu0
    %s1064 = scalar_lea.vmem %s3, 6
    %v1065 = vld [vmem:[%s1064] sm:$0x3]
    %v1066 = vadd.f32 %v1062, %v1065
    %v1067 = vsel %vm187, %v1066, -inf
    %1068 = vmax.xlane.f32.xlu0 %v1067
    %v1069 = vpop.xlane.xlu0 %1068
    %v1070 = vsub.f32 %v1066, %v1069
    %v1071 = vmul.f32 %v1070, 1.442695
    %v1072 = vpow.pop %v1071
    %v1073 = vsel %vm187, %v1072, 0.0
    %1074 = vadd.xlane.f32.xlu0 %v1073
    %v1075 = vpop.xlane.xlu0 %1074
    %v1076 = vrcp.pop %v1075
    %v1077 = vmul.f32 %v1075, %v1076
    %v1078 = vsub.f32 1.0, %v1077
    %v1079 = vmul.f32 %v1076, %v1078
    %v1080 = vadd.f32 %v1076, %v1079
    %vm1081 = vweird.f32 %v1075
    %vm1082 = vweird.f32 %v1076
    %vm1083 = vmor %vm1081, %vm1082
    %v1084 = vsel %vm1083, %v1076, %v1080
    %v1085 = vand.u32 2147483647, %v1075
    %vm1086 = vcmp.eq.f32.partialorder %v1085, 8.507059e+37
    %v1087 = vand.u32 %v1075, 2147483648
    %v1088 = vor.u32 1.1754944e-38, %v1087
    %v1089 = vsel %vm1086, %v1088, %v1084
    %v1090 = vmul.f32 %v1072, %v1089
    %s1091 = scalar_lea.vmem %s13, 6
    %1092 = vst.msk [vmem:[%s1091] sm:$0x3] %vm187, %v1090
    %v1093 = vsel %vm187, %v1062, -inf
    %1094 = vmax.xlane.f32.xlu0 %v1093
    %v1095 = vpop.xlane.xlu0 %1094
    %v1096 = vsub.f32 %v1062, %v1095
    %v1097 = vmul.f32 %v1096, 1.442695
    %v1098 = vpow.pop %v1097
    %v1099 = vsel %vm187, %v1098, 0.0
    %1100 = vadd.xlane.f32.xlu0 %v1099
    %v1101 = vpop.xlane.xlu0 %1100
    %v1102 = vrcp.pop %v1101
    %v1103 = vmul.f32 %v1101, %v1102
    %v1104 = vsub.f32 1.0, %v1103
    %v1105 = vmul.f32 %v1102, %v1104
    %v1106 = vadd.f32 %v1102, %v1105
    %vm1107 = vweird.f32 %v1101
    %vm1108 = vweird.f32 %v1102
    %vm1109 = vmor %vm1107, %vm1108
    %v1110 = vsel %vm1109, %v1102, %v1106
    %v1111 = vand.u32 2147483647, %v1101
    %vm1112 = vcmp.eq.f32.partialorder %v1111, 8.507059e+37
    %v1113 = vand.u32 %v1101, 2147483648
    %v1114 = vor.u32 1.1754944e-38, %v1113
    %v1115 = vsel %vm1112, %v1114, %v1110
    %v1116 = vmul.f32 %v1098, %v1115
    %v1118 = vsel %vm218, %v1116, 0
    %1120 = vmatpush.msra.mxu0 0.0
    %1121 = vmatpush.msra.mxu0 0.0
    %1122 = vmatpush.msra.mxu0 0.0
    %1123 = vmatpush.msra.mxu0 0.0
    %1124 = vmatpush.msra.mxu0 0.0
    %1125 = vmatpush.msra.mxu0 0.0
    %1126 = vmatpush.msra.mxu0 0.0
    %1127 = vmatpush.msra.mxu0 0.0
    %1128 = vmatpush.msra.mxu0 0.0
    %1129 = vmatpush.msra.mxu0 0.0
    %1130 = vmatpush.msra.mxu0 0.0
    %1131 = vmatpush.msra.mxu0 0.0
    %1132 = vmatpush.msra.mxu0 0.0
    %1133 = vmatpush.msra.mxu0 0.0
    %1134 = vmatpush.msra.mxu0 0.0
    %1135 = vmatpush.msra.mxu0 %v105
    %1136 = vmatmul.f32.gmra.mxu0 %v1118
    %v1137 = vpop.f32.mrf.mxu0
    %v1138 = vadd.f32 0.0, %v1137
    %1139 = vdwg.mxu0
    %v1140 = vadd.f32 %v160, %v1138
    %1141 = vmatpush.msra.mxu0 0.0
    %1142 = vmatpush.msra.mxu0 0.0
    %1143 = vmatpush.msra.mxu0 0.0
    %1144 = vmatpush.msra.mxu0 0.0
    %1145 = vmatpush.msra.mxu0 0.0
    %1146 = vmatpush.msra.mxu0 0.0
    %1147 = vmatpush.msra.mxu0 0.0
    %1148 = vmatpush.msra.mxu0 0.0
    %1149 = vmatpush.msra.mxu0 0.0
    %1150 = vmatpush.msra.mxu0 0.0
    %1151 = vmatpush.msra.mxu0 0.0
    %1152 = vmatpush.msra.mxu0 0.0
    %1153 = vmatpush.msra.mxu0 0.0
    %1154 = vmatpush.msra.mxu0 0.0
    %1155 = vmatpush.msra.mxu0 %v107
    %1156 = vmatpush.msra.mxu0 %v106
    %1157 = vmatmul.f32.gmra.mxu0 %v973
    %v1158 = vpop.f32.mrf.mxu0
    %v1159 = vadd.f32 0.0, %v1158
    %1160 = vdwg.mxu0
    %v1161 = vadd.f32 %v1140, %v1159
    %v1162 = vmul.f32 %v1161, 0.5
    %v1163 = vtanh.pop %v1162
    %v1164 = vadd.f32 %v1163, 1.0
    %v1165 = vmul.f32 %v1164, 0.5
    %v1166 = vtanh.pop %v1161
    %v1168 = vrot.slane %v962, 6
    %v1170 = vmul.f32 %v1165, %v1168
    %1172 = vrot.lane.b32.xlu0 %v1166, 80
    %v1173 = vpop.permute.xlu0 %1172
    %v1175 = vmul.f32 %v1165, %v1173
    %1177 = vrot.lane.b32.xlu0 %v1175, 16
    %v1178 = vpop.permute.xlu0 %1177
    %v1180 = vadd.f32 %v1170, %v1178
    %v1181 = vtanh.pop %v1180
    %1183 = vrot.lane.b32.xlu0 %v1181, 16
    %v1184 = vpop.permute.xlu0 %1183
    %v1186 = vmul.f32 %v1165, %v1184
    %1188 = vrot.lane.b32.xlu0 %v1186, 96
    %v1189 = vpop.permute.xlu0 %1188
    %v1190 = vsel %vm163, %v1189, 0
    %1192 = vmatpush.msra.mxu0 0.0
    %1193 = vmatpush.msra.mxu0 0.0
    %1194 = vmatpush.msra.mxu0 0.0
    %1195 = vmatpush.msra.mxu0 0.0
    %1196 = vmatpush.msra.mxu0 0.0
    %1197 = vmatpush.msra.mxu0 0.0
    %1198 = vmatpush.msra.mxu0 0.0
    %1199 = vmatpush.msra.mxu0 0.0
    %1200 = vmatpush.msra.mxu0 0.0
    %1201 = vmatpush.msra.mxu0 0.0
    %1202 = vmatpush.msra.mxu0 0.0
    %1203 = vmatpush.msra.mxu0 0.0
    %1204 = vmatpush.msra.mxu0 0.0
    %1205 = vmatpush.msra.mxu0 0.0
    %1206 = vmatpush.msra.mxu0 %v109
    %1207 = vmatpush.msra.mxu0 %v108
    %1208 = vmatmul.f32.gmra.mxu0 %v1190
    %v1209 = vpop.f32.mrf.mxu0
    %v1210 = vadd.f32 0.0, %v1209
    %1211 = vdwg.mxu0
    %v1212 = vadd.f32 %v120, %v1210
    %1213 = vmatpush.msra.mxu0 0.0
    %1214 = vmatpush.msra.mxu0 0.0
    %1215 = vmatpush.msra.mxu0 0.0
    %1216 = vmatpush.msra.mxu0 0.0
    %1217 = vmatpush.msra.mxu0 0.0
    %1218 = vmatpush.msra.mxu0 0.0
    %1219 = vmatpush.msra.mxu0 0.0
    %1220 = vmatpush.msra.mxu0 0.0
    %1221 = vmatpush.msra.mxu0 0.0
    %1222 = vmatpush.msra.mxu0 0.0
    %1223 = vmatpush.msra.mxu0 0.0
    %1224 = vmatpush.msra.mxu0 0.0
    %1225 = vmatpush.msra.mxu0 0.0
    %1226 = vmatpush.msra.mxu0 0.0
    %1227 = vmatpush.msra.mxu0 %v111
    %1228 = vmatpush.msra.mxu0 %v110
    %1229 = vmatmul.f32.gmra.mxu0 %v1042
    %v1230 = vpop.f32.mrf.mxu0
    %v1231 = vadd.f32 0.0, %v1230
    %1232 = vdwg.mxu0
    %v1233 = vadd.f32 %v1212, %v1231
    %v1234 = vmul.f32 %v1233, 0.5
    %v1235 = vtanh.pop %v1234
    %v1236 = vadd.f32 %v1235, 1.0
    %v1237 = vmul.f32 %v1236, 0.5
    %v1238 = vtanh.pop %v1233
    %v1239 = vmul.f32 %v1237, %v1032
    %1241 = vrot.lane.b32.xlu0 %v1238, 80
    %v1242 = vpop.permute.xlu0 %1241
    %v1244 = vmul.f32 %v1237, %v1242
    %1246 = vrot.lane.b32.xlu0 %v1244, 16
    %v1247 = vpop.permute.xlu0 %1246
    %v1249 = vadd.f32 %v1239, %v1247
    %v1250 = vtanh.pop %v1249
    %1252 = vrot.lane.b32.xlu0 %v1250, 16
    %v1253 = vpop.permute.xlu0 %1252
    %v1255 = vmul.f32 %v1237, %v1253
    %1257 = vrot.lane.b32.xlu0 %v1255, 96
    %v1258 = vpop.permute.xlu0 %1257
    %v1259 = vsel %vm163, %v1258, 0
    %1261 = vmatpush.msra.mxu0 0.0
    %1262 = vmatpush.msra.mxu0 0.0
    %1263 = vmatpush.msra.mxu0 0.0
    %1264 = vmatpush.msra.mxu0 0.0
    %1265 = vmatpush.msra.mxu0 0.0
    %1266 = vmatpush.msra.mxu0 0.0
    %1267 = vmatpush.msra.mxu0 0.0
    %1268 = vmatpush.msra.mxu0 0.0
    %1269 = vmatpush.msra.mxu0 0.0
    %1270 = vmatpush.msra.mxu0 0.0
    %1271 = vmatpush.msra.mxu0 0.0
    %1272 = vmatpush.msra.mxu0 0.0
    %1273 = vmatpush.msra.mxu0 0.0
    %1274 = vmatpush.msra.mxu0 0.0
    %1275 = vmatpush.msra.mxu0 %v113
    %1276 = vmatpush.msra.mxu0 %v112
    %1277 = vmatmul.f32.gmra.mxu0 %v1259
    %v1278 = vpop.f32.mrf.mxu0
    %v1279 = vadd.f32 %v116, %v1278
    %1280 = vdwg.mxu0
    %s1281 = scalar_lea.vmem %s3, 8
    %v1282 = vld [vmem:[%s1281] sm:$0x3]
    %v1283 = vadd.f32 %v1279, %v1282
    %v1284 = vsel %vm187, %v1283, -inf
    %1285 = vmax.xlane.f32.xlu0 %v1284
    %v1286 = vpop.xlane.xlu0 %1285
    %v1287 = vsub.f32 %v1283, %v1286
    %v1288 = vmul.f32 %v1287, 1.442695
    %v1289 = vpow.pop %v1288
    %v1290 = vsel %vm187, %v1289, 0.0
    %1291 = vadd.xlane.f32.xlu0 %v1290
    %v1292 = vpop.xlane.xlu0 %1291
    %v1293 = vrcp.pop %v1292
    %v1294 = vmul.f32 %v1292, %v1293
    %v1295 = vsub.f32 1.0, %v1294
    %v1296 = vmul.f32 %v1293, %v1295
    %v1297 = vadd.f32 %v1293, %v1296
    %vm1298 = vweird.f32 %v1292
    %vm1299 = vweird.f32 %v1293
    %vm1300 = vmor %vm1298, %vm1299
    %v1301 = vsel %vm1300, %v1293, %v1297
    %v1302 = vand.u32 2147483647, %v1292
    %vm1303 = vcmp.eq.f32.partialorder %v1302, 8.507059e+37
    %v1304 = vand.u32 %v1292, 2147483648
    %v1305 = vor.u32 1.1754944e-38, %v1304
    %v1306 = vsel %vm1303, %v1305, %v1301
    %v1307 = vmul.f32 %v1289, %v1306
    %s1308 = scalar_lea.vmem %s13, 8
    %1309 = vst.msk [vmem:[%s1308] sm:$0x3] %vm187, %v1307
    %v1310 = vsel %vm187, %v1279, -inf
    %1311 = vmax.xlane.f32.xlu0 %v1310
    %v1312 = vpop.xlane.xlu0 %1311
    %v1313 = vsub.f32 %v1279, %v1312
    %v1314 = vmul.f32 %v1313, 1.442695
    %v1315 = vpow.pop %v1314
    %v1316 = vsel %vm187, %v1315, 0.0
    %1317 = vadd.xlane.f32.xlu0 %v1316
    %v1318 = vpop.xlane.xlu0 %1317
    %v1319 = vrcp.pop %v1318
    %v1320 = vmul.f32 %v1318, %v1319
    %v1321 = vsub.f32 1.0, %v1320
    %v1322 = vmul.f32 %v1319, %v1321
    %v1323 = vadd.f32 %v1319, %v1322
    %vm1324 = vweird.f32 %v1318
    %vm1325 = vweird.f32 %v1319
    %vm1326 = vmor %vm1324, %vm1325
    %v1327 = vsel %vm1326, %v1319, %v1323
    %v1328 = vand.u32 2147483647, %v1318
    %vm1329 = vcmp.eq.f32.partialorder %v1328, 8.507059e+37
    %v1330 = vand.u32 %v1318, 2147483648
    %v1331 = vor.u32 1.1754944e-38, %v1330
    %v1332 = vsel %vm1329, %v1331, %v1327
    %v1333 = vmul.f32 %v1315, %v1332
    %v1335 = vsel %vm218, %v1333, 0
    %1337 = vmatpush.msra.mxu0 0.0
    %1338 = vmatpush.msra.mxu0 0.0
    %1339 = vmatpush.msra.mxu0 0.0
    %1340 = vmatpush.msra.mxu0 0.0
    %1341 = vmatpush.msra.mxu0 0.0
    %1342 = vmatpush.msra.mxu0 0.0
    %1343 = vmatpush.msra.mxu0 0.0
    %1344 = vmatpush.msra.mxu0 0.0
    %1345 = vmatpush.msra.mxu0 0.0
    %1346 = vmatpush.msra.mxu0 0.0
    %1347 = vmatpush.msra.mxu0 0.0
    %1348 = vmatpush.msra.mxu0 0.0
    %1349 = vmatpush.msra.mxu0 0.0
    %1350 = vmatpush.msra.mxu0 0.0
    %1351 = vmatpush.msra.mxu0 0.0
    %1352 = vmatpush.msra.mxu0 %v105
    %1353 = vmatmul.f32.gmra.mxu0 %v1335
    %v1354 = vpop.f32.mrf.mxu0
    %v1355 = vadd.f32 0.0, %v1354
    %1356 = vdwg.mxu0
    %v1358 = vrot.slane %v1355, 6
    %v1360 = vadd.f32 %v160, %v1358
    %1361 = vmatpush.msra.mxu0 0.0
    %1362 = vmatpush.msra.mxu0 0.0
    %1363 = vmatpush.msra.mxu0 0.0
    %1364 = vmatpush.msra.mxu0 0.0
    %1365 = vmatpush.msra.mxu0 0.0
    %1366 = vmatpush.msra.mxu0 0.0
    %1367 = vmatpush.msra.mxu0 0.0
    %1368 = vmatpush.msra.mxu0 0.0
    %1369 = vmatpush.msra.mxu0 0.0
    %1370 = vmatpush.msra.mxu0 0.0
    %1371 = vmatpush.msra.mxu0 0.0
    %1372 = vmatpush.msra.mxu0 0.0
    %1373 = vmatpush.msra.mxu0 0.0
    %1374 = vmatpush.msra.mxu0 0.0
    %1375 = vmatpush.msra.mxu0 %v107
    %1376 = vmatpush.msra.mxu0 %v106
    %1377 = vmatmul.f32.gmra.mxu0 %v1190
    %v1378 = vpop.f32.mrf.mxu0
    %v1379 = vadd.f32 0.0, %v1378
    %1380 = vdwg.mxu0
    %v1382 = vrot.slane %v1379, 6
    %v1384 = vadd.f32 %v1360, %v1382
    %v1385 = vmul.f32 %v1384, 0.5
    %v1386 = vtanh.pop %v1385
    %v1387 = vadd.f32 %v1386, 1.0
    %v1388 = vmul.f32 %v1387, 0.5
    %v1389 = vtanh.pop %v1384
    %v1391 = vrot.slane %v1180, 6
    %v1393 = vmul.f32 %v1388, %v1391
    %1395 = vrot.lane.b32.xlu0 %v1389, 80
    %v1396 = vpop.permute.xlu0 %1395
    %v1398 = vmul.f32 %v1388, %v1396
    %1400 = vrot.lane.b32.xlu0 %v1398, 16
    %v1401 = vpop.permute.xlu0 %1400
    %v1403 = vadd.f32 %v1393, %v1401
    %v1404 = vtanh.pop %v1403
    %1406 = vrot.lane.b32.xlu0 %v1404, 16
    %v1407 = vpop.permute.xlu0 %1406
    %v1409 = vmul.f32 %v1388, %v1407
    %v1411 = vrot.slane %v1409, 2
    %1412 = vrot.lane.b32.xlu0 %v1411, 96
    %v1413 = vpop.permute.xlu0 %1412
    %v1414 = vsel %vm163, %v1413, 0
    %1416 = vmatpush.msra.mxu0 0.0
    %1417 = vmatpush.msra.mxu0 0.0
    %1418 = vmatpush.msra.mxu0 0.0
    %1419 = vmatpush.msra.mxu0 0.0
    %1420 = vmatpush.msra.mxu0 0.0
    %1421 = vmatpush.msra.mxu0 0.0
    %1422 = vmatpush.msra.mxu0 0.0
    %1423 = vmatpush.msra.mxu0 0.0
    %1424 = vmatpush.msra.mxu0 0.0
    %1425 = vmatpush.msra.mxu0 0.0
    %1426 = vmatpush.msra.mxu0 0.0
    %1427 = vmatpush.msra.mxu0 0.0
    %1428 = vmatpush.msra.mxu0 0.0
    %1429 = vmatpush.msra.mxu0 0.0
    %1430 = vmatpush.msra.mxu0 %v109
    %1431 = vmatpush.msra.mxu0 %v108
    %1432 = vmatmul.f32.gmra.mxu0 %v1414
    %v1433 = vpop.f32.mrf.mxu0
    %v1434 = vadd.f32 0.0, %v1433
    %1435 = vdwg.mxu0
    %v1436 = vadd.f32 %v120, %v1434
    %1437 = vmatpush.msra.mxu0 0.0
    %1438 = vmatpush.msra.mxu0 0.0
    %1439 = vmatpush.msra.mxu0 0.0
    %1440 = vmatpush.msra.mxu0 0.0
    %1441 = vmatpush.msra.mxu0 0.0
    %1442 = vmatpush.msra.mxu0 0.0
    %1443 = vmatpush.msra.mxu0 0.0
    %1444 = vmatpush.msra.mxu0 0.0
    %1445 = vmatpush.msra.mxu0 0.0
    %1446 = vmatpush.msra.mxu0 0.0
    %1447 = vmatpush.msra.mxu0 0.0
    %1448 = vmatpush.msra.mxu0 0.0
    %1449 = vmatpush.msra.mxu0 0.0
    %1450 = vmatpush.msra.mxu0 0.0
    %1451 = vmatpush.msra.mxu0 %v111
    %1452 = vmatpush.msra.mxu0 %v110
    %1453 = vmatmul.f32.gmra.mxu0 %v1259
    %v1454 = vpop.f32.mrf.mxu0
    %v1455 = vadd.f32 0.0, %v1454
    %1456 = vdwg.mxu0
    %v1457 = vadd.f32 %v1436, %v1455
    %v1458 = vmul.f32 %v1457, 0.5
    %v1459 = vtanh.pop %v1458
    %v1460 = vadd.f32 %v1459, 1.0
    %v1461 = vmul.f32 %v1460, 0.5
    %v1462 = vtanh.pop %v1457
    %v1463 = vmul.f32 %v1461, %v1249
    %1465 = vrot.lane.b32.xlu0 %v1462, 80
    %v1466 = vpop.permute.xlu0 %1465
    %v1468 = vmul.f32 %v1461, %v1466
    %1470 = vrot.lane.b32.xlu0 %v1468, 16
    %v1471 = vpop.permute.xlu0 %1470
    %v1473 = vadd.f32 %v1463, %v1471
    %v1474 = vtanh.pop %v1473
    %1476 = vrot.lane.b32.xlu0 %v1474, 16
    %v1477 = vpop.permute.xlu0 %1476
    %v1479 = vmul.f32 %v1461, %v1477
    %1481 = vrot.lane.b32.xlu0 %v1479, 96
    %v1482 = vpop.permute.xlu0 %1481
    %v1483 = vsel %vm163, %v1482, 0
    %1485 = vmatpush.msra.mxu0 0.0
    %1486 = vmatpush.msra.mxu0 0.0
    %1487 = vmatpush.msra.mxu0 0.0
    %1488 = vmatpush.msra.mxu0 0.0
    %1489 = vmatpush.msra.mxu0 0.0
    %1490 = vmatpush.msra.mxu0 0.0
    %1491 = vmatpush.msra.mxu0 0.0
    %1492 = vmatpush.msra.mxu0 0.0
    %1493 = vmatpush.msra.mxu0 0.0
    %1494 = vmatpush.msra.mxu0 0.0
    %1495 = vmatpush.msra.mxu0 0.0
    %1496 = vmatpush.msra.mxu0 0.0
    %1497 = vmatpush.msra.mxu0 0.0
    %1498 = vmatpush.msra.mxu0 0.0
    %1499 = vmatpush.msra.mxu0 %v113
    %1500 = vmatpush.msra.mxu0 %v112
    %1501 = vmatmul.f32.gmra.mxu0 %v1483
    %v1502 = vpop.f32.mrf.mxu0
    %v1503 = vadd.f32 %v116, %v1502
    %1504 = vdwg.mxu0
    %s1505 = scalar_lea.vmem %s3, 10
    %v1506 = vld [vmem:[%s1505] sm:$0x3]
    %v1507 = vadd.f32 %v1503, %v1506
    %v1508 = vsel %vm187, %v1507, -inf
    %1509 = vmax.xlane.f32.xlu0 %v1508
    %v1510 = vpop.xlane.xlu0 %1509
    %v1511 = vsub.f32 %v1507, %v1510
    %v1512 = vmul.f32 %v1511, 1.442695
    %v1513 = vpow.pop %v1512
    %v1514 = vsel %vm187, %v1513, 0.0
    %1515 = vadd.xlane.f32.xlu0 %v1514
    %v1516 = vpop.xlane.xlu0 %1515
    %v1517 = vrcp.pop %v1516
    %v1518 = vmul.f32 %v1516, %v1517
    %v1519 = vsub.f32 1.0, %v1518
    %v1520 = vmul.f32 %v1517, %v1519
    %v1521 = vadd.f32 %v1517, %v1520
    %vm1522 = vweird.f32 %v1516
    %vm1523 = vweird.f32 %v1517
    %vm1524 = vmor %vm1522, %vm1523
    %v1525 = vsel %vm1524, %v1517, %v1521
    %v1526 = vand.u32 2147483647, %v1516
    %vm1527 = vcmp.eq.f32.partialorder %v1526, 8.507059e+37
    %v1528 = vand.u32 %v1516, 2147483648
    %v1529 = vor.u32 1.1754944e-38, %v1528
    %v1530 = vsel %vm1527, %v1529, %v1525
    %v1531 = vmul.f32 %v1513, %v1530
    %s1532 = scalar_lea.vmem %s13, 10
    %1533 = vst.msk [vmem:[%s1532] sm:$0x3] %vm187, %v1531
    %v1534 = vsel %vm187, %v1503, -inf
    %1535 = vmax.xlane.f32.xlu0 %v1534
    %v1536 = vpop.xlane.xlu0 %1535
    %v1537 = vsub.f32 %v1503, %v1536
    %v1538 = vmul.f32 %v1537, 1.442695
    %v1539 = vpow.pop %v1538
    %v1540 = vsel %vm187, %v1539, 0.0
    %1541 = vadd.xlane.f32.xlu0 %v1540
    %v1542 = vpop.xlane.xlu0 %1541
    %v1543 = vrcp.pop %v1542
    %v1544 = vmul.f32 %v1542, %v1543
    %v1545 = vsub.f32 1.0, %v1544
    %v1546 = vmul.f32 %v1543, %v1545
    %v1547 = vadd.f32 %v1543, %v1546
    %vm1548 = vweird.f32 %v1542
    %vm1549 = vweird.f32 %v1543
    %vm1550 = vmor %vm1548, %vm1549
    %v1551 = vsel %vm1550, %v1543, %v1547
    %v1552 = vand.u32 2147483647, %v1542
    %vm1553 = vcmp.eq.f32.partialorder %v1552, 8.507059e+37
    %v1554 = vand.u32 %v1542, 2147483648
    %v1555 = vor.u32 1.1754944e-38, %v1554
    %v1556 = vsel %vm1553, %v1555, %v1551
    %v1557 = vmul.f32 %v1539, %v1556
    %v1559 = vsel %vm218, %v1557, 0
    %1561 = vmatpush.msra.mxu0 0.0
    %1562 = vmatpush.msra.mxu0 0.0
    %1563 = vmatpush.msra.mxu0 0.0
    %1564 = vmatpush.msra.mxu0 0.0
    %1565 = vmatpush.msra.mxu0 0.0
    %1566 = vmatpush.msra.mxu0 0.0
    %1567 = vmatpush.msra.mxu0 0.0
    %1568 = vmatpush.msra.mxu0 0.0
    %1569 = vmatpush.msra.mxu0 0.0
    %1570 = vmatpush.msra.mxu0 0.0
    %1571 = vmatpush.msra.mxu0 0.0
    %1572 = vmatpush.msra.mxu0 0.0
    %1573 = vmatpush.msra.mxu0 0.0
    %1574 = vmatpush.msra.mxu0 0.0
    %1575 = vmatpush.msra.mxu0 0.0
    %1576 = vmatpush.msra.mxu0 %v105
    %1577 = vmatmul.f32.gmra.mxu0 %v1559
    %v1578 = vpop.f32.mrf.mxu0
    %v1579 = vadd.f32 0.0, %v1578
    %1580 = vdwg.mxu0
    %v1582 = vrot.slane %v1579, 4
    %v1584 = vadd.f32 %v160, %v1582
    %1585 = vmatpush.msra.mxu0 0.0
    %1586 = vmatpush.msra.mxu0 0.0
    %1587 = vmatpush.msra.mxu0 0.0
    %1588 = vmatpush.msra.mxu0 0.0
    %1589 = vmatpush.msra.mxu0 0.0
    %1590 = vmatpush.msra.mxu0 0.0
    %1591 = vmatpush.msra.mxu0 0.0
    %1592 = vmatpush.msra.mxu0 0.0
    %1593 = vmatpush.msra.mxu0 0.0
    %1594 = vmatpush.msra.mxu0 0.0
    %1595 = vmatpush.msra.mxu0 0.0
    %1596 = vmatpush.msra.mxu0 0.0
    %1597 = vmatpush.msra.mxu0 0.0
    %1598 = vmatpush.msra.mxu0 0.0
    %1599 = vmatpush.msra.mxu0 %v107
    %1600 = vmatpush.msra.mxu0 %v106
    %1601 = vmatmul.f32.gmra.mxu0 %v1414
    %v1602 = vpop.f32.mrf.mxu0
    %v1603 = vadd.f32 0.0, %v1602
    %1604 = vdwg.mxu0
    %v1606 = vrot.slane %v1603, 4
    %v1608 = vadd.f32 %v1584, %v1606
    %v1609 = vmul.f32 %v1608, 0.5
    %v1610 = vtanh.pop %v1609
    %v1611 = vadd.f32 %v1610, 1.0
    %v1612 = vmul.f32 %v1611, 0.5
    %v1613 = vtanh.pop %v1608
    %v1615 = vrot.slane %v1403, 6
    %v1617 = vmul.f32 %v1612, %v1615
    %1619 = vrot.lane.b32.xlu0 %v1613, 80
    %v1620 = vpop.permute.xlu0 %1619
    %v1622 = vmul.f32 %v1612, %v1620
    %1624 = vrot.lane.b32.xlu0 %v1622, 16
    %v1625 = vpop.permute.xlu0 %1624
    %v1627 = vadd.f32 %v1617, %v1625
    %v1628 = vtanh.pop %v1627
    %1630 = vrot.lane.b32.xlu0 %v1628, 16
    %v1631 = vpop.permute.xlu0 %1630
    %v1633 = vmul.f32 %v1612, %v1631
    %v1635 = vrot.slane %v1633, 4
    %1636 = vrot.lane.b32.xlu0 %v1635, 96
    %v1637 = vpop.permute.xlu0 %1636
    %v1638 = vsel %vm163, %v1637, 0
    %1640 = vmatpush.msra.mxu0 0.0
    %1641 = vmatpush.msra.mxu0 0.0
    %1642 = vmatpush.msra.mxu0 0.0
    %1643 = vmatpush.msra.mxu0 0.0
    %1644 = vmatpush.msra.mxu0 0.0
    %1645 = vmatpush.msra.mxu0 0.0
    %1646 = vmatpush.msra.mxu0 0.0
    %1647 = vmatpush.msra.mxu0 0.0
    %1648 = vmatpush.msra.mxu0 0.0
    %1649 = vmatpush.msra.mxu0 0.0
    %1650 = vmatpush.msra.mxu0 0.0
    %1651 = vmatpush.msra.mxu0 0.0
    %1652 = vmatpush.msra.mxu0 0.0
    %1653 = vmatpush.msra.mxu0 0.0
    %1654 = vmatpush.msra.mxu0 %v109
    %1655 = vmatpush.msra.mxu0 %v108
    %1656 = vmatmul.f32.gmra.mxu0 %v1638
    %v1657 = vpop.f32.mrf.mxu0
    %v1658 = vadd.f32 0.0, %v1657
    %1659 = vdwg.mxu0
    %v1660 = vadd.f32 %v120, %v1658
    %1661 = vmatpush.msra.mxu0 0.0
    %1662 = vmatpush.msra.mxu0 0.0
    %1663 = vmatpush.msra.mxu0 0.0
    %1664 = vmatpush.msra.mxu0 0.0
    %1665 = vmatpush.msra.mxu0 0.0
    %1666 = vmatpush.msra.mxu0 0.0
    %1667 = vmatpush.msra.mxu0 0.0
    %1668 = vmatpush.msra.mxu0 0.0
    %1669 = vmatpush.msra.mxu0 0.0
    %1670 = vmatpush.msra.mxu0 0.0
    %1671 = vmatpush.msra.mxu0 0.0
    %1672 = vmatpush.msra.mxu0 0.0
    %1673 = vmatpush.msra.mxu0 0.0
    %1674 = vmatpush.msra.mxu0 0.0
    %1675 = vmatpush.msra.mxu0 %v111
    %1676 = vmatpush.msra.mxu0 %v110
    %1677 = vmatmul.f32.gmra.mxu0 %v1483
    %v1678 = vpop.f32.mrf.mxu0
    %v1679 = vadd.f32 0.0, %v1678
    %1680 = vdwg.mxu0
    %v1681 = vadd.f32 %v1660, %v1679
    %v1682 = vmul.f32 %v1681, 0.5
    %v1683 = vtanh.pop %v1682
    %v1684 = vadd.f32 %v1683, 1.0
    %v1685 = vmul.f32 %v1684, 0.5
    %v1686 = vtanh.pop %v1681
    %v1687 = vmul.f32 %v1685, %v1473
    %1689 = vrot.lane.b32.xlu0 %v1686, 80
    %v1690 = vpop.permute.xlu0 %1689
    %v1692 = vmul.f32 %v1685, %v1690
    %1694 = vrot.lane.b32.xlu0 %v1692, 16
    %v1695 = vpop.permute.xlu0 %1694
    %v1697 = vadd.f32 %v1687, %v1695
    %v1698 = vtanh.pop %v1697
    %1700 = vrot.lane.b32.xlu0 %v1698, 16
    %v1701 = vpop.permute.xlu0 %1700
    %v1703 = vmul.f32 %v1685, %v1701
    %1705 = vrot.lane.b32.xlu0 %v1703, 96
    %v1706 = vpop.permute.xlu0 %1705
    %v1707 = vsel %vm163, %v1706, 0
    %1709 = vmatpush.msra.mxu0 0.0
    %1710 = vmatpush.msra.mxu0 0.0
    %1711 = vmatpush.msra.mxu0 0.0
    %1712 = vmatpush.msra.mxu0 0.0
    %1713 = vmatpush.msra.mxu0 0.0
    %1714 = vmatpush.msra.mxu0 0.0
    %1715 = vmatpush.msra.mxu0 0.0
    %1716 = vmatpush.msra.mxu0 0.0
    %1717 = vmatpush.msra.mxu0 0.0
    %1718 = vmatpush.msra.mxu0 0.0
    %1719 = vmatpush.msra.mxu0 0.0
    %1720 = vmatpush.msra.mxu0 0.0
    %1721 = vmatpush.msra.mxu0 0.0
    %1722 = vmatpush.msra.mxu0 0.0
    %1723 = vmatpush.msra.mxu0 %v113
    %1724 = vmatpush.msra.mxu0 %v112
    %1725 = vmatmul.f32.gmra.mxu0 %v1707
    %v1726 = vpop.f32.mrf.mxu0
    %v1727 = vadd.f32 %v116, %v1726
    %1728 = vdwg.mxu0
    %s1729 = scalar_lea.vmem %s3, 12
    %v1730 = vld [vmem:[%s1729] sm:$0x3]
    %v1731 = vadd.f32 %v1727, %v1730
    %v1732 = vsel %vm187, %v1731, -inf
    %1733 = vmax.xlane.f32.xlu0 %v1732
    %v1734 = vpop.xlane.xlu0 %1733
    %v1735 = vsub.f32 %v1731, %v1734
    %v1736 = vmul.f32 %v1735, 1.442695
    %v1737 = vpow.pop %v1736
    %v1738 = vsel %vm187, %v1737, 0.0
    %1739 = vadd.xlane.f32.xlu0 %v1738
    %v1740 = vpop.xlane.xlu0 %1739
    %v1741 = vrcp.pop %v1740
    %v1742 = vmul.f32 %v1740, %v1741
    %v1743 = vsub.f32 1.0, %v1742
    %v1744 = vmul.f32 %v1741, %v1743
    %v1745 = vadd.f32 %v1741, %v1744
    %vm1746 = vweird.f32 %v1740
    %vm1747 = vweird.f32 %v1741
    %vm1748 = vmor %vm1746, %vm1747
    %v1749 = vsel %vm1748, %v1741, %v1745
    %v1750 = vand.u32 2147483647, %v1740
    %vm1751 = vcmp.eq.f32.partialorder %v1750, 8.507059e+37
    %v1752 = vand.u32 %v1740, 2147483648
    %v1753 = vor.u32 1.1754944e-38, %v1752
    %v1754 = vsel %vm1751, %v1753, %v1749
    %v1755 = vmul.f32 %v1737, %v1754
    %s1756 = scalar_lea.vmem %s13, 12
    %1757 = vst.msk [vmem:[%s1756] sm:$0x3] %vm187, %v1755
    %v1758 = vsel %vm187, %v1727, -inf
    %1759 = vmax.xlane.f32.xlu0 %v1758
    %v1760 = vpop.xlane.xlu0 %1759
    %v1761 = vsub.f32 %v1727, %v1760
    %v1762 = vmul.f32 %v1761, 1.442695
    %v1763 = vpow.pop %v1762
    %v1764 = vsel %vm187, %v1763, 0.0
    %1765 = vadd.xlane.f32.xlu0 %v1764
    %v1766 = vpop.xlane.xlu0 %1765
    %v1767 = vrcp.pop %v1766
    %v1768 = vmul.f32 %v1766, %v1767
    %v1769 = vsub.f32 1.0, %v1768
    %v1770 = vmul.f32 %v1767, %v1769
    %v1771 = vadd.f32 %v1767, %v1770
    %vm1772 = vweird.f32 %v1766
    %vm1773 = vweird.f32 %v1767
    %vm1774 = vmor %vm1772, %vm1773
    %v1775 = vsel %vm1774, %v1767, %v1771
    %v1776 = vand.u32 2147483647, %v1766
    %vm1777 = vcmp.eq.f32.partialorder %v1776, 8.507059e+37
    %v1778 = vand.u32 %v1766, 2147483648
    %v1779 = vor.u32 1.1754944e-38, %v1778
    %v1780 = vsel %vm1777, %v1779, %v1775
    %v1781 = vmul.f32 %v1763, %v1780
    %v1783 = vsel %vm218, %v1781, 0
    %1785 = vmatpush.msra.mxu0 0.0
    %1786 = vmatpush.msra.mxu0 0.0
    %1787 = vmatpush.msra.mxu0 0.0
    %1788 = vmatpush.msra.mxu0 0.0
    %1789 = vmatpush.msra.mxu0 0.0
    %1790 = vmatpush.msra.mxu0 0.0
    %1791 = vmatpush.msra.mxu0 0.0
    %1792 = vmatpush.msra.mxu0 0.0
    %1793 = vmatpush.msra.mxu0 0.0
    %1794 = vmatpush.msra.mxu0 0.0
    %1795 = vmatpush.msra.mxu0 0.0
    %1796 = vmatpush.msra.mxu0 0.0
    %1797 = vmatpush.msra.mxu0 0.0
    %1798 = vmatpush.msra.mxu0 0.0
    %1799 = vmatpush.msra.mxu0 0.0
    %1800 = vmatpush.msra.mxu0 %v105
    %1801 = vmatmul.f32.gmra.mxu0 %v1783
    %v1802 = vpop.f32.mrf.mxu0
    %v1803 = vadd.f32 0.0, %v1802
    %1804 = vdwg.mxu0
    %v1806 = vrot.slane %v1803, 2
    %v1808 = vadd.f32 %v160, %v1806
    %1809 = vmatpush.msra.mxu0 0.0
    %1810 = vmatpush.msra.mxu0 0.0
    %1811 = vmatpush.msra.mxu0 0.0
    %1812 = vmatpush.msra.mxu0 0.0
    %1813 = vmatpush.msra.mxu0 0.0
    %1814 = vmatpush.msra.mxu0 0.0
    %1815 = vmatpush.msra.mxu0 0.0
    %1816 = vmatpush.msra.mxu0 0.0
    %1817 = vmatpush.msra.mxu0 0.0
    %1818 = vmatpush.msra.mxu0 0.0
    %1819 = vmatpush.msra.mxu0 0.0
    %1820 = vmatpush.msra.mxu0 0.0
    %1821 = vmatpush.msra.mxu0 0.0
    %1822 = vmatpush.msra.mxu0 0.0
    %1823 = vmatpush.msra.mxu0 %v107
    %1824 = vmatpush.msra.mxu0 %v106
    %1825 = vmatmul.f32.gmra.mxu0 %v1638
    %v1826 = vpop.f32.mrf.mxu0
    %v1827 = vadd.f32 0.0, %v1826
    %1828 = vdwg.mxu0
    %v1830 = vrot.slane %v1827, 2
    %v1832 = vadd.f32 %v1808, %v1830
    %v1833 = vmul.f32 %v1832, 0.5
    %v1834 = vtanh.pop %v1833
    %v1835 = vadd.f32 %v1834, 1.0
    %v1836 = vmul.f32 %v1835, 0.5
    %v1837 = vtanh.pop %v1832
    %v1839 = vrot.slane %v1627, 6
    %v1841 = vmul.f32 %v1836, %v1839
    %1843 = vrot.lane.b32.xlu0 %v1837, 80
    %v1844 = vpop.permute.xlu0 %1843
    %v1846 = vmul.f32 %v1836, %v1844
    %1848 = vrot.lane.b32.xlu0 %v1846, 16
    %v1849 = vpop.permute.xlu0 %1848
    %v1851 = vadd.f32 %v1841, %v1849
    %v1852 = vtanh.pop %v1851
    %1854 = vrot.lane.b32.xlu0 %v1852, 16
    %v1855 = vpop.permute.xlu0 %1854
    %v1857 = vmul.f32 %v1836, %v1855
    %v1859 = vrot.slane %v1857, 6
    %1860 = vrot.lane.b32.xlu0 %v1859, 96
    %v1861 = vpop.permute.xlu0 %1860
    %v1862 = vsel %vm163, %v1861, 0
    %1864 = vmatpush.msra.mxu0 0.0
    %1865 = vmatpush.msra.mxu0 0.0
    %1866 = vmatpush.msra.mxu0 0.0
    %1867 = vmatpush.msra.mxu0 0.0
    %1868 = vmatpush.msra.mxu0 0.0
    %1869 = vmatpush.msra.mxu0 0.0
    %1870 = vmatpush.msra.mxu0 0.0
    %1871 = vmatpush.msra.mxu0 0.0
    %1872 = vmatpush.msra.mxu0 0.0
    %1873 = vmatpush.msra.mxu0 0.0
    %1874 = vmatpush.msra.mxu0 0.0
    %1875 = vmatpush.msra.mxu0 0.0
    %1876 = vmatpush.msra.mxu0 0.0
    %1877 = vmatpush.msra.mxu0 0.0
    %1878 = vmatpush.msra.mxu0 %v109
    %1879 = vmatpush.msra.mxu0 %v108
    %1880 = vmatmul.f32.gmra.mxu0 %v1862
    %v1881 = vpop.f32.mrf.mxu0
    %v1882 = vadd.f32 0.0, %v1881
    %1883 = vdwg.mxu0
    %v1884 = vadd.f32 %v120, %v1882
    %1885 = vmatpush.msra.mxu0 0.0
    %1886 = vmatpush.msra.mxu0 0.0
    %1887 = vmatpush.msra.mxu0 0.0
    %1888 = vmatpush.msra.mxu0 0.0
    %1889 = vmatpush.msra.mxu0 0.0
    %1890 = vmatpush.msra.mxu0 0.0
    %1891 = vmatpush.msra.mxu0 0.0
    %1892 = vmatpush.msra.mxu0 0.0
    %1893 = vmatpush.msra.mxu0 0.0
    %1894 = vmatpush.msra.mxu0 0.0
    %1895 = vmatpush.msra.mxu0 0.0
    %1896 = vmatpush.msra.mxu0 0.0
    %1897 = vmatpush.msra.mxu0 0.0
    %1898 = vmatpush.msra.mxu0 0.0
    %1899 = vmatpush.msra.mxu0 %v111
    %1900 = vmatpush.msra.mxu0 %v110
    %1901 = vmatmul.f32.gmra.mxu0 %v1707
    %v1902 = vpop.f32.mrf.mxu0
    %v1903 = vadd.f32 0.0, %v1902
    %1904 = vdwg.mxu0
    %v1905 = vadd.f32 %v1884, %v1903
    %v1906 = vmul.f32 %v1905, 0.5
    %v1907 = vtanh.pop %v1906
    %v1908 = vadd.f32 %v1907, 1.0
    %v1909 = vmul.f32 %v1908, 0.5
    %v1910 = vtanh.pop %v1905
    %v1911 = vmul.f32 %v1909, %v1697
    %1913 = vrot.lane.b32.xlu0 %v1910, 80
    %v1914 = vpop.permute.xlu0 %1913
    %v1916 = vmul.f32 %v1909, %v1914
    %1918 = vrot.lane.b32.xlu0 %v1916, 16
    %v1919 = vpop.permute.xlu0 %1918
    %v1921 = vadd.f32 %v1911, %v1919
    %v1922 = vtanh.pop %v1921
    %1924 = vrot.lane.b32.xlu0 %v1922, 16
    %v1925 = vpop.permute.xlu0 %1924
    %v1927 = vmul.f32 %v1909, %v1925
    %1929 = vrot.lane.b32.xlu0 %v1927, 96
    %v1930 = vpop.permute.xlu0 %1929
    %v1931 = vsel %vm163, %v1930, 0
    %1933 = vmatpush.msra.mxu0 0.0
    %1934 = vmatpush.msra.mxu0 0.0
    %1935 = vmatpush.msra.mxu0 0.0
    %1936 = vmatpush.msra.mxu0 0.0
    %1937 = vmatpush.msra.mxu0 0.0
    %1938 = vmatpush.msra.mxu0 0.0
    %1939 = vmatpush.msra.mxu0 0.0
    %1940 = vmatpush.msra.mxu0 0.0
    %1941 = vmatpush.msra.mxu0 0.0
    %1942 = vmatpush.msra.mxu0 0.0
    %1943 = vmatpush.msra.mxu0 0.0
    %1944 = vmatpush.msra.mxu0 0.0
    %1945 = vmatpush.msra.mxu0 0.0
    %1946 = vmatpush.msra.mxu0 0.0
    %1947 = vmatpush.msra.mxu0 %v113
    %1948 = vmatpush.msra.mxu0 %v112
    %1949 = vmatmul.f32.gmra.mxu0 %v1931
    %v1950 = vpop.f32.mrf.mxu0
    %v1951 = vadd.f32 %v116, %v1950
    %1952 = vdwg.mxu0
    %s1953 = scalar_lea.vmem %s3, 14
    %v1954 = vld [vmem:[%s1953] sm:$0x3]
    %v1955 = vadd.f32 %v1951, %v1954
    %v1956 = vsel %vm187, %v1955, -inf
    %1957 = vmax.xlane.f32.xlu0 %v1956
    %v1958 = vpop.xlane.xlu0 %1957
    %v1959 = vsub.f32 %v1955, %v1958
    %v1960 = vmul.f32 %v1959, 1.442695
    %v1961 = vpow.pop %v1960
    %v1962 = vsel %vm187, %v1961, 0.0
    %1963 = vadd.xlane.f32.xlu0 %v1962
    %v1964 = vpop.xlane.xlu0 %1963
    %v1965 = vrcp.pop %v1964
    %v1966 = vmul.f32 %v1964, %v1965
    %v1967 = vsub.f32 1.0, %v1966
    %v1968 = vmul.f32 %v1965, %v1967
    %v1969 = vadd.f32 %v1965, %v1968
    %vm1970 = vweird.f32 %v1964
    %vm1971 = vweird.f32 %v1965
    %vm1972 = vmor %vm1970, %vm1971
    %v1973 = vsel %vm1972, %v1965, %v1969
    %v1974 = vand.u32 2147483647, %v1964
    %vm1975 = vcmp.eq.f32.partialorder %v1974, 8.507059e+37
    %v1976 = vand.u32 %v1964, 2147483648
    %v1977 = vor.u32 1.1754944e-38, %v1976
    %v1978 = vsel %vm1975, %v1977, %v1973
    %v1979 = vmul.f32 %v1961, %v1978
    %s1980 = scalar_lea.vmem %s13, 14
    %1981 = vst.msk [vmem:[%s1980] sm:$0x3] %vm187, %v1979
    // Predicated region
    $region70: #{lstm_decoder_forward.1} parent=1 // pred_check
      _
    $region71: #{lstm_decoder_forward.1} parent=1 // pred_check_branch
      %1983 = sbr.rel (0) target = $region73
    $region72: #{lstm_decoder_forward.1} parent=1 // pred_region
      _
    $region73: #{lstm_decoder_forward.1} parent=1 // pred_fallthru
      _
    // Predicated region
    $region74: #{lstm_decoder_forward.1} parent=1 // pred_check
      _
    $region75: #{lstm_decoder_forward.1} parent=1 // pred_check_branch
      %1985 = sbr.rel (0) target = $region77
    $region76: #{lstm_decoder_forward.1} parent=1 // pred_region
      _
    $region77: #{lstm_decoder_forward.1} parent=1 // pred_fallthru
      _
    %1986 = vsyncpa [#allocation3], 1
    %1987 = vsyncpa [#allocation5], 1
    %1988 = vsyncpa [#allocation8], 1

</llo_original>
